<compile_context>
chip_gen: v7x
topology: tpu7x:2x2x1
jax: 0.10.0
libtpu: 0.0.40
codegen_flags: <defaults>
</compile_context>

<pallas_src>
import jax
import jax.numpy as jnp
from jax import lax
from jax.experimental import pallas as pl
from jax.experimental.pallas import tpu as pltpu

_DEPTH = 4  # DilatedDenseNet depth


# ---------------------------------------------------------------------------
# Packed-weight column layout (shared by prepack and the kernel builder)
# ---------------------------------------------------------------------------
def _weight_layout(in_ch, C, depth=_DEPTH):
    offs, k = {}, 0
    offs["conv1"] = k
    k += in_ch
    for i in range(depth):
        offs[f"dense{i}"] = k
        k += 6 * C * (i + 1)          # 6 taps x Cin = C*(i+1)
    offs["conv2"] = k
    k += 3 * C                        # 3 taps x Cin = C
    return offs, k


# ---------------------------------------------------------------------------
# Fully fused DenseEncoder kernel (one batch sample per grid step)
# ---------------------------------------------------------------------------
def _make_encoder_kernel(in_ch, C, H, W, depth=_DEPTH):
    Wp = W + 2                        # row stride of every padded map
    M = H * Wp                        # flat per-layer spatial extent
    pad_top = 2 ** (depth - 1)        # max dilation -> shared top zero rows
    slab_len = (pad_top + H + 1) * Wp  # +1 slack row keeps spill reads in-bounds
    w_out = (W - 1) // 2 + 1          # conv_2 output width
    eps = 1e-5
    offs, k_total = _weight_layout(in_ch, C, depth)

    def kernel(x_ref, w_ref, m_ref, p_ref, o_ref, slab):
        # Scratch VMEM is not zero-initialised; the untouched slab rows/columns
        # double as the ConstantPad2d zeros, so clear it for every sample.
        slab[...] = jnp.zeros_like(slab)

        mask_c1 = m_ref[0:1, :]       # valid columns of the width-padded conv_1 map
        mask_d = m_ref[1:2, :]        # valid columns of a dense-layer output row
        mask_c2 = m_ref[2:3, :]       # valid stride-2 positions for conv_2

        def in_prelu(acc, mask, n_valid, layer):
            # InstanceNorm2d(affine) + per-channel PReLU, masked single pass.
            g = p_ref[:, 3 * layer + 0:3 * layer + 1]
            b = p_ref[:, 3 * layer + 1:3 * layer + 2]
            a = p_ref[:, 3 * layer + 2:3 * layer + 3]
            inv_n = 1.0 / float(n_valid)
            am = acc * mask
            mean = jnp.sum(am, axis=1, keepdims=True) * inv_n
            ex2 = jnp.sum(am * acc, axis=1, keepdims=True) * inv_n
            var = jnp.maximum(ex2 - mean * mean, 0.0)   # clamp f32 cancellation
            y = (acc - mean) * lax.rsqrt(var + eps) * g + b
            return jnp.where(y >= 0.0, y, a * y)

        # ---- conv_1: 1x1 conv + IN + PReLU --------------------------------
        # Input already carries the (1,1) width pad, so the output lands in the
        # slab layout (data at columns [1, 1+W)) with one contiguous store.
        w1 = w_ref[:, offs["conv1"]:offs["conv1"] + in_ch]
        acc = jnp.dot(w1, x_ref[0], preferred_element_type=jnp.float32)
        y = in_prelu(acc, mask_c1, H * W, 0)
        slab[0:C, pad_top * Wp:pad_top * Wp + M] = (y * mask_c1).astype(slab.dtype)

        # ---- DilatedDenseNet: skip-concat == growing slab row range --------
        for i in range(depth):
            dil = 2 ** i
            cin = C * (i + 1)
            base = (pad_top - dil) * Wp       # start of this layer's padded view
            c0 = offs[f"dense{i}"]
            acc = jnp.zeros((C, M), jnp.float32)
            t = 0
            for kt in range(2):               # per-tap accumulation: 6 short-K
                for kf in range(3):           # MXU pushes, no (6*cin, M) concat
                    w_t = w_ref[:, c0 + t * cin:c0 + (t + 1) * cin]
                    off = base + kt * dil * Wp + kf
                    acc = acc + jnp.dot(w_t, slab[0:cin, off:off + M],
                                        preferred_element_type=jnp.float32)
                    t += 1
            y = in_prelu(acc, mask_d, H * W, 1 + i)
            # Masked store: the two invalid columns per row become the zero
            # left/right padding of the next layer's input.
            slab[(i + 1) * C:(i + 2) * C,
                 pad_top * Wp + 1:pad_top * Wp + 1 + M] = \
                (y * mask_d).astype(slab.dtype)

        # ---- conv_2: (1,3) conv, stride (1,2), pad (0,1) + IN + PReLU ------
        # Computed at stride 1 (taps at lane offsets 0/1/2 of the padded rows);
        # IN statistics use only the valid stride-2 positions; the wrapper
        # takes the even columns.
        c0 = offs["conv2"]
        acc = jnp.zeros((C, M), jnp.float32)
        for t in range(3):
            w_t = w_ref[:, c0 + t * C:c0 + (t + 1) * C]
            off = pad_top * Wp + t
            acc = acc + jnp.dot(w_t, slab[depth * C:(depth + 1) * C, off:off + M],
                                preferred_element_type=jnp.float32)
        y = in_prelu(acc, mask_c2, H * w_out, depth + 1)
        o_ref[0] = y.astype(o_ref.dtype)

    return kernel, k_total, slab_len


# ---------------------------------------------------------------------------
# Parameter initialization (deterministic, synthetic, PyTorch layout)
# ---------------------------------------------------------------------------
def init_params(key, in_ch, C, depth=_DEPTH):
    def conv_w(k, cout, cin, kh, kw):
        fan_in = cin * kh * kw
        return jax.random.normal(k, (cout, cin, kh, kw),
                                 jnp.float32) / jnp.sqrt(float(fan_in))

    def norm_act():
        return dict(gamma=jnp.ones((C,), jnp.float32),
                    beta=jnp.zeros((C,), jnp.float32),
                    alpha=jnp.full((C,), 0.25, jnp.float32))

    keys = jax.random.split(key, depth + 2)
    params = {"conv1": dict(w=conv_w(keys[0], C, in_ch, 1, 1), **norm_act())}
    params["dense"] = [
        dict(w=conv_w(keys[1 + i], C, C * (i + 1), 2, 3), **norm_act())
        for i in range(depth)
    ]
    params["conv2"] = dict(w=conv_w(keys[depth + 1], C, C, 1, 3), **norm_act())
    # Conv biases intentionally omitted: a per-channel bias added directly
    # before InstanceNorm is removed exactly by the masked mean subtraction.
    return params


def prepack_params(params, in_ch, C, H, W, depth=_DEPTH):
    """One-time host-side packing (call OUTSIDE the jitted forward)."""
    offs, k_total = _weight_layout(in_ch, C, depth)
    w_pack = jnp.zeros((C, k_total), jnp.float32)

    w1 = params["conv1"]["w"].reshape(C, in_ch)
    w_pack = w_pack.at[:, offs["conv1"]:offs["conv1"] + in_ch].set(w1)

    for i in range(depth):
        cin = C * (i + 1)
        w = params["dense"][i]["w"]                           # (C, cin, 2, 3)
        # PyTorch skip order is [out_{i-1}, ..., out_0, x]; the slab appends as
        # [x, out_0, ..., out_{i-1}] -> reverse the in-channel groups.
        w = w.reshape(C, i + 1, C, 2, 3)[:, ::-1].reshape(C, cin, 2, 3)
        w = jnp.transpose(w, (0, 2, 3, 1)).reshape(C, 6 * cin)  # tap-major
        w_pack = w_pack.at[:, offs[f"dense{i}"]:offs[f"dense{i}"] + 6 * cin].set(w)

    w2 = jnp.transpose(params["conv2"]["w"], (0, 2, 3, 1)).reshape(C, 3 * C)
    w_pack = w_pack.at[:, offs["conv2"]:offs["conv2"] + 3 * C].set(w2)

    layers = [params["conv1"]] + list(params["dense"]) + [params["conv2"]]
    norm = jnp.stack([jnp.stack([p["gamma"], p["beta"], p["alpha"]], axis=-1)
                      for p in layers], axis=1).reshape(C, 3 * (depth + 2))

    Wp = W + 2
    M = H * Wp
    w_out = (W - 1) // 2 + 1
    col = jnp.arange(M, dtype=jnp.int32) % Wp
    mask_c1 = ((col >= 1) & (col < W + 1)).astype(jnp.float32)
    mask_d = (col < W).astype(jnp.float32)
    mask_c2 = ((col < 2 * w_out) & (col % 2 == 0)).astype(jnp.float32)
    masks = jnp.stack([mask_c1, mask_d, mask_c2], axis=0)     # (3, M)

    return dict(w=w_pack.astype(jnp.bfloat16), norm=norm, mask=masks)


# ---------------------------------------------------------------------------
# DenseEncoder forward: one fused pallas_call + a few tiny glue ops
# ---------------------------------------------------------------------------
def dense_encoder_forward(x_nchw, packed, depth=_DEPTH):
    """x_nchw: (B, in_ch, H, W) f32.  Returns (B, C, H, W_out) bf16."""
    B, in_ch, H, W = x_nchw.shape
    C = packed["norm"].shape[0]
    Wp = W + 2
    M = H * Wp
    w_out = (W - 1) // 2 + 1

    kernel, k_total, slab_len = _make_encoder_kernel(in_ch, C, H, W, depth)
    assert packed["w"].shape == (C, k_total)

    # Width-pad once so conv_1's output already matches the slab layout.
    xp = jnp.pad(x_nchw, ((0, 0), (0, 0), (0, 0), (1, 1)))
    xp = xp.reshape(B, in_ch, M).astype(jnp.bfloat16)

    y = pl.pallas_call(
        kernel,
        out_shape=jax.ShapeDtypeStruct((B, C, M), jnp.bfloat16),
        grid=(B,),
        in_specs=[
            pl.BlockSpec((1, in_ch, M), lambda b: (b, 0, 0)),
            pl.BlockSpec((C, k_total), lambda b: (0, 0)),
            pl.BlockSpec((3, M), lambda b: (0, 0)),
            pl.BlockSpec((C, 3 * (depth + 2)), lambda b: (0, 0)),
        ],
        out_specs=pl.BlockSpec((1, C, M), lambda b: (b, 0, 0)),
        scratch_shapes=[pltpu.VMEM(((depth + 1) * C, slab_len), jnp.bfloat16)],
        compiler_params=pltpu.CompilerParams(
            dimension_semantics=("parallel",),
            vmem_limit_bytes=32 * 1024 * 1024),
    )(xp, packed["w"], packed["mask"], packed["norm"])

    # conv_2 was computed at stride 1; keep the stride-2 (even) positions.
    return y.reshape(B, C, H, Wp)[:, :, :, 0:2 * w_out:2]


# ---------------------------------------------------------------------------
if __name__ == "__main__":
    key = jax.random.PRNGKey(0)
    B, in_ch, H, W = 2, 3, 8, 16     # small NCHW input (compressed-spec feats)
    channels = 16

    k_x, k_p = jax.random.split(key)
    x = jax.random.normal(k_x, (B, in_ch, H, W), jnp.float32)
    params = init_params(k_p, in_ch, channels)
    packed = prepack_params(params, in_ch, channels, H, W)   # once, outside jit

    fwd = jax.jit(dense_encoder_forward)
    out = jax.block_until_ready(fwd(x, packed))

    w_out = (W - 1) // 2 + 1
    assert out.shape == (B, channels, H, w_out), out.shape
    assert bool(jnp.all(jnp.isfinite(out.astype(jnp.float32))))
    print("KERNEL_OK")
</pallas_src>

<mosaic_0001>
module attributes {stable_mosaic.version = 11 : i64} {
  func.func @kernel(%arg0: i32, %arg1: memref<1x3x144xbf16, #tpu.memory_space<vmem>>, %arg2: memref<16x1011xbf16, #tpu.memory_space<vmem>>, %arg3: memref<3x144xf32, #tpu.memory_space<vmem>>, %arg4: memref<16x18xf32, #tpu.memory_space<vmem>>, %arg5: memref<1x16x144xbf16, #tpu.memory_space<vmem>>, %arg6: memref<80x306xbf16, #tpu.memory_space<vmem>>) attributes {dimension_semantics = [#tpu.dimension_semantics<parallel>], iteration_bounds = array<i64: 2>, scalar_prefetch = 0 : i64, scratch_operands = 1 : i64, tpu.core_type = #tpu.core_type<tc>, window_params = [{transform_indices = @transform_0, window_bounds = array<i64: 1, 3, 144>}, {pipeline_mode = #tpu.pipeline_mode<synchronous>, transform_indices = @transform_1, window_bounds = array<i64: 16, 1011>}, {pipeline_mode = #tpu.pipeline_mode<synchronous>, transform_indices = @transform_2, window_bounds = array<i64: 3, 144>}, {pipeline_mode = #tpu.pipeline_mode<synchronous>, transform_indices = @transform_3, window_bounds = array<i64: 16, 18>}, {transform_indices = @transform_4, window_bounds = array<i64: 1, 16, 144>}]} {
    %cst = arith.constant 0.000000e+00 : bf16
    %0 = vector.broadcast %cst : bf16 to vector<80x306xbf16>
    %c0 = arith.constant 0 : index
    %c0_0 = arith.constant 0 : index
    %1 = vector.load %arg6[%c0, %c0_0] : memref<80x306xbf16, #tpu.memory_space<vmem>>, vector<80x306xbf16>
    tpu.vector_store %arg6[%c0, %c0_0], %0 {strides = array<i32>} : memref<80x306xbf16, #tpu.memory_space<vmem>>, vector<80x306xbf16>,
    %c0_1 = arith.constant 0 : index
    %c0_2 = arith.constant 0 : index
    %2 = vector.load %arg3[%c0_1, %c0_2] : memref<3x144xf32, #tpu.memory_space<vmem>>, vector<1x144xf32>
    %c1 = arith.constant 1 : index
    %c0_3 = arith.constant 0 : index
    %3 = vector.load %arg3[%c1, %c0_3] : memref<3x144xf32, #tpu.memory_space<vmem>>, vector<1x144xf32>
    %c2 = arith.constant 2 : index
    %c0_4 = arith.constant 0 : index
    %4 = vector.load %arg3[%c2, %c0_4] : memref<3x144xf32, #tpu.memory_space<vmem>>, vector<1x144xf32>
    %c0_5 = arith.constant 0 : index
    %c0_6 = arith.constant 0 : index
    %5 = vector.load %arg2[%c0_5, %c0_6] : memref<16x1011xbf16, #tpu.memory_space<vmem>>, vector<16x3xbf16>
    %c0_7 = arith.constant 0 : index
    %c0_8 = arith.constant 0 : index
    %c0_9 = arith.constant 0 : index
    %6 = vector.load %arg1[%c0_7, %c0_8, %c0_9] : memref<1x3x144xbf16, #tpu.memory_space<vmem>>, vector<1x3x144xbf16>
    %7 = vector.shape_cast %6 : vector<1x3x144xbf16> to vector<3x144xbf16>
    %cst_10 = arith.constant dense<0.000000e+00> : vector<16x144xf32>
    %8 = tpu.matmul %5, %7, %cst_10 {dimension_numbers = #tpu.dot_dimension_numbers<[1], [0], [0], [1], [0, 0, 1, 1], [], []>} : vector<16x3xbf16>, vector<3x144xbf16>, vector<16x144xf32> -> vector<16x144xf32>
    %c0_11 = arith.constant 0 : index
    %c0_12 = arith.constant 0 : index
    %9 = vector.load %arg4[%c0_11, %c0_12] : memref<16x18xf32, #tpu.memory_space<vmem>>, vector<16x1xf32>
    %c0_13 = arith.constant 0 : index
    %c1_14 = arith.constant 1 : index
    %10 = vector.load %arg4[%c0_13, %c1_14] : memref<16x18xf32, #tpu.memory_space<vmem>>, vector<16x1xf32>
    %c0_15 = arith.constant 0 : index
    %c2_16 = arith.constant 2 : index
    %11 = vector.load %arg4[%c0_15, %c2_16] : memref<16x18xf32, #tpu.memory_space<vmem>>, vector<16x1xf32>
    %12 = vector.broadcast %2 : vector<1x144xf32> to vector<16x144xf32>
    %13 = arith.mulf %8, %12 : vector<16x144xf32>
    %cst_17 = arith.constant dense<0.000000e+00> : vector<16xf32>
    %14 = vector.multi_reduction <add>, %13, %cst_17 [1] : vector<16x144xf32> to vector<16xf32>
    %15 = vector.shape_cast %14 : vector<16xf32> to vector<16x1xf32>
    %cst_18 = arith.constant 7.812500e-03 : f32
    %16 = vector.broadcast %cst_18 : f32 to vector<16x1xf32>
    %17 = arith.mulf %15, %16 : vector<16x1xf32>
    %18 = arith.mulf %13, %8 : vector<16x144xf32>
    %cst_19 = arith.constant dense<0.000000e+00> : vector<16xf32>
    %19 = vector.multi_reduction <add>, %18, %cst_19 [1] : vector<16x144xf32> to vector<16xf32>
    %20 = vector.shape_cast %19 : vector<16xf32> to vector<16x1xf32>
    %cst_20 = arith.constant 7.812500e-03 : f32
    %21 = vector.broadcast %cst_20 : f32 to vector<16x1xf32>
    %22 = arith.mulf %20, %21 : vector<16x1xf32>
    %23 = arith.mulf %17, %17 : vector<16x1xf32>
    %24 = arith.subf %22, %23 : vector<16x1xf32>
    %cst_21 = arith.constant 0.000000e+00 : f32
    %25 = vector.broadcast %cst_21 : f32 to vector<16x1xf32>
    %26 = arith.maximumf %24, %25 : vector<16x1xf32>
    %27 = vector.broadcast %17 : vector<16x1xf32> to vector<16x144xf32>
    %28 = arith.subf %8, %27 : vector<16x144xf32>
    %cst_22 = arith.constant 9.99999974E-6 : f32
    %29 = vector.broadcast %cst_22 : f32 to vector<16x1xf32>
    %30 = arith.addf %26, %29 : vector<16x1xf32>
    %31 = math.rsqrt %30 : vector<16x1xf32>
    %32 = vector.broadcast %31 : vector<16x1xf32> to vector<16x144xf32>
    %33 = arith.mulf %28, %32 : vector<16x144xf32>
    %34 = vector.broadcast %9 : vector<16x1xf32> to vector<16x144xf32>
    %35 = arith.mulf %33, %34 : vector<16x144xf32>
    %36 = vector.broadcast %10 : vector<16x1xf32> to vector<16x144xf32>
    %37 = arith.addf %35, %36 : vector<16x144xf32>
    %cst_23 = arith.constant 0.000000e+00 : f32
    %38 = vector.broadcast %cst_23 : f32 to vector<16x144xf32>
    %39 = arith.cmpf oge, %37, %38 : vector<16x144xf32>
    %40 = vector.broadcast %11 : vector<16x1xf32> to vector<16x144xf32>
    %41 = arith.mulf %40, %37 : vector<16x144xf32>
    %42 = arith.select %39, %37, %41 : vector<16x144xi1>, vector<16x144xf32>
    %43 = vector.broadcast %2 : vector<1x144xf32> to vector<16x144xf32>
    %44 = arith.mulf %42, %43 : vector<16x144xf32>
    %45 = arith.truncf %44 : vector<16x144xf32> to vector<16x144xbf16>
    %c0_24 = arith.constant 0 : index
    %c144 = arith.constant 144 : index
    %46 = vector.load %arg6[%c0_24, %c144] : memref<80x306xbf16, #tpu.memory_space<vmem>>, vector<16x144xbf16>
    tpu.vector_store %arg6[%c0_24, %c144], %45 {strides = array<i32>} : memref<80x306xbf16, #tpu.memory_space<vmem>>, vector<16x144xbf16>,
    %cst_25 = arith.constant 0.000000e+00 : f32
    %47 = vector.broadcast %cst_25 : f32 to vector<16x144xf32>
    %c0_26 = arith.constant 0 : index
    %c3 = arith.constant 3 : index
    %48 = vector.load %arg2[%c0_26, %c3] : memref<16x1011xbf16, #tpu.memory_space<vmem>>, vector<16x16xbf16>
    %c0_27 = arith.constant 0 : index
    %c126 = arith.constant 126 : index
    %49 = vector.load %arg6[%c0_27, %c126] : memref<80x306xbf16, #tpu.memory_space<vmem>>, vector<16x144xbf16>
    %cst_28 = arith.constant dense<0.000000e+00> : vector<16x144xf32>
    %50 = tpu.matmul %48, %49, %cst_28 {dimension_numbers = #tpu.dot_dimension_numbers<[1], [0], [0], [1], [0, 0, 1, 1], [], []>} : vector<16x16xbf16>, vector<16x144xbf16>, vector<16x144xf32> -> vector<16x144xf32>
    %51 = arith.addf %47, %50 : vector<16x144xf32>
    %c0_29 = arith.constant 0 : index
    %c19 = arith.constant 19 : index
    %52 = vector.load %arg2[%c0_29, %c19] : memref<16x1011xbf16, #tpu.memory_space<vmem>>, vector<16x16xbf16>
    %c0_30 = arith.constant 0 : index
    %c127 = arith.constant 127 : index
    %53 = vector.load %arg6[%c0_30, %c127] : memref<80x306xbf16, #tpu.memory_space<vmem>>, vector<16x144xbf16>
    %cst_31 = arith.constant dense<0.000000e+00> : vector<16x144xf32>
    %54 = tpu.matmul %52, %53, %cst_31 {dimension_numbers = #tpu.dot_dimension_numbers<[1], [0], [0], [1], [0, 0, 1, 1], [], []>} : vector<16x16xbf16>, vector<16x144xbf16>, vector<16x144xf32> -> vector<16x144xf32>
    %55 = arith.addf %51, %54 : vector<16x144xf32>
    %c0_32 = arith.constant 0 : index
    %c35 = arith.constant 35 : index
    %56 = vector.load %arg2[%c0_32, %c35] : memref<16x1011xbf16, #tpu.memory_space<vmem>>, vector<16x16xbf16>
    %c0_33 = arith.constant 0 : index
    %c128 = arith.constant 128 : index
    %57 = vector.load %arg6[%c0_33, %c128] : memref<80x306xbf16, #tpu.memory_space<vmem>>, vector<16x144xbf16>
    %cst_34 = arith.constant dense<0.000000e+00> : vector<16x144xf32>
    %58 = tpu.matmul %56, %57, %cst_34 {dimension_numbers = #tpu.dot_dimension_numbers<[1], [0], [0], [1], [0, 0, 1, 1], [], []>} : vector<16x16xbf16>, vector<16x144xbf16>, vector<16x144xf32> -> vector<16x144xf32>
    %59 = arith.addf %55, %58 : vector<16x144xf32>
    %c0_35 = arith.constant 0 : index
    %c51 = arith.constant 51 : index
    %60 = vector.load %arg2[%c0_35, %c51] : memref<16x1011xbf16, #tpu.memory_space<vmem>>, vector<16x16xbf16>
    %c0_36 = arith.constant 0 : index
    %c144_37 = arith.constant 144 : index
    %61 = vector.load %arg6[%c0_36, %c144_37] : memref<80x306xbf16, #tpu.memory_space<vmem>>, vector<16x144xbf16>
    %cst_38 = arith.constant dense<0.000000e+00> : vector<16x144xf32>
    %62 = tpu.matmul %60, %61, %cst_38 {dimension_numbers = #tpu.dot_dimension_numbers<[1], [0], [0], [1], [0, 0, 1, 1], [], []>} : vector<16x16xbf16>, vector<16x144xbf16>, vector<16x144xf32> -> vector<16x144xf32>
    %63 = arith.addf %59, %62 : vector<16x144xf32>
    %c0_39 = arith.constant 0 : index
    %c67 = arith.constant 67 : index
    %64 = vector.load %arg2[%c0_39, %c67] : memref<16x1011xbf16, #tpu.memory_space<vmem>>, vector<16x16xbf16>
    %c0_40 = arith.constant 0 : index
    %c145 = arith.constant 145 : index
    %65 = vector.load %arg6[%c0_40, %c145] : memref<80x306xbf16, #tpu.memory_space<vmem>>, vector<16x144xbf16>
    %cst_41 = arith.constant dense<0.000000e+00> : vector<16x144xf32>
    %66 = tpu.matmul %64, %65, %cst_41 {dimension_numbers = #tpu.dot_dimension_numbers<[1], [0], [0], [1], [0, 0, 1, 1], [], []>} : vector<16x16xbf16>, vector<16x144xbf16>, vector<16x144xf32> -> vector<16x144xf32>
    %67 = arith.addf %63, %66 : vector<16x144xf32>
    %c0_42 = arith.constant 0 : index
    %c83 = arith.constant 83 : index
    %68 = vector.load %arg2[%c0_42, %c83] : memref<16x1011xbf16, #tpu.memory_space<vmem>>, vector<16x16xbf16>
    %c0_43 = arith.constant 0 : index
    %c146 = arith.constant 146 : index
    %69 = vector.load %arg6[%c0_43, %c146] : memref<80x306xbf16, #tpu.memory_space<vmem>>, vector<16x144xbf16>
    %cst_44 = arith.constant dense<0.000000e+00> : vector<16x144xf32>
    %70 = tpu.matmul %68, %69, %cst_44 {dimension_numbers = #tpu.dot_dimension_numbers<[1], [0], [0], [1], [0, 0, 1, 1], [], []>} : vector<16x16xbf16>, vector<16x144xbf16>, vector<16x144xf32> -> vector<16x144xf32>
    %71 = arith.addf %67, %70 : vector<16x144xf32>
    %c0_45 = arith.constant 0 : index
    %c3_46 = arith.constant 3 : index
    %72 = vector.load %arg4[%c0_45, %c3_46] : memref<16x18xf32, #tpu.memory_space<vmem>>, vector<16x1xf32>
    %c0_47 = arith.constant 0 : index
    %c4 = arith.constant 4 : index
    %73 = vector.load %arg4[%c0_47, %c4] : memref<16x18xf32, #tpu.memory_space<vmem>>, vector<16x1xf32>
    %c0_48 = arith.constant 0 : index
    %c5 = arith.constant 5 : index
    %74 = vector.load %arg4[%c0_48, %c5] : memref<16x18xf32, #tpu.memory_space<vmem>>, vector<16x1xf32>
    %75 = vector.broadcast %3 : vector<1x144xf32> to vector<16x144xf32>
    %76 = arith.mulf %71, %75 : vector<16x144xf32>
    %cst_49 = arith.constant dense<0.000000e+00> : vector<16xf32>
    %77 = vector.multi_reduction <add>, %76, %cst_49 [1] : vector<16x144xf32> to vector<16xf32>
    %78 = vector.shape_cast %77 : vector<16xf32> to vector<16x1xf32>
    %cst_50 = arith.constant 7.812500e-03 : f32
    %79 = vector.broadcast %cst_50 : f32 to vector<16x1xf32>
    %80 = arith.mulf %78, %79 : vector<16x1xf32>
    %81 = arith.mulf %76, %71 : vector<16x144xf32>
    %cst_51 = arith.constant dense<0.000000e+00> : vector<16xf32>
    %82 = vector.multi_reduction <add>, %81, %cst_51 [1] : vector<16x144xf32> to vector<16xf32>
    %83 = vector.shape_cast %82 : vector<16xf32> to vector<16x1xf32>
    %cst_52 = arith.constant 7.812500e-03 : f32
    %84 = vector.broadcast %cst_52 : f32 to vector<16x1xf32>
    %85 = arith.mulf %83, %84 : vector<16x1xf32>
    %86 = arith.mulf %80, %80 : vector<16x1xf32>
    %87 = arith.subf %85, %86 : vector<16x1xf32>
    %cst_53 = arith.constant 0.000000e+00 : f32
    %88 = vector.broadcast %cst_53 : f32 to vector<16x1xf32>
    %89 = arith.maximumf %87, %88 : vector<16x1xf32>
    %90 = vector.broadcast %80 : vector<16x1xf32> to vector<16x144xf32>
    %91 = arith.subf %71, %90 : vector<16x144xf32>
    %cst_54 = arith.constant 9.99999974E-6 : f32
    %92 = vector.broadcast %cst_54 : f32 to vector<16x1xf32>
    %93 = arith.addf %89, %92 : vector<16x1xf32>
    %94 = math.rsqrt %93 : vector<16x1xf32>
    %95 = vector.broadcast %94 : vector<16x1xf32> to vector<16x144xf32>
    %96 = arith.mulf %91, %95 : vector<16x144xf32>
    %97 = vector.broadcast %72 : vector<16x1xf32> to vector<16x144xf32>
    %98 = arith.mulf %96, %97 : vector<16x144xf32>
    %99 = vector.broadcast %73 : vector<16x1xf32> to vector<16x144xf32>
    %100 = arith.addf %98, %99 : vector<16x144xf32>
    %cst_55 = arith.constant 0.000000e+00 : f32
    %101 = vector.broadcast %cst_55 : f32 to vector<16x144xf32>
    %102 = arith.cmpf oge, %100, %101 : vector<16x144xf32>
    %103 = vector.broadcast %74 : vector<16x1xf32> to vector<16x144xf32>
    %104 = arith.mulf %103, %100 : vector<16x144xf32>
    %105 = arith.select %102, %100, %104 : vector<16x144xi1>, vector<16x144xf32>
    %106 = vector.broadcast %3 : vector<1x144xf32> to vector<16x144xf32>
    %107 = arith.mulf %105, %106 : vector<16x144xf32>
    %108 = arith.truncf %107 : vector<16x144xf32> to vector<16x144xbf16>
    %c16 = arith.constant 16 : index
    %c145_56 = arith.constant 145 : index
    %109 = vector.load %arg6[%c16, %c145_56] : memref<80x306xbf16, #tpu.memory_space<vmem>>, vector<16x144xbf16>
    tpu.vector_store %arg6[%c16, %c145_56], %108 {strides = array<i32>} : memref<80x306xbf16, #tpu.memory_space<vmem>>, vector<16x144xbf16>,
    %cst_57 = arith.constant 0.000000e+00 : f32
    %110 = vector.broadcast %cst_57 : f32 to vector<16x144xf32>
    %c0_58 = arith.constant 0 : index
    %c99 = arith.constant 99 : index
    %111 = vector.load %arg2[%c0_58, %c99] : memref<16x1011xbf16, #tpu.memory_space<vmem>>, vector<16x32xbf16>
    %c0_59 = arith.constant 0 : index
    %c108 = arith.constant 108 : index
    %112 = vector.load %arg6[%c0_59, %c108] : memref<80x306xbf16, #tpu.memory_space<vmem>>, vector<32x144xbf16>
    %cst_60 = arith.constant dense<0.000000e+00> : vector<16x144xf32>
    %113 = tpu.matmul %111, %112, %cst_60 {dimension_numbers = #tpu.dot_dimension_numbers<[1], [0], [0], [1], [0, 0, 1, 1], [], []>} : vector<16x32xbf16>, vector<32x144xbf16>, vector<16x144xf32> -> vector<16x144xf32>
    %114 = arith.addf %110, %113 : vector<16x144xf32>
    %c0_61 = arith.constant 0 : index
    %c131 = arith.constant 131 : index
    %115 = vector.load %arg2[%c0_61, %c131] : memref<16x1011xbf16, #tpu.memory_space<vmem>>, vector<16x32xbf16>
    %c0_62 = arith.constant 0 : index
    %c109 = arith.constant 109 : index
    %116 = vector.load %arg6[%c0_62, %c109] : memref<80x306xbf16, #tpu.memory_space<vmem>>, vector<32x144xbf16>
    %cst_63 = arith.constant dense<0.000000e+00> : vector<16x144xf32>
    %117 = tpu.matmul %115, %116, %cst_63 {dimension_numbers = #tpu.dot_dimension_numbers<[1], [0], [0], [1], [0, 0, 1, 1], [], []>} : vector<16x32xbf16>, vector<32x144xbf16>, vector<16x144xf32> -> vector<16x144xf32>
    %118 = arith.addf %114, %117 : vector<16x144xf32>
    %c0_64 = arith.constant 0 : index
    %c163 = arith.constant 163 : index
    %119 = vector.load %arg2[%c0_64, %c163] : memref<16x1011xbf16, #tpu.memory_space<vmem>>, vector<16x32xbf16>
    %c0_65 = arith.constant 0 : index
    %c110 = arith.constant 110 : index
    %120 = vector.load %arg6[%c0_65, %c110] : memref<80x306xbf16, #tpu.memory_space<vmem>>, vector<32x144xbf16>
    %cst_66 = arith.constant dense<0.000000e+00> : vector<16x144xf32>
    %121 = tpu.matmul %119, %120, %cst_66 {dimension_numbers = #tpu.dot_dimension_numbers<[1], [0], [0], [1], [0, 0, 1, 1], [], []>} : vector<16x32xbf16>, vector<32x144xbf16>, vector<16x144xf32> -> vector<16x144xf32>
    %122 = arith.addf %118, %121 : vector<16x144xf32>
    %c0_67 = arith.constant 0 : index
    %c195 = arith.constant 195 : index
    %123 = vector.load %arg2[%c0_67, %c195] : memref<16x1011xbf16, #tpu.memory_space<vmem>>, vector<16x32xbf16>
    %c0_68 = arith.constant 0 : index
    %c144_69 = arith.constant 144 : index
    %124 = vector.load %arg6[%c0_68, %c144_69] : memref<80x306xbf16, #tpu.memory_space<vmem>>, vector<32x144xbf16>
    %cst_70 = arith.constant dense<0.000000e+00> : vector<16x144xf32>
    %125 = tpu.matmul %123, %124, %cst_70 {dimension_numbers = #tpu.dot_dimension_numbers<[1], [0], [0], [1], [0, 0, 1, 1], [], []>} : vector<16x32xbf16>, vector<32x144xbf16>, vector<16x144xf32> -> vector<16x144xf32>
    %126 = arith.addf %122, %125 : vector<16x144xf32>
    %c0_71 = arith.constant 0 : index
    %c227 = arith.constant 227 : index
    %127 = vector.load %arg2[%c0_71, %c227] : memref<16x1011xbf16, #tpu.memory_space<vmem>>, vector<16x32xbf16>
    %c0_72 = arith.constant 0 : index
    %c145_73 = arith.constant 145 : index
    %128 = vector.load %arg6[%c0_72, %c145_73] : memref<80x306xbf16, #tpu.memory_space<vmem>>, vector<32x144xbf16>
    %cst_74 = arith.constant dense<0.000000e+00> : vector<16x144xf32>
    %129 = tpu.matmul %127, %128, %cst_74 {dimension_numbers = #tpu.dot_dimension_numbers<[1], [0], [0], [1], [0, 0, 1, 1], [], []>} : vector<16x32xbf16>, vector<32x144xbf16>, vector<16x144xf32> -> vector<16x144xf32>
    %130 = arith.addf %126, %129 : vector<16x144xf32>
    %c0_75 = arith.constant 0 : index
    %c259 = arith.constant 259 : index
    %131 = vector.load %arg2[%c0_75, %c259] : memref<16x1011xbf16, #tpu.memory_space<vmem>>, vector<16x32xbf16>
    %c0_76 = arith.constant 0 : index
    %c146_77 = arith.constant 146 : index
    %132 = vector.load %arg6[%c0_76, %c146_77] : memref<80x306xbf16, #tpu.memory_space<vmem>>, vector<32x144xbf16>
    %cst_78 = arith.constant dense<0.000000e+00> : vector<16x144xf32>
    %133 = tpu.matmul %131, %132, %cst_78 {dimension_numbers = #tpu.dot_dimension_numbers<[1], [0], [0], [1], [0, 0, 1, 1], [], []>} : vector<16x32xbf16>, vector<32x144xbf16>, vector<16x144xf32> -> vector<16x144xf32>
    %134 = arith.addf %130, %133 : vector<16x144xf32>
    %c0_79 = arith.constant 0 : index
    %c6 = arith.constant 6 : index
    %135 = vector.load %arg4[%c0_79, %c6] : memref<16x18xf32, #tpu.memory_space<vmem>>, vector<16x1xf32>
    %c0_80 = arith.constant 0 : index
    %c7 = arith.constant 7 : index
    %136 = vector.load %arg4[%c0_80, %c7] : memref<16x18xf32, #tpu.memory_space<vmem>>, vector<16x1xf32>
    %c0_81 = arith.constant 0 : index
    %c8 = arith.constant 8 : index
    %137 = vector.load %arg4[%c0_81, %c8] : memref<16x18xf32, #tpu.memory_space<vmem>>, vector<16x1xf32>
    %138 = vector.broadcast %3 : vector<1x144xf32> to vector<16x144xf32>
    %139 = arith.mulf %134, %138 : vector<16x144xf32>
    %cst_82 = arith.constant dense<0.000000e+00> : vector<16xf32>
    %140 = vector.multi_reduction <add>, %139, %cst_82 [1] : vector<16x144xf32> to vector<16xf32>
    %141 = vector.shape_cast %140 : vector<16xf32> to vector<16x1xf32>
    %cst_83 = arith.constant 7.812500e-03 : f32
    %142 = vector.broadcast %cst_83 : f32 to vector<16x1xf32>
    %143 = arith.mulf %141, %142 : vector<16x1xf32>
    %144 = arith.mulf %139, %134 : vector<16x144xf32>
    %cst_84 = arith.constant dense<0.000000e+00> : vector<16xf32>
    %145 = vector.multi_reduction <add>, %144, %cst_84 [1] : vector<16x144xf32> to vector<16xf32>
    %146 = vector.shape_cast %145 : vector<16xf32> to vector<16x1xf32>
    %cst_85 = arith.constant 7.812500e-03 : f32
    %147 = vector.broadcast %cst_85 : f32 to vector<16x1xf32>
    %148 = arith.mulf %146, %147 : vector<16x1xf32>
    %149 = arith.mulf %143, %143 : vector<16x1xf32>
    %150 = arith.subf %148, %149 : vector<16x1xf32>
    %cst_86 = arith.constant 0.000000e+00 : f32
    %151 = vector.broadcast %cst_86 : f32 to vector<16x1xf32>
    %152 = arith.maximumf %150, %151 : vector<16x1xf32>
    %153 = vector.broadcast %143 : vector<16x1xf32> to vector<16x144xf32>
    %154 = arith.subf %134, %153 : vector<16x144xf32>
    %cst_87 = arith.constant 9.99999974E-6 : f32
    %155 = vector.broadcast %cst_87 : f32 to vector<16x1xf32>
    %156 = arith.addf %152, %155 : vector<16x1xf32>
    %157 = math.rsqrt %156 : vector<16x1xf32>
    %158 = vector.broadcast %157 : vector<16x1xf32> to vector<16x144xf32>
    %159 = arith.mulf %154, %158 : vector<16x144xf32>
    %160 = vector.broadcast %135 : vector<16x1xf32> to vector<16x144xf32>
    %161 = arith.mulf %159, %160 : vector<16x144xf32>
    %162 = vector.broadcast %136 : vector<16x1xf32> to vector<16x144xf32>
    %163 = arith.addf %161, %162 : vector<16x144xf32>
    %cst_88 = arith.constant 0.000000e+00 : f32
    %164 = vector.broadcast %cst_88 : f32 to vector<16x144xf32>
    %165 = arith.cmpf oge, %163, %164 : vector<16x144xf32>
    %166 = vector.broadcast %137 : vector<16x1xf32> to vector<16x144xf32>
    %167 = arith.mulf %166, %163 : vector<16x144xf32>
    %168 = arith.select %165, %163, %167 : vector<16x144xi1>, vector<16x144xf32>
    %169 = vector.broadcast %3 : vector<1x144xf32> to vector<16x144xf32>
    %170 = arith.mulf %168, %169 : vector<16x144xf32>
    %171 = arith.truncf %170 : vector<16x144xf32> to vector<16x144xbf16>
    %c32 = arith.constant 32 : index
    %c145_89 = arith.constant 145 : index
    %172 = vector.load %arg6[%c32, %c145_89] : memref<80x306xbf16, #tpu.memory_space<vmem>>, vector<16x144xbf16>
    tpu.vector_store %arg6[%c32, %c145_89], %171 {strides = array<i32>} : memref<80x306xbf16, #tpu.memory_space<vmem>>, vector<16x144xbf16>,
    %cst_90 = arith.constant 0.000000e+00 : f32
    %173 = vector.broadcast %cst_90 : f32 to vector<16x144xf32>
    %c0_91 = arith.constant 0 : index
    %c291 = arith.constant 291 : index
    %174 = vector.load %arg2[%c0_91, %c291] : memref<16x1011xbf16, #tpu.memory_space<vmem>>, vector<16x48xbf16>
    %c0_92 = arith.constant 0 : index
    %c72 = arith.constant 72 : index
    %175 = vector.load %arg6[%c0_92, %c72] : memref<80x306xbf16, #tpu.memory_space<vmem>>, vector<48x144xbf16>
    %cst_93 = arith.constant dense<0.000000e+00> : vector<16x144xf32>
    %176 = tpu.matmul %174, %175, %cst_93 {dimension_numbers = #tpu.dot_dimension_numbers<[1], [0], [0], [1], [0, 0, 1, 1], [], []>} : vector<16x48xbf16>, vector<48x144xbf16>, vector<16x144xf32> -> vector<16x144xf32>
    %177 = arith.addf %173, %176 : vector<16x144xf32>
    %c0_94 = arith.constant 0 : index
    %c339 = arith.constant 339 : index
    %178 = vector.load %arg2[%c0_94, %c339] : memref<16x1011xbf16, #tpu.memory_space<vmem>>, vector<16x48xbf16>
    %c0_95 = arith.constant 0 : index
    %c73 = arith.constant 73 : index
    %179 = vector.load %arg6[%c0_95, %c73] : memref<80x306xbf16, #tpu.memory_space<vmem>>, vector<48x144xbf16>
    %cst_96 = arith.constant dense<0.000000e+00> : vector<16x144xf32>
    %180 = tpu.matmul %178, %179, %cst_96 {dimension_numbers = #tpu.dot_dimension_numbers<[1], [0], [0], [1], [0, 0, 1, 1], [], []>} : vector<16x48xbf16>, vector<48x144xbf16>, vector<16x144xf32> -> vector<16x144xf32>
    %181 = arith.addf %177, %180 : vector<16x144xf32>
    %c0_97 = arith.constant 0 : index
    %c387 = arith.constant 387 : index
    %182 = vector.load %arg2[%c0_97, %c387] : memref<16x1011xbf16, #tpu.memory_space<vmem>>, vector<16x48xbf16>
    %c0_98 = arith.constant 0 : index
    %c74 = arith.constant 74 : index
    %183 = vector.load %arg6[%c0_98, %c74] : memref<80x306xbf16, #tpu.memory_space<vmem>>, vector<48x144xbf16>
    %cst_99 = arith.constant dense<0.000000e+00> : vector<16x144xf32>
    %184 = tpu.matmul %182, %183, %cst_99 {dimension_numbers = #tpu.dot_dimension_numbers<[1], [0], [0], [1], [0, 0, 1, 1], [], []>} : vector<16x48xbf16>, vector<48x144xbf16>, vector<16x144xf32> -> vector<16x144xf32>
    %185 = arith.addf %181, %184 : vector<16x144xf32>
    %c0_100 = arith.constant 0 : index
    %c435 = arith.constant 435 : index
    %186 = vector.load %arg2[%c0_100, %c435] : memref<16x1011xbf16, #tpu.memory_space<vmem>>, vector<16x48xbf16>
    %c0_101 = arith.constant 0 : index
    %c144_102 = arith.constant 144 : index
    %187 = vector.load %arg6[%c0_101, %c144_102] : memref<80x306xbf16, #tpu.memory_space<vmem>>, vector<48x144xbf16>
    %cst_103 = arith.constant dense<0.000000e+00> : vector<16x144xf32>
    %188 = tpu.matmul %186, %187, %cst_103 {dimension_numbers = #tpu.dot_dimension_numbers<[1], [0], [0], [1], [0, 0, 1, 1], [], []>} : vector<16x48xbf16>, vector<48x144xbf16>, vector<16x144xf32> -> vector<16x144xf32>
    %189 = arith.addf %185, %188 : vector<16x144xf32>
    %c0_104 = arith.constant 0 : index
    %c483 = arith.constant 483 : index
    %190 = vector.load %arg2[%c0_104, %c483] : memref<16x1011xbf16, #tpu.memory_space<vmem>>, vector<16x48xbf16>
    %c0_105 = arith.constant 0 : index
    %c145_106 = arith.constant 145 : index
    %191 = vector.load %arg6[%c0_105, %c145_106] : memref<80x306xbf16, #tpu.memory_space<vmem>>, vector<48x144xbf16>
    %cst_107 = arith.constant dense<0.000000e+00> : vector<16x144xf32>
    %192 = tpu.matmul %190, %191, %cst_107 {dimension_numbers = #tpu.dot_dimension_numbers<[1], [0], [0], [1], [0, 0, 1, 1], [], []>} : vector<16x48xbf16>, vector<48x144xbf16>, vector<16x144xf32> -> vector<16x144xf32>
    %193 = arith.addf %189, %192 : vector<16x144xf32>
    %c0_108 = arith.constant 0 : index
    %c531 = arith.constant 531 : index
    %194 = vector.load %arg2[%c0_108, %c531] : memref<16x1011xbf16, #tpu.memory_space<vmem>>, vector<16x48xbf16>
    %c0_109 = arith.constant 0 : index
    %c146_110 = arith.constant 146 : index
    %195 = vector.load %arg6[%c0_109, %c146_110] : memref<80x306xbf16, #tpu.memory_space<vmem>>, vector<48x144xbf16>
    %cst_111 = arith.constant dense<0.000000e+00> : vector<16x144xf32>
    %196 = tpu.matmul %194, %195, %cst_111 {dimension_numbers = #tpu.dot_dimension_numbers<[1], [0], [0], [1], [0, 0, 1, 1], [], []>} : vector<16x48xbf16>, vector<48x144xbf16>, vector<16x144xf32> -> vector<16x144xf32>
    %197 = arith.addf %193, %196 : vector<16x144xf32>
    %c0_112 = arith.constant 0 : index
    %c9 = arith.constant 9 : index
    %198 = vector.load %arg4[%c0_112, %c9] : memref<16x18xf32, #tpu.memory_space<vmem>>, vector<16x1xf32>
    %c0_113 = arith.constant 0 : index
    %c10 = arith.constant 10 : index
    %199 = vector.load %arg4[%c0_113, %c10] : memref<16x18xf32, #tpu.memory_space<vmem>>, vector<16x1xf32>
    %c0_114 = arith.constant 0 : index
    %c11 = arith.constant 11 : index
    %200 = vector.load %arg4[%c0_114, %c11] : memref<16x18xf32, #tpu.memory_space<vmem>>, vector<16x1xf32>
    %201 = vector.broadcast %3 : vector<1x144xf32> to vector<16x144xf32>
    %202 = arith.mulf %197, %201 : vector<16x144xf32>
    %cst_115 = arith.constant dense<0.000000e+00> : vector<16xf32>
    %203 = vector.multi_reduction <add>, %202, %cst_115 [1] : vector<16x144xf32> to vector<16xf32>
    %204 = vector.shape_cast %203 : vector<16xf32> to vector<16x1xf32>
    %cst_116 = arith.constant 7.812500e-03 : f32
    %205 = vector.broadcast %cst_116 : f32 to vector<16x1xf32>
    %206 = arith.mulf %204, %205 : vector<16x1xf32>
    %207 = arith.mulf %202, %197 : vector<16x144xf32>
    %cst_117 = arith.constant dense<0.000000e+00> : vector<16xf32>
    %208 = vector.multi_reduction <add>, %207, %cst_117 [1] : vector<16x144xf32> to vector<16xf32>
    %209 = vector.shape_cast %208 : vector<16xf32> to vector<16x1xf32>
    %cst_118 = arith.constant 7.812500e-03 : f32
    %210 = vector.broadcast %cst_118 : f32 to vector<16x1xf32>
    %211 = arith.mulf %209, %210 : vector<16x1xf32>
    %212 = arith.mulf %206, %206 : vector<16x1xf32>
    %213 = arith.subf %211, %212 : vector<16x1xf32>
    %cst_119 = arith.constant 0.000000e+00 : f32
    %214 = vector.broadcast %cst_119 : f32 to vector<16x1xf32>
    %215 = arith.maximumf %213, %214 : vector<16x1xf32>
    %216 = vector.broadcast %206 : vector<16x1xf32> to vector<16x144xf32>
    %217 = arith.subf %197, %216 : vector<16x144xf32>
    %cst_120 = arith.constant 9.99999974E-6 : f32
    %218 = vector.broadcast %cst_120 : f32 to vector<16x1xf32>
    %219 = arith.addf %215, %218 : vector<16x1xf32>
    %220 = math.rsqrt %219 : vector<16x1xf32>
    %221 = vector.broadcast %220 : vector<16x1xf32> to vector<16x144xf32>
    %222 = arith.mulf %217, %221 : vector<16x144xf32>
    %223 = vector.broadcast %198 : vector<16x1xf32> to vector<16x144xf32>
    %224 = arith.mulf %222, %223 : vector<16x144xf32>
    %225 = vector.broadcast %199 : vector<16x1xf32> to vector<16x144xf32>
    %226 = arith.addf %224, %225 : vector<16x144xf32>
    %cst_121 = arith.constant 0.000000e+00 : f32
    %227 = vector.broadcast %cst_121 : f32 to vector<16x144xf32>
    %228 = arith.cmpf oge, %226, %227 : vector<16x144xf32>
    %229 = vector.broadcast %200 : vector<16x1xf32> to vector<16x144xf32>
    %230 = arith.mulf %229, %226 : vector<16x144xf32>
    %231 = arith.select %228, %226, %230 : vector<16x144xi1>, vector<16x144xf32>
    %232 = vector.broadcast %3 : vector<1x144xf32> to vector<16x144xf32>
    %233 = arith.mulf %231, %232 : vector<16x144xf32>
    %234 = arith.truncf %233 : vector<16x144xf32> to vector<16x144xbf16>
    %c48 = arith.constant 48 : index
    %c145_122 = arith.constant 145 : index
    %235 = vector.load %arg6[%c48, %c145_122] : memref<80x306xbf16, #tpu.memory_space<vmem>>, vector<16x144xbf16>
    tpu.vector_store %arg6[%c48, %c145_122], %234 {strides = array<i32>} : memref<80x306xbf16, #tpu.memory_space<vmem>>, vector<16x144xbf16>,
    %cst_123 = arith.constant 0.000000e+00 : f32
    %236 = vector.broadcast %cst_123 : f32 to vector<16x144xf32>
    %c0_124 = arith.constant 0 : index
    %c579 = arith.constant 579 : index
    %237 = vector.load %arg2[%c0_124, %c579] : memref<16x1011xbf16, #tpu.memory_space<vmem>>, vector<16x64xbf16>
    %c0_125 = arith.constant 0 : index
    %c0_126 = arith.constant 0 : index
    %238 = vector.load %arg6[%c0_125, %c0_126] : memref<80x306xbf16, #tpu.memory_space<vmem>>, vector<64x144xbf16>
    %cst_127 = arith.constant dense<0.000000e+00> : vector<16x144xf32>
    %239 = tpu.matmul %237, %238, %cst_127 {dimension_numbers = #tpu.dot_dimension_numbers<[1], [0], [0], [1], [0, 0, 1, 1], [], []>} : vector<16x64xbf16>, vector<64x144xbf16>, vector<16x144xf32> -> vector<16x144xf32>
    %240 = arith.addf %236, %239 : vector<16x144xf32>
    %c0_128 = arith.constant 0 : index
    %c643 = arith.constant 643 : index
    %241 = vector.load %arg2[%c0_128, %c643] : memref<16x1011xbf16, #tpu.memory_space<vmem>>, vector<16x64xbf16>
    %c0_129 = arith.constant 0 : index
    %c1_130 = arith.constant 1 : index
    %242 = vector.load %arg6[%c0_129, %c1_130] : memref<80x306xbf16, #tpu.memory_space<vmem>>, vector<64x144xbf16>
    %cst_131 = arith.constant dense<0.000000e+00> : vector<16x144xf32>
    %243 = tpu.matmul %241, %242, %cst_131 {dimension_numbers = #tpu.dot_dimension_numbers<[1], [0], [0], [1], [0, 0, 1, 1], [], []>} : vector<16x64xbf16>, vector<64x144xbf16>, vector<16x144xf32> -> vector<16x144xf32>
    %244 = arith.addf %240, %243 : vector<16x144xf32>
    %c0_132 = arith.constant 0 : index
    %c707 = arith.constant 707 : index
    %245 = vector.load %arg2[%c0_132, %c707] : memref<16x1011xbf16, #tpu.memory_space<vmem>>, vector<16x64xbf16>
    %c0_133 = arith.constant 0 : index
    %c2_134 = arith.constant 2 : index
    %246 = vector.load %arg6[%c0_133, %c2_134] : memref<80x306xbf16, #tpu.memory_space<vmem>>, vector<64x144xbf16>
    %cst_135 = arith.constant dense<0.000000e+00> : vector<16x144xf32>
    %247 = tpu.matmul %245, %246, %cst_135 {dimension_numbers = #tpu.dot_dimension_numbers<[1], [0], [0], [1], [0, 0, 1, 1], [], []>} : vector<16x64xbf16>, vector<64x144xbf16>, vector<16x144xf32> -> vector<16x144xf32>
    %248 = arith.addf %244, %247 : vector<16x144xf32>
    %c0_136 = arith.constant 0 : index
    %c771 = arith.constant 771 : index
    %249 = vector.load %arg2[%c0_136, %c771] : memref<16x1011xbf16, #tpu.memory_space<vmem>>, vector<16x64xbf16>
    %c0_137 = arith.constant 0 : index
    %c144_138 = arith.constant 144 : index
    %250 = vector.load %arg6[%c0_137, %c144_138] : memref<80x306xbf16, #tpu.memory_space<vmem>>, vector<64x144xbf16>
    %cst_139 = arith.constant dense<0.000000e+00> : vector<16x144xf32>
    %251 = tpu.matmul %249, %250, %cst_139 {dimension_numbers = #tpu.dot_dimension_numbers<[1], [0], [0], [1], [0, 0, 1, 1], [], []>} : vector<16x64xbf16>, vector<64x144xbf16>, vector<16x144xf32> -> vector<16x144xf32>
    %252 = arith.addf %248, %251 : vector<16x144xf32>
    %c0_140 = arith.constant 0 : index
    %c835 = arith.constant 835 : index
    %253 = vector.load %arg2[%c0_140, %c835] : memref<16x1011xbf16, #tpu.memory_space<vmem>>, vector<16x64xbf16>
    %c0_141 = arith.constant 0 : index
    %c145_142 = arith.constant 145 : index
    %254 = vector.load %arg6[%c0_141, %c145_142] : memref<80x306xbf16, #tpu.memory_space<vmem>>, vector<64x144xbf16>
    %cst_143 = arith.constant dense<0.000000e+00> : vector<16x144xf32>
    %255 = tpu.matmul %253, %254, %cst_143 {dimension_numbers = #tpu.dot_dimension_numbers<[1], [0], [0], [1], [0, 0, 1, 1], [], []>} : vector<16x64xbf16>, vector<64x144xbf16>, vector<16x144xf32> -> vector<16x144xf32>
    %256 = arith.addf %252, %255 : vector<16x144xf32>
    %c0_144 = arith.constant 0 : index
    %c899 = arith.constant 899 : index
    %257 = vector.load %arg2[%c0_144, %c899] : memref<16x1011xbf16, #tpu.memory_space<vmem>>, vector<16x64xbf16>
    %c0_145 = arith.constant 0 : index
    %c146_146 = arith.constant 146 : index
    %258 = vector.load %arg6[%c0_145, %c146_146] : memref<80x306xbf16, #tpu.memory_space<vmem>>, vector<64x144xbf16>
    %cst_147 = arith.constant dense<0.000000e+00> : vector<16x144xf32>
    %259 = tpu.matmul %257, %258, %cst_147 {dimension_numbers = #tpu.dot_dimension_numbers<[1], [0], [0], [1], [0, 0, 1, 1], [], []>} : vector<16x64xbf16>, vector<64x144xbf16>, vector<16x144xf32> -> vector<16x144xf32>
    %260 = arith.addf %256, %259 : vector<16x144xf32>
    %c0_148 = arith.constant 0 : index
    %c12 = arith.constant 12 : index
    %261 = vector.load %arg4[%c0_148, %c12] : memref<16x18xf32, #tpu.memory_space<vmem>>, vector<16x1xf32>
    %c0_149 = arith.constant 0 : index
    %c13 = arith.constant 13 : index
    %262 = vector.load %arg4[%c0_149, %c13] : memref<16x18xf32, #tpu.memory_space<vmem>>, vector<16x1xf32>
    %c0_150 = arith.constant 0 : index
    %c14 = arith.constant 14 : index
    %263 = vector.load %arg4[%c0_150, %c14] : memref<16x18xf32, #tpu.memory_space<vmem>>, vector<16x1xf32>
    %264 = vector.broadcast %3 : vector<1x144xf32> to vector<16x144xf32>
    %265 = arith.mulf %260, %264 : vector<16x144xf32>
    %cst_151 = arith.constant dense<0.000000e+00> : vector<16xf32>
    %266 = vector.multi_reduction <add>, %265, %cst_151 [1] : vector<16x144xf32> to vector<16xf32>
    %267 = vector.shape_cast %266 : vector<16xf32> to vector<16x1xf32>
    %cst_152 = arith.constant 7.812500e-03 : f32
    %268 = vector.broadcast %cst_152 : f32 to vector<16x1xf32>
    %269 = arith.mulf %267, %268 : vector<16x1xf32>
    %270 = arith.mulf %265, %260 : vector<16x144xf32>
    %cst_153 = arith.constant dense<0.000000e+00> : vector<16xf32>
    %271 = vector.multi_reduction <add>, %270, %cst_153 [1] : vector<16x144xf32> to vector<16xf32>
    %272 = vector.shape_cast %271 : vector<16xf32> to vector<16x1xf32>
    %cst_154 = arith.constant 7.812500e-03 : f32
    %273 = vector.broadcast %cst_154 : f32 to vector<16x1xf32>
    %274 = arith.mulf %272, %273 : vector<16x1xf32>
    %275 = arith.mulf %269, %269 : vector<16x1xf32>
    %276 = arith.subf %274, %275 : vector<16x1xf32>
    %cst_155 = arith.constant 0.000000e+00 : f32
    %277 = vector.broadcast %cst_155 : f32 to vector<16x1xf32>
    %278 = arith.maximumf %276, %277 : vector<16x1xf32>
    %279 = vector.broadcast %269 : vector<16x1xf32> to vector<16x144xf32>
    %280 = arith.subf %260, %279 : vector<16x144xf32>
    %cst_156 = arith.constant 9.99999974E-6 : f32
    %281 = vector.broadcast %cst_156 : f32 to vector<16x1xf32>
    %282 = arith.addf %278, %281 : vector<16x1xf32>
    %283 = math.rsqrt %282 : vector<16x1xf32>
    %284 = vector.broadcast %283 : vector<16x1xf32> to vector<16x144xf32>
    %285 = arith.mulf %280, %284 : vector<16x144xf32>
    %286 = vector.broadcast %261 : vector<16x1xf32> to vector<16x144xf32>
    %287 = arith.mulf %285, %286 : vector<16x144xf32>
    %288 = vector.broadcast %262 : vector<16x1xf32> to vector<16x144xf32>
    %289 = arith.addf %287, %288 : vector<16x144xf32>
    %cst_157 = arith.constant 0.000000e+00 : f32
    %290 = vector.broadcast %cst_157 : f32 to vector<16x144xf32>
    %291 = arith.cmpf oge, %289, %290 : vector<16x144xf32>
    %292 = vector.broadcast %263 : vector<16x1xf32> to vector<16x144xf32>
    %293 = arith.mulf %292, %289 : vector<16x144xf32>
    %294 = arith.select %291, %289, %293 : vector<16x144xi1>, vector<16x144xf32>
    %295 = vector.broadcast %3 : vector<1x144xf32> to vector<16x144xf32>
    %296 = arith.mulf %294, %295 : vector<16x144xf32>
    %297 = arith.truncf %296 : vector<16x144xf32> to vector<16x144xbf16>
    %c64 = arith.constant 64 : index
    %c145_158 = arith.constant 145 : index
    %298 = vector.load %arg6[%c64, %c145_158] : memref<80x306xbf16, #tpu.memory_space<vmem>>, vector<16x144xbf16>
    tpu.vector_store %arg6[%c64, %c145_158], %297 {strides = array<i32>} : memref<80x306xbf16, #tpu.memory_space<vmem>>, vector<16x144xbf16>,
    %cst_159 = arith.constant 0.000000e+00 : f32
    %299 = vector.broadcast %cst_159 : f32 to vector<16x144xf32>
    %c0_160 = arith.constant 0 : index
    %c963 = arith.constant 963 : index
    %300 = vector.load %arg2[%c0_160, %c963] : memref<16x1011xbf16, #tpu.memory_space<vmem>>, vector<16x16xbf16>
    %c64_161 = arith.constant 64 : index
    %c144_162 = arith.constant 144 : index
    %301 = vector.load %arg6[%c64_161, %c144_162] : memref<80x306xbf16, #tpu.memory_space<vmem>>, vector<16x144xbf16>
    %cst_163 = arith.constant dense<0.000000e+00> : vector<16x144xf32>
    %302 = tpu.matmul %300, %301, %cst_163 {dimension_numbers = #tpu.dot_dimension_numbers<[1], [0], [0], [1], [0, 0, 1, 1], [], []>} : vector<16x16xbf16>, vector<16x144xbf16>, vector<16x144xf32> -> vector<16x144xf32>
    %303 = arith.addf %299, %302 : vector<16x144xf32>
    %c0_164 = arith.constant 0 : index
    %c979 = arith.constant 979 : index
    %304 = vector.load %arg2[%c0_164, %c979] : memref<16x1011xbf16, #tpu.memory_space<vmem>>, vector<16x16xbf16>
    %c64_165 = arith.constant 64 : index
    %c145_166 = arith.constant 145 : index
    %305 = vector.load %arg6[%c64_165, %c145_166] : memref<80x306xbf16, #tpu.memory_space<vmem>>, vector<16x144xbf16>
    %cst_167 = arith.constant dense<0.000000e+00> : vector<16x144xf32>
    %306 = tpu.matmul %304, %305, %cst_167 {dimension_numbers = #tpu.dot_dimension_numbers<[1], [0], [0], [1], [0, 0, 1, 1], [], []>} : vector<16x16xbf16>, vector<16x144xbf16>, vector<16x144xf32> -> vector<16x144xf32>
    %307 = arith.addf %303, %306 : vector<16x144xf32>
    %c0_168 = arith.constant 0 : index
    %c995 = arith.constant 995 : index
    %308 = vector.load %arg2[%c0_168, %c995] : memref<16x1011xbf16, #tpu.memory_space<vmem>>, vector<16x16xbf16>
    %c64_169 = arith.constant 64 : index
    %c146_170 = arith.constant 146 : index
    %309 = vector.load %arg6[%c64_169, %c146_170] : memref<80x306xbf16, #tpu.memory_space<vmem>>, vector<16x144xbf16>
    %cst_171 = arith.constant dense<0.000000e+00> : vector<16x144xf32>
    %310 = tpu.matmul %308, %309, %cst_171 {dimension_numbers = #tpu.dot_dimension_numbers<[1], [0], [0], [1], [0, 0, 1, 1], [], []>} : vector<16x16xbf16>, vector<16x144xbf16>, vector<16x144xf32> -> vector<16x144xf32>
    %311 = arith.addf %307, %310 : vector<16x144xf32>
    %c0_172 = arith.constant 0 : index
    %c15 = arith.constant 15 : index
    %312 = vector.load %arg4[%c0_172, %c15] : memref<16x18xf32, #tpu.memory_space<vmem>>, vector<16x1xf32>
    %c0_173 = arith.constant 0 : index
    %c16_174 = arith.constant 16 : index
    %313 = vector.load %arg4[%c0_173, %c16_174] : memref<16x18xf32, #tpu.memory_space<vmem>>, vector<16x1xf32>
    %c0_175 = arith.constant 0 : index
    %c17 = arith.constant 17 : index
    %314 = vector.load %arg4[%c0_175, %c17] : memref<16x18xf32, #tpu.memory_space<vmem>>, vector<16x1xf32>
    %315 = vector.broadcast %4 : vector<1x144xf32> to vector<16x144xf32>
    %316 = arith.mulf %311, %315 : vector<16x144xf32>
    %cst_176 = arith.constant dense<0.000000e+00> : vector<16xf32>
    %317 = vector.multi_reduction <add>, %316, %cst_176 [1] : vector<16x144xf32> to vector<16xf32>
    %318 = vector.shape_cast %317 : vector<16xf32> to vector<16x1xf32>
    %cst_177 = arith.constant 1.562500e-02 : f32
    %319 = vector.broadcast %cst_177 : f32 to vector<16x1xf32>
    %320 = arith.mulf %318, %319 : vector<16x1xf32>
    %321 = arith.mulf %316, %311 : vector<16x144xf32>
    %cst_178 = arith.constant dense<0.000000e+00> : vector<16xf32>
    %322 = vector.multi_reduction <add>, %321, %cst_178 [1] : vector<16x144xf32> to vector<16xf32>
    %323 = vector.shape_cast %322 : vector<16xf32> to vector<16x1xf32>
    %cst_179 = arith.constant 1.562500e-02 : f32
    %324 = vector.broadcast %cst_179 : f32 to vector<16x1xf32>
    %325 = arith.mulf %323, %324 : vector<16x1xf32>
    %326 = arith.mulf %320, %320 : vector<16x1xf32>
    %327 = arith.subf %325, %326 : vector<16x1xf32>
    %cst_180 = arith.constant 0.000000e+00 : f32
    %328 = vector.broadcast %cst_180 : f32 to vector<16x1xf32>
    %329 = arith.maximumf %327, %328 : vector<16x1xf32>
    %330 = vector.broadcast %320 : vector<16x1xf32> to vector<16x144xf32>
    %331 = arith.subf %311, %330 : vector<16x144xf32>
    %cst_181 = arith.constant 9.99999974E-6 : f32
    %332 = vector.broadcast %cst_181 : f32 to vector<16x1xf32>
    %333 = arith.addf %329, %332 : vector<16x1xf32>
    %334 = math.rsqrt %333 : vector<16x1xf32>
    %335 = vector.broadcast %334 : vector<16x1xf32> to vector<16x144xf32>
    %336 = arith.mulf %331, %335 : vector<16x144xf32>
    %337 = vector.broadcast %312 : vector<16x1xf32> to vector<16x144xf32>
    %338 = arith.mulf %336, %337 : vector<16x144xf32>
    %339 = vector.broadcast %313 : vector<16x1xf32> to vector<16x144xf32>
    %340 = arith.addf %338, %339 : vector<16x144xf32>
    %cst_182 = arith.constant 0.000000e+00 : f32
    %341 = vector.broadcast %cst_182 : f32 to vector<16x144xf32>
    %342 = arith.cmpf oge, %340, %341 : vector<16x144xf32>
    %343 = vector.broadcast %314 : vector<16x1xf32> to vector<16x144xf32>
    %344 = arith.mulf %343, %340 : vector<16x144xf32>
    %345 = arith.select %342, %340, %344 : vector<16x144xi1>, vector<16x144xf32>
    %346 = arith.truncf %345 : vector<16x144xf32> to vector<16x144xbf16>
    %c0_183 = arith.constant 0 : index
    %c0_184 = arith.constant 0 : index
    %c0_185 = arith.constant 0 : index
    %347 = vector.load %arg5[%c0_183, %c0_184, %c0_185] : memref<1x16x144xbf16, #tpu.memory_space<vmem>>, vector<1x16x144xbf16>
    %348 = vector.shape_cast %347 : vector<1x16x144xbf16> to vector<16x144xbf16>
    %349 = vector.shape_cast %346 : vector<16x144xbf16> to vector<1x16x144xbf16>
    tpu.vector_store %arg5[%c0_183, %c0_184, %c0_185], %349 {strides = array<i32>} : memref<1x16x144xbf16, #tpu.memory_space<vmem>>, vector<1x16x144xbf16>,
    return
  }
  func.func @transform_0(%arg0: i32) -> (i32, i32, i32) {
    %c0_i32 = arith.constant 0 : i32
    %c0_i32_0 = arith.constant 0 : i32
    %c0_i32_1 = arith.constant 0 : i32
    return %arg0, %c0_i32, %c0_i32_0 : i32, i32, i32
  }
  func.func @transform_1(%arg0: i32) -> (i32, i32) {
    %c0_i32 = arith.constant 0 : i32
    %c0_i32_0 = arith.constant 0 : i32
    %c0_i32_1 = arith.constant 0 : i32
    return %c0_i32, %c0_i32_0 : i32, i32
  }
  func.func @transform_2(%arg0: i32) -> (i32, i32) {
    %c0_i32 = arith.constant 0 : i32
    %c0_i32_0 = arith.constant 0 : i32
    %c0_i32_1 = arith.constant 0 : i32
    return %c0_i32, %c0_i32_0 : i32, i32
  }
  func.func @transform_3(%arg0: i32) -> (i32, i32) {
    %c0_i32 = arith.constant 0 : i32
    %c0_i32_0 = arith.constant 0 : i32
    %c0_i32_1 = arith.constant 0 : i32
    return %c0_i32, %c0_i32_0 : i32, i32
  }
  func.func @transform_4(%arg0: i32) -> (i32, i32, i32) {
    %c0_i32 = arith.constant 0 : i32
    %c0_i32_0 = arith.constant 0 : i32
    %c0_i32_1 = arith.constant 0 : i32
    return %arg0, %c0_i32, %c0_i32_0 : i32, i32, i32
  }
}

</mosaic_0001>

<llo_original>
// kernel: dense_encoder_forward.1
$region0: #{dense_encoder_forward.1}
  #allocation0 [shape = 'u32[]', space=smem, size = 0x4, offset = 0x4, fixed_abs, tag = 'smem constant byte address 0x4 - core index']
  #allocation1 [shape = 'u32[144,128]{1,0:T(1,128)}', space=vmem, size = 0x12000, scoped, tag = 'internal scratch']
  #allocation2 [shape = 'bf16[80,306]{1,0:T(16,128)(2,1)}', space=vmem, size = 0xf000, scoped, tag = 'scratch operand']
  %s0 = inlined_call_operand.vmem [shape: bf16[2,3,144], index: 0, kind: input, shape index: {}]
  %s1 = inlined_call_operand.vmem [shape: bf16[16,1011], index: 1, kind: input, shape index: {}]
  %s2 = inlined_call_operand.vmem [shape: f32[3,144], index: 2, kind: input, shape index: {}]
  %s3 = inlined_call_operand.vmem [shape: f32[16,18], index: 3, kind: input, shape index: {}]
  %s4 = inlined_call_operand.vmem [shape: bf16[2,16,144], index: 4, kind: output, shape index: {}]
  %s5 = sld [smem:[#allocation0]]
  $region49: #{dense_encoder_forward.1} parent=0
    _
  %s7 = ssub.s32 1, %s5
  %s8 = scalar_select 0, %s7, %s5
  loop: start=0, step=1, limit=4
  $region2: #{dense_encoder_forward.1} parent=0 // loop_pre_header
    _
  $region3: #{dense_encoder_forward.1} parent=0 // loop_header
    %s10 = sphi 0, %s14
    %p11 = scmp.ge.s32.totalorder %s10, 4
    %s20 = sphi 0, %s22
    %s23 = sphi 0, %s20
    %s24 = sphi 0, %s23
    %s40 = sphi 0, %s24
    %s44 = sphi 0, %s44
    %s46 = sphi 0, %s44
    %s47 = sphi 0, %s46
    %s61 = sphi 0, %s47
    %s65 = sphi 0, %s65
    %s67 = sphi 0, %s65
    %s68 = sphi 0, %s67
    %s82 = sphi 0, %s68
    %s86 = sphi 0, %s86
    %s88 = sphi 0, %s86
    %s89 = sphi 0, %s88
    %s103 = sphi 0, %s89
    %s109 = sphi 0, %s111
    %s112 = sphi 0, %s109
    %s113 = sphi 0, %s112
    %s129 = sphi 0, %s113
  $region4: #{dense_encoder_forward.1} parent=0 // loop_header_branch
    %13 = sbr.rel (%p11) target = $region8
  $region5: #{dense_encoder_forward.1} parent=0 // loop_body
    %s15 = ssub.s32 %s10, 1
    %s16 = ssub.s32 %s10, 2
    %s17 = sadd.s32 %s10, 1
    %s18 = ssub.s32 %s10, %s17
    %p19 = scmp.eq.s32.totalorder %s18, 0
    %s21 = sadd.s32 %s20, 1
    %s22 = scalar_select %p19, %s20, %s21
    %p25 = pneg %p19
    %p26 = scmp.eq.s32.totalorder %s10, 1
    %p27 = por %p25, %p26
    %p28 = scmp.ne.s32.totalorder %s20, %s23
    %p29 = scmp.eq.s32.totalorder %s10, 0
    %p30 = por %p28, %p29
    %p31 = scmp.ne.s32.totalorder %s20, %s23
    %p32 = scmp.eq.s32.totalorder %s15, 1
    %p33 = por %p31, %p32
    %p34 = scmp.ne.s32.totalorder %s23, %s24
    %p35 = scmp.eq.s32.totalorder %s15, 0
    %p36 = por %p34, %p35
    %p37 = scmp.ne.s32.totalorder %s23, %s24
    %p38 = scmp.eq.s32.totalorder %s16, 1
    %p39 = por %p37, %p38
    %p41 = scmp.ne.s32.totalorder %s24, %s40
    %p42 = scmp.eq.s32.totalorder %s16, 0
    %p43 = por %p41, %p42
    %s45 = sadd.s32 %s44, 1
    %p48 = scmp.eq.s32.totalorder %s10, 1
    %p49 = scmp.ne.s32.totalorder %s44, %s46
    %p50 = scmp.eq.s32.totalorder %s10, 0
    %p51 = por %p49, %p50
    %p52 = scmp.ne.s32.totalorder %s44, %s46
    %p53 = scmp.eq.s32.totalorder %s15, 1
    %p54 = por %p52, %p53
    %p55 = scmp.ne.s32.totalorder %s46, %s47
    %p56 = scmp.eq.s32.totalorder %s15, 0
    %p57 = por %p55, %p56
    %p58 = scmp.ne.s32.totalorder %s46, %s47
    %p59 = scmp.eq.s32.totalorder %s16, 1
    %p60 = por %p58, %p59
    %p62 = scmp.ne.s32.totalorder %s47, %s61
    %p63 = scmp.eq.s32.totalorder %s16, 0
    %p64 = por %p62, %p63
    %s66 = sadd.s32 %s65, 1
    %p69 = scmp.eq.s32.totalorder %s10, 1
    %p70 = scmp.ne.s32.totalorder %s65, %s67
    %p71 = scmp.eq.s32.totalorder %s10, 0
    %p72 = por %p70, %p71
    %p73 = scmp.ne.s32.totalorder %s65, %s67
    %p74 = scmp.eq.s32.totalorder %s15, 1
    %p75 = por %p73, %p74
    %p76 = scmp.ne.s32.totalorder %s67, %s68
    %p77 = scmp.eq.s32.totalorder %s15, 0
    %p78 = por %p76, %p77
    %p79 = scmp.ne.s32.totalorder %s67, %s68
    %p80 = scmp.eq.s32.totalorder %s16, 1
    %p81 = por %p79, %p80
    %p83 = scmp.ne.s32.totalorder %s68, %s82
    %p84 = scmp.eq.s32.totalorder %s16, 0
    %p85 = por %p83, %p84
    %s87 = sadd.s32 %s86, 1
    %p90 = scmp.eq.s32.totalorder %s10, 1
    %p91 = scmp.ne.s32.totalorder %s86, %s88
    %p92 = scmp.eq.s32.totalorder %s10, 0
    %p93 = por %p91, %p92
    %p94 = scmp.ne.s32.totalorder %s86, %s88
    %p95 = scmp.eq.s32.totalorder %s15, 1
    %p96 = por %p94, %p95
    %p97 = scmp.ne.s32.totalorder %s88, %s89
    %p98 = scmp.eq.s32.totalorder %s15, 0
    %p99 = por %p97, %p98
    %p100 = scmp.ne.s32.totalorder %s88, %s89
    %p101 = scmp.eq.s32.totalorder %s16, 1
    %p102 = por %p100, %p101
    %p104 = scmp.ne.s32.totalorder %s89, %s103
    %p105 = scmp.eq.s32.totalorder %s16, 0
    %p106 = por %p104, %p105
    %s107 = ssub.s32 %s10, %s17
    %p108 = scmp.eq.s32.totalorder %s107, 0
    %s110 = sadd.s32 %s109, 1
    %s111 = scalar_select %p108, %s109, %s110
    %p114 = pneg %p108
    %p115 = scmp.eq.s32.totalorder %s10, 1
    %p116 = por %p114, %p115
    %p117 = scmp.ne.s32.totalorder %s109, %s112
    %p118 = scmp.eq.s32.totalorder %s10, 0
    %p119 = por %p117, %p118
    %p120 = scmp.ne.s32.totalorder %s109, %s112
    %p121 = scmp.eq.s32.totalorder %s15, 1
    %p122 = por %p120, %p121
    %p123 = scmp.ne.s32.totalorder %s112, %s113
    %p124 = scmp.eq.s32.totalorder %s15, 0
    %p125 = por %p123, %p124
    %p126 = scmp.ne.s32.totalorder %s112, %s113
    %p127 = scmp.eq.s32.totalorder %s16, 1
    %p128 = por %p126, %p127
    %p130 = scmp.ne.s32.totalorder %s113, %s129
    %p131 = scmp.eq.s32.totalorder %s16, 0
    %p132 = por %p130, %p131
    %p133 = scmp.le.s32.totalorder 1, %s10
    %p134 = scmp.lt.s32.totalorder %s10, 3
    %p135 = pnand %p133, %p134
    %p136 = pneg %p135
    // Predicated region
    $region9: #{dense_encoder_forward.1} parent=5 // pred_check
      _
    $region10: #{dense_encoder_forward.1} parent=5 // pred_check_branch
      %138 = sbr.rel (%p135) target = $region12
    $region11: #{dense_encoder_forward.1} parent=5 // pred_region
      %s139 = ssub.s32 %s10, 1
      // Predicated region
      $region13: #{dense_encoder_forward.1} parent=11 // pred_check
        %p140 = pneg %p57
      $region14: #{dense_encoder_forward.1} parent=11 // pred_check_branch
        %142 = sbr.rel (%p140) target = $region16
      $region15: #{dense_encoder_forward.1} parent=11 // pred_region
        _
      $region16: #{dense_encoder_forward.1} parent=11 // pred_fallthru
        _
      // Predicated region
      $region17: #{dense_encoder_forward.1} parent=11 // pred_check
        %p143 = pneg %p78
      $region18: #{dense_encoder_forward.1} parent=11 // pred_check_branch
        %145 = sbr.rel (%p143) target = $region20
      $region19: #{dense_encoder_forward.1} parent=11 // pred_region
        _
      $region20: #{dense_encoder_forward.1} parent=11 // pred_fallthru
        _
      // Predicated region
      $region21: #{dense_encoder_forward.1} parent=11 // pred_check
        %p146 = pneg %p99
      $region22: #{dense_encoder_forward.1} parent=11 // pred_check_branch
        %148 = sbr.rel (%p146) target = $region24
      $region23: #{dense_encoder_forward.1} parent=11 // pred_region
        _
      $region24: #{dense_encoder_forward.1} parent=11 // pred_fallthru
        _
    $region12: #{dense_encoder_forward.1} parent=5 // pred_fallthru
      _
    %p149 = scmp.lt.s32.totalorder %s10, 2
    // Predicated region
    $region25: #{dense_encoder_forward.1} parent=5 // pred_check
      %p150 = pneg %p149
    $region26: #{dense_encoder_forward.1} parent=5 // pred_check_branch
      %152 = sbr.rel (%p150) target = $region28
    $region27: #{dense_encoder_forward.1} parent=5 // pred_region
      // Predicated region
      $region29: #{dense_encoder_forward.1} parent=27 // pred_check
        %p153 = pneg %p30
      $region30: #{dense_encoder_forward.1} parent=27 // pred_check_branch
        %155 = sbr.rel (%p153) target = $region32
      $region31: #{dense_encoder_forward.1} parent=27 // pred_region
        %p156 = scmp.lt.s32.totalorder %s10, 1
        %s157 = scalar_select %p156, %s10, 1
        %s158 = smul.addr %s157, 2
        %s159 = smul.addr %s158, 2
        %s160 = scalar_lea.vmem %s0, %s159
      $region32: #{dense_encoder_forward.1} parent=27 // pred_fallthru
        _
    $region28: #{dense_encoder_forward.1} parent=5 // pred_fallthru
      _
    %p161 = scmp.le.s32.totalorder 1, %s10
    %p162 = scmp.lt.s32.totalorder %s10, 3
    %p163 = pnand %p161, %p162
    %p164 = pneg %p163
    // Predicated region
    $region33: #{dense_encoder_forward.1} parent=5 // pred_check
      _
    $region34: #{dense_encoder_forward.1} parent=5 // pred_check_branch
      %166 = sbr.rel (%p163) target = $region36
    $region35: #{dense_encoder_forward.1} parent=5 // pred_region
      %s167 = ssub.s32 %s10, 1
      %p168 = scmp.lt.s32.totalorder %s15, 1
      %s169 = scalar_select %p168, %s15, 1
      %s170 = smul.addr %s169, 2
      %s171 = smul.addr %s170, 2
      %s172 = scalar_lea.vmem %s0, %s171
      %p173 = pneg %p36
      %p174 = pneg %p33
      %p175 = pneg %p57
      %p176 = pneg %p54
      %p177 = pneg %p78
      %p178 = pneg %p75
      %p179 = pneg %p99
      %p180 = pneg %p96
      %p181 = pneg %p125
      %p182 = pneg %p122
      %p183 = scmp.lt.s32.totalorder %s15, 1
      %s184 = scalar_select %p183, %s15, 1
      %s185 = smul.addr %s184, 4
      %s186 = smul.addr %s185, 4
      %s187 = scalar_lea.vmem %s4, %s186
      %p188 = scmp.lt.s32.totalorder %s15, 1
      %s189 = scalar_select %p188, %s15, 1
      %s190 = smul.addr %s189, 2
      %s191 = smul.addr %s190, 2
      %s192 = scalar_lea.vmem %s0, %s191
      %p193 = scmp.lt.s32.totalorder %s15, 1
      %s194 = scalar_select %p193, %s15, 1
      %s195 = smul.addr %s194, 4
      %s196 = smul.addr %s195, 4
      %s197 = scalar_lea.vmem %s4, %s196
      %199 = vst [vmem:[#allocation2] sm:$0xff] 0
      %200 = vst [vmem:[#allocation2 + $0x8] sm:$0xff] 0
      %vm201 = vcmask 408576
      %202 = vst.msk [vmem:[#allocation2 + $0x10] sm:$0xff] %vm201, 0
      %203 = vst [vmem:[#allocation2 + $0x18] sm:$0xff] 0
      %204 = vst [vmem:[#allocation2 + $0x20] sm:$0xff] 0
      %205 = vst.msk [vmem:[#allocation2 + $0x28] sm:$0xff] %vm201, 0
      %206 = vst [vmem:[#allocation2 + $0x30] sm:$0xff] 0
      %207 = vst [vmem:[#allocation2 + $0x38] sm:$0xff] 0
      %208 = vst.msk [vmem:[#allocation2 + $0x40] sm:$0xff] %vm201, 0
      %209 = vst [vmem:[#allocation2 + $0x48] sm:$0xff] 0
      %210 = vst [vmem:[#allocation2 + $0x50] sm:$0xff] 0
      %211 = vst.msk [vmem:[#allocation2 + $0x58] sm:$0xff] %vm201, 0
      %212 = vst [vmem:[#allocation2 + $0x60] sm:$0xff] 0
      %213 = vst [vmem:[#allocation2 + $0x68] sm:$0xff] 0
      %214 = vst.msk [vmem:[#allocation2 + $0x70] sm:$0xff] %vm201, 0
      %v215 = vld [vmem:[%s2] ss:$4 sm:$0x3]
      %s216 = scalar_lea.vmem %s2, 1
      %v217 = vld [vmem:[%s216] ss:$4 sm:$0x3]
      %s218 = scalar_lea.vmem %s2, 2
      %v219 = vld [vmem:[%s218] ss:$4 sm:$0x3]
      %v220 = vld [vmem:[%s1] sm:$0xf]
      %v221 = vld [vmem:[%s1 + $0x20] sm:$0xf]
      %v222 = vld [vmem:[%s192] sm:$0xf]
      %v225 = vunpack.c.l.b16 %v220
      %v226 = vunpack.c.l.b16 %v221
      %v227 = vpack.c.b16 %v226, %v225
      %v230 = vunpack.c.l.s4 1983009808
      %v231 = vunpack.c.0.s8 %v230
      %v232 = vlaneseq
      %v233 = vshrl.u32 %v232, 7
      %v234 = vsub.s32 %v231, %v233
      %v235 = vrot.slane %v222, %v234
      %v236 = vcombine.high %v235, %v235
      %vm237 = vcmask 23552
      %v239 = vsel %vm237, %v227, 0
      %vm241 = vcmask 1040384
      %vm242 = vcmask 1041408
      %v243 = vsel %vm241, 4294967295, 65535
      %v244 = vsel %vm242, %v243, 0
      %v246 = vand.u32 %v235, %v244
      %v249 = vand.u32 %v236, %v244
      %251 = vmatprep.subr.bf16.mxu0 %v249
      %252 = vmatpush1.bf16.msra.mxu0 %v246
      %253 = vmatprep.subr.bf16.mxu0 0
      %254 = vmatpush1.bf16.msra.mxu0 0
      %255 = vmatprep.subr.bf16.mxu0 0
      %256 = vmatpush1.bf16.msra.mxu0 0
      %257 = vmatprep.subr.bf16.mxu0 0
      %258 = vmatpush1.bf16.msra.mxu0 0
      %259 = vmatprep.subr.bf16.mxu0 0
      %260 = vmatpush1.bf16.msra.mxu0 0
      %261 = vmatprep.subr.bf16.mxu0 0
      %262 = vmatpush1.bf16.msra.mxu0 0
      %263 = vmatprep.subr.bf16.mxu0 0
      %264 = vmatpush1.bf16.msra.mxu0 0
      %265 = vmatprep.subr.bf16.mxu0 0
      %266 = vmatpush1.bf16.msra.mxu0 0
      %267 = vmatprep.subr.bf16.mxu0 0
      %268 = vmatpush1.bf16.msra.mxu0 0
      %269 = vmatprep.subr.bf16.mxu0 0
      %270 = vmatpush1.bf16.msra.mxu0 0
      %271 = vmatprep.subr.bf16.mxu0 0
      %272 = vmatpush1.bf16.msra.mxu0 0
      %273 = vmatprep.subr.bf16.mxu0 0
      %274 = vmatpush1.bf16.msra.mxu0 0
      %275 = vmatprep.subr.bf16.mxu0 0
      %276 = vmatpush1.bf16.msra.mxu0 0
      %277 = vmatprep.subr.bf16.mxu0 0
      %278 = vmatpush1.bf16.msra.mxu0 0
      %279 = vmatprep.subr.bf16.mxu0 0
      %280 = vmatpush1.bf16.msra.mxu0 0
      %281 = vmatprep.subr.bf16.mxu0 0
      %282 = vmatpush1.bf16.msra.mxu0 0
      %283 = vmatprep.mubr.bf16.mxu0 0
      %284 = vmatmul.mubr.bf16.gmra.mrb[0].mxu0 %v239
      %v285 = vpop.f32.mrb[0].mxu0
      %v286 = vadd.f32 0.0, %v285
      %v287 = vpop.f32.mrb[0].mxu0
      %v288 = vadd.f32 0.0, %v287
      %v289 = vpop.f32.mrb[0].mxu0
      %v290 = vadd.f32 0.0, %v289
      %v291 = vpop.f32.mrb[0].mxu0
      %v292 = vadd.f32 0.0, %v291
      %293 = vdwg.mxu0
      %v294 = vld [vmem:[%s3] sm:$0xff]
      %v295 = vld [vmem:[%s3 + $0x8] sm:$0xff]
      %v297 = vlaneseq
      %v298 = vshrl.u32 %v297, 7
      %v299 = vsub.s32 0, %v298
      %v300 = vrot.slane %v215, %v299
      %v301 = vlaneseq
      %v302 = vshrl.u32 %v301, 7
      %v303 = vsub.s32 1, %v302
      %v304 = vrot.slane %v215, %v303
      %v307 = vmul.f32 %v286, %v300
      %v308 = vmul.f32 %v288, %v304
      %v309 = vmul.f32 %v290, %v300
      %v310 = vmul.f32 %v292, %v304
      %vm311 = vcmask 130048
      %v312 = vsel %vm311, %v308, 0.0
      %v313 = vadd.f32 %v307, %v312
      %314 = vadd.xlane.f32.xlu0 %v313
      %v315 = vpop.xlane.xlu0 %314
      %v316 = vsel %vm311, %v310, 0.0
      %v317 = vadd.f32 %v309, %v316
      %318 = vadd.xlane.f32.xlu0 %v317
      %v319 = vpop.xlane.xlu0 %318
      %v320 = vmul.f32 %v315, 0.0078125
      %v321 = vmul.f32 %v319, 0.0078125
      %v322 = vmul.f32 %v307, %v286
      %v323 = vmul.f32 %v308, %v288
      %v324 = vmul.f32 %v309, %v290
      %v325 = vmul.f32 %v310, %v292
      %v326 = vsel %vm311, %v323, 0.0
      %v327 = vadd.f32 %v322, %v326
      %328 = vadd.xlane.f32.xlu0 %v327
      %v329 = vpop.xlane.xlu0 %328
      %v330 = vsel %vm311, %v325, 0.0
      %v331 = vadd.f32 %v324, %v330
      %332 = vadd.xlane.f32.xlu0 %v331
      %v333 = vpop.xlane.xlu0 %332
      %v334 = vmul.f32 %v329, 0.0078125
      %v335 = vmul.f32 %v333, 0.0078125
      %v336 = vmul.f32 %v320, %v320
      %v337 = vmul.f32 %v321, %v321
      %v338 = vsub.f32 %v334, %v336
      %v339 = vsub.f32 %v335, %v337
      %v340 = vmax.f32 %v338, 0.0
      %v341 = vmax.f32 %v339, 0.0
      %v342 = vsub.f32 %v286, %v320
      %v343 = vsub.f32 %v288, %v320
      %v344 = vsub.f32 %v290, %v321
      %v345 = vsub.f32 %v292, %v321
      %v346 = vadd.f32 %v340, 1e-05
      %v347 = vadd.f32 %v341, 1e-05
      %v348 = vrsqrt.pop %v346
      %v349 = vrsqrt.pop %v347
      %v350 = vmul.f32 %v342, %v348
      %v351 = vmul.f32 %v343, %v348
      %v352 = vmul.f32 %v344, %v349
      %v353 = vmul.f32 %v345, %v349
      %355 = vset.pattern.permute.xlu0 0
      %356 = vperm.xlu0 %355, %v294
      %v357 = vpop.permute.xlu0 %356
      %360 = vset.pattern.permute.xlu0 0
      %361 = vperm.xlu0 %360, %v295
      %v362 = vpop.permute.xlu0 %361
      %v364 = vmul.f32 %v350, %v357
      %v365 = vmul.f32 %v351, %v357
      %v366 = vmul.f32 %v352, %v362
      %v367 = vmul.f32 %v353, %v362
      %368 = vset.pattern.permute.xlu0 1
      %369 = vperm.xlu0 %368, %v294
      %v370 = vpop.permute.xlu0 %369
      %372 = vset.pattern.permute.xlu0 1
      %373 = vperm.xlu0 %372, %v295
      %v374 = vpop.permute.xlu0 %373
      %v376 = vadd.f32 %v364, %v370
      %v377 = vadd.f32 %v365, %v370
      %v378 = vadd.f32 %v366, %v374
      %v379 = vadd.f32 %v367, %v374
      %vm380 = vcmp.ge.f32.partialorder %v376, 0.0
      %vm381 = vcmp.ge.f32.partialorder %v377, 0.0
      %vm382 = vcmp.ge.f32.partialorder %v378, 0.0
      %vm383 = vcmp.ge.f32.partialorder %v379, 0.0
      %384 = vset.pattern.permute.xlu0 2
      %385 = vperm.xlu0 %384, %v294
      %v386 = vpop.permute.xlu0 %385
      %388 = vset.pattern.permute.xlu0 2
      %389 = vperm.xlu0 %388, %v295
      %v390 = vpop.permute.xlu0 %389
      %v392 = vmul.f32 %v386, %v376
      %v393 = vmul.f32 %v386, %v377
      %v394 = vmul.f32 %v390, %v378
      %v395 = vmul.f32 %v390, %v379
      %v396 = vsel %vm380, %v376, %v392
      %v397 = vsel %vm381, %v377, %v393
      %v398 = vsel %vm382, %v378, %v394
      %v399 = vsel %vm383, %v379, %v395
      %v400 = vmul.f32 %v396, %v300
      %v401 = vmul.f32 %v397, %v304
      %v402 = vmul.f32 %v398, %v300
      %v403 = vmul.f32 %v399, %v304
      %v404 = vpack.c.bf16 %v402, %v400
      %v405 = vpack.c.bf16 %v403, %v401
      %408 = vrot.lane.b32.xlu0 %v404, 16
      %v409 = vpop.permute.xlu0 %408
      %410 = vrot.lane.b32.xlu0 %v405, 16
      %v411 = vpop.permute.xlu0 %410
      %vm412 = vcmask 130048
      %v413 = vsel %vm412, %v409, %v411
      %vm416 = vcmask 1047680
      %417 = vst.msk [vmem:[#allocation2 + $0x8] sm:$0xff] %vm416, %v409
      %vm418 = vcmask 261120
      %419 = vst.msk [vmem:[#allocation2 + $0x10] sm:$0xff] %vm418, %v413
      %v420 = vld [vmem:[%s1] sm:$0xf]
      %v421 = vld [vmem:[%s1 + $0x20] sm:$0xf]
      %v422 = vld [vmem:[#allocation2] sm:$0xff]
      %v423 = vld [vmem:[#allocation2 + $0x8] sm:$0xff]
      %v424 = vld [vmem:[#allocation2 + $0x10] sm:$0xff]
      %v427 = vunpack.c.l.b16 %v420
      %v428 = vunpack.c.l.b16 %v421
      %v429 = vpack.c.b16 %v428, %v427
      %430 = vrot.lane.b32.xlu0 %v429, 109
      %v431 = vpop.permute.xlu0 %430
      %435 = vrot.lane.b32.xlu0 %v422, 1
      %v436 = vpop.permute.xlu0 %435
      %437 = vrot.lane.b32.xlu0 %v423, 1
      %v438 = vpop.permute.xlu0 %437
      %439 = vrot.lane.b32.xlu0 %v424, 1
      %v440 = vpop.permute.xlu0 %439
      %vm441 = vcmask 7168
      %v442 = vsel %vm441, %v436, %v438
      %v443 = vsel %vm441, %v438, %v440
      %v447 = vsel %vm311, %v431, 0
      %449 = vmatprep.subr.bf16.mxu0 %v443
      %450 = vmatpush1.bf16.msra.mxu0 %v442
      %451 = vmatprep.subr.bf16.mxu0 0
      %452 = vmatpush1.bf16.msra.mxu0 0
      %453 = vmatprep.subr.bf16.mxu0 0
      %454 = vmatpush1.bf16.msra.mxu0 0
      %455 = vmatprep.subr.bf16.mxu0 0
      %456 = vmatpush1.bf16.msra.mxu0 0
      %457 = vmatprep.subr.bf16.mxu0 0
      %458 = vmatpush1.bf16.msra.mxu0 0
      %459 = vmatprep.subr.bf16.mxu0 0
      %460 = vmatpush1.bf16.msra.mxu0 0
      %461 = vmatprep.subr.bf16.mxu0 0
      %462 = vmatpush1.bf16.msra.mxu0 0
      %463 = vmatprep.subr.bf16.mxu0 0
      %464 = vmatpush1.bf16.msra.mxu0 0
      %465 = vmatprep.subr.bf16.mxu0 0
      %466 = vmatpush1.bf16.msra.mxu0 0
      %467 = vmatprep.subr.bf16.mxu0 0
      %468 = vmatpush1.bf16.msra.mxu0 0
      %469 = vmatprep.subr.bf16.mxu0 0
      %470 = vmatpush1.bf16.msra.mxu0 0
      %471 = vmatprep.subr.bf16.mxu0 0
      %472 = vmatpush1.bf16.msra.mxu0 0
      %473 = vmatprep.subr.bf16.mxu0 0
      %474 = vmatpush1.bf16.msra.mxu0 0
      %475 = vmatprep.subr.bf16.mxu0 0
      %476 = vmatpush1.bf16.msra.mxu0 0
      %477 = vmatprep.subr.bf16.mxu0 0
      %478 = vmatpush1.bf16.msra.mxu0 0
      %479 = vmatprep.subr.bf16.mxu0 0
      %480 = vmatpush1.bf16.msra.mxu0 0
      %481 = vmatprep.mubr.bf16.mxu0 0
      %482 = vmatmul.mubr.bf16.gmra.mrb[0].mxu0 %v447
      %v483 = vpop.f32.mrb[0].mxu0
      %v484 = vadd.f32 0.0, %v483
      %v485 = vpop.f32.mrb[0].mxu0
      %v486 = vadd.f32 0.0, %v485
      %v487 = vpop.f32.mrb[0].mxu0
      %v488 = vadd.f32 0.0, %v487
      %v489 = vpop.f32.mrb[0].mxu0
      %v490 = vadd.f32 0.0, %v489
      %491 = vdwg.mxu0
      %492 = vrot.lane.b32.xlu0 %v429, 125
      %v493 = vpop.permute.xlu0 %492
      %494 = vrot.lane.b32.xlu0 %v422, 2
      %v495 = vpop.permute.xlu0 %494
      %496 = vrot.lane.b32.xlu0 %v423, 2
      %v497 = vpop.permute.xlu0 %496
      %498 = vrot.lane.b32.xlu0 %v424, 2
      %v499 = vpop.permute.xlu0 %498
      %vm500 = vcmask 15360
      %v501 = vsel %vm500, %v495, %v497
      %v502 = vsel %vm500, %v497, %v499
      %v506 = vsel %vm311, %v493, 0
      %508 = vmatprep.subr.bf16.mxu0 %v502
      %509 = vmatpush1.bf16.msra.mxu0 %v501
      %510 = vmatprep.subr.bf16.mxu0 0
      %511 = vmatpush1.bf16.msra.mxu0 0
      %512 = vmatprep.subr.bf16.mxu0 0
      %513 = vmatpush1.bf16.msra.mxu0 0
      %514 = vmatprep.subr.bf16.mxu0 0
      %515 = vmatpush1.bf16.msra.mxu0 0
      %516 = vmatprep.subr.bf16.mxu0 0
      %517 = vmatpush1.bf16.msra.mxu0 0
      %518 = vmatprep.subr.bf16.mxu0 0
      %519 = vmatpush1.bf16.msra.mxu0 0
      %520 = vmatprep.subr.bf16.mxu0 0
      %521 = vmatpush1.bf16.msra.mxu0 0
      %522 = vmatprep.subr.bf16.mxu0 0
      %523 = vmatpush1.bf16.msra.mxu0 0
      %524 = vmatprep.subr.bf16.mxu0 0
      %525 = vmatpush1.bf16.msra.mxu0 0
      %526 = vmatprep.subr.bf16.mxu0 0
      %527 = vmatpush1.bf16.msra.mxu0 0
      %528 = vmatprep.subr.bf16.mxu0 0
      %529 = vmatpush1.bf16.msra.mxu0 0
      %530 = vmatprep.subr.bf16.mxu0 0
      %531 = vmatpush1.bf16.msra.mxu0 0
      %532 = vmatprep.subr.bf16.mxu0 0
      %533 = vmatpush1.bf16.msra.mxu0 0
      %534 = vmatprep.subr.bf16.mxu0 0
      %535 = vmatpush1.bf16.msra.mxu0 0
      %536 = vmatprep.subr.bf16.mxu0 0
      %537 = vmatpush1.bf16.msra.mxu0 0
      %538 = vmatprep.subr.bf16.mxu0 0
      %539 = vmatpush1.bf16.msra.mxu0 0
      %540 = vmatprep.mubr.bf16.mxu0 0
      %541 = vmatmul.mubr.bf16.gmra.mrb[0].mxu0 %v506
      %v542 = vpop.f32.mrb[0].mxu0
      %v543 = vadd.f32 %v484, %v542
      %v544 = vpop.f32.mrb[0].mxu0
      %v545 = vadd.f32 %v486, %v544
      %v546 = vpop.f32.mrb[0].mxu0
      %v547 = vadd.f32 %v488, %v546
      %v548 = vpop.f32.mrb[0].mxu0
      %v549 = vadd.f32 %v490, %v548
      %550 = vdwg.mxu0
      %551 = vrot.lane.b32.xlu0 %v429, 93
      %v552 = vpop.permute.xlu0 %551
      %v554 = vsel %vm311, %v552, 0
      %556 = vmatprep.subr.bf16.mxu0 %v424
      %557 = vmatpush1.bf16.msra.mxu0 %v423
      %558 = vmatprep.subr.bf16.mxu0 0
      %559 = vmatpush1.bf16.msra.mxu0 0
      %560 = vmatprep.subr.bf16.mxu0 0
      %561 = vmatpush1.bf16.msra.mxu0 0
      %562 = vmatprep.subr.bf16.mxu0 0
      %563 = vmatpush1.bf16.msra.mxu0 0
      %564 = vmatprep.subr.bf16.mxu0 0
      %565 = vmatpush1.bf16.msra.mxu0 0
      %566 = vmatprep.subr.bf16.mxu0 0
      %567 = vmatpush1.bf16.msra.mxu0 0
      %568 = vmatprep.subr.bf16.mxu0 0
      %569 = vmatpush1.bf16.msra.mxu0 0
      %570 = vmatprep.subr.bf16.mxu0 0
      %571 = vmatpush1.bf16.msra.mxu0 0
      %572 = vmatprep.subr.bf16.mxu0 0
      %573 = vmatpush1.bf16.msra.mxu0 0
      %574 = vmatprep.subr.bf16.mxu0 0
      %575 = vmatpush1.bf16.msra.mxu0 0
      %576 = vmatprep.subr.bf16.mxu0 0
      %577 = vmatpush1.bf16.msra.mxu0 0
      %578 = vmatprep.subr.bf16.mxu0 0
      %579 = vmatpush1.bf16.msra.mxu0 0
      %580 = vmatprep.subr.bf16.mxu0 0
      %581 = vmatpush1.bf16.msra.mxu0 0
      %582 = vmatprep.subr.bf16.mxu0 0
      %583 = vmatpush1.bf16.msra.mxu0 0
      %584 = vmatprep.subr.bf16.mxu0 0
      %585 = vmatpush1.bf16.msra.mxu0 0
      %586 = vmatprep.subr.bf16.mxu0 0
      %587 = vmatpush1.bf16.msra.mxu0 0
      %588 = vmatprep.mubr.bf16.mxu0 0
      %589 = vmatmul.mubr.bf16.gmra.mrb[0].mxu0 %v554
      %v590 = vpop.f32.mrb[0].mxu0
      %v591 = vadd.f32 0.0, %v590
      %v592 = vpop.f32.mrb[0].mxu0
      %v593 = vadd.f32 0.0, %v592
      %v594 = vpop.f32.mrb[0].mxu0
      %v595 = vadd.f32 0.0, %v594
      %v596 = vpop.f32.mrb[0].mxu0
      %v597 = vadd.f32 0.0, %v596
      %598 = vdwg.mxu0
      %v599 = vadd.f32 %v543, %v591
      %v600 = vadd.f32 %v545, %v593
      %v601 = vadd.f32 %v547, %v595
      %v602 = vadd.f32 %v549, %v597
      %603 = vrot.lane.b32.xlu0 %v429, 77
      %v604 = vpop.permute.xlu0 %603
      %605 = vrot.lane.b32.xlu0 %v423, 112
      %v606 = vpop.permute.xlu0 %605
      %607 = vrot.lane.b32.xlu0 %v424, 112
      %v608 = vpop.permute.xlu0 %607
      %vm609 = vcmask 916480
      %v610 = vsel %vm609, %v606, %v608
      %v614 = vsel %vm311, %v604, 0
      %616 = vmatprep.subr.bf16.mxu0 %v608
      %617 = vmatpush1.bf16.msra.mxu0 %v610
      %618 = vmatprep.subr.bf16.mxu0 0
      %619 = vmatpush1.bf16.msra.mxu0 0
      %620 = vmatprep.subr.bf16.mxu0 0
      %621 = vmatpush1.bf16.msra.mxu0 0
      %622 = vmatprep.subr.bf16.mxu0 0
      %623 = vmatpush1.bf16.msra.mxu0 0
      %624 = vmatprep.subr.bf16.mxu0 0
      %625 = vmatpush1.bf16.msra.mxu0 0
      %626 = vmatprep.subr.bf16.mxu0 0
      %627 = vmatpush1.bf16.msra.mxu0 0
      %628 = vmatprep.subr.bf16.mxu0 0
      %629 = vmatpush1.bf16.msra.mxu0 0
      %630 = vmatprep.subr.bf16.mxu0 0
      %631 = vmatpush1.bf16.msra.mxu0 0
      %632 = vmatprep.subr.bf16.mxu0 0
      %633 = vmatpush1.bf16.msra.mxu0 0
      %634 = vmatprep.subr.bf16.mxu0 0
      %635 = vmatpush1.bf16.msra.mxu0 0
      %636 = vmatprep.subr.bf16.mxu0 0
      %637 = vmatpush1.bf16.msra.mxu0 0
      %638 = vmatprep.subr.bf16.mxu0 0
      %639 = vmatpush1.bf16.msra.mxu0 0
      %640 = vmatprep.subr.bf16.mxu0 0
      %641 = vmatpush1.bf16.msra.mxu0 0
      %642 = vmatprep.subr.bf16.mxu0 0
      %643 = vmatpush1.bf16.msra.mxu0 0
      %644 = vmatprep.subr.bf16.mxu0 0
      %645 = vmatpush1.bf16.msra.mxu0 0
      %646 = vmatprep.subr.bf16.mxu0 0
      %647 = vmatpush1.bf16.msra.mxu0 0
      %648 = vmatprep.mubr.bf16.mxu0 0
      %649 = vmatmul.mubr.bf16.gmra.mrb[0].mxu0 %v614
      %v650 = vpop.f32.mrb[0].mxu0
      %v651 = vadd.f32 0.0, %v650
      %v652 = vpop.f32.mrb[0].mxu0
      %v653 = vadd.f32 0.0, %v652
      %v654 = vpop.f32.mrb[0].mxu0
      %v655 = vadd.f32 0.0, %v654
      %v656 = vpop.f32.mrb[0].mxu0
      %v657 = vadd.f32 0.0, %v656
      %658 = vdwg.mxu0
      %v659 = vadd.f32 %v599, %v651
      %v660 = vadd.f32 %v600, %v653
      %v661 = vadd.f32 %v601, %v655
      %v662 = vadd.f32 %v602, %v657
      %663 = vrot.lane.b32.xlu0 %v429, 61
      %v664 = vpop.permute.xlu0 %663
      %665 = vrot.lane.b32.xlu0 %v423, 111
      %v666 = vpop.permute.xlu0 %665
      %667 = vrot.lane.b32.xlu0 %v424, 111
      %v668 = vpop.permute.xlu0 %667
      %vm669 = vcmask 908288
      %v670 = vsel %vm669, %v666, %v668
      %v674 = vsel %vm311, %v664, 0
      %676 = vmatprep.subr.bf16.mxu0 %v668
      %677 = vmatpush1.bf16.msra.mxu0 %v670
      %678 = vmatprep.subr.bf16.mxu0 0
      %679 = vmatpush1.bf16.msra.mxu0 0
      %680 = vmatprep.subr.bf16.mxu0 0
      %681 = vmatpush1.bf16.msra.mxu0 0
      %682 = vmatprep.subr.bf16.mxu0 0
      %683 = vmatpush1.bf16.msra.mxu0 0
      %684 = vmatprep.subr.bf16.mxu0 0
      %685 = vmatpush1.bf16.msra.mxu0 0
      %686 = vmatprep.subr.bf16.mxu0 0
      %687 = vmatpush1.bf16.msra.mxu0 0
      %688 = vmatprep.subr.bf16.mxu0 0
      %689 = vmatpush1.bf16.msra.mxu0 0
      %690 = vmatprep.subr.bf16.mxu0 0
      %691 = vmatpush1.bf16.msra.mxu0 0
      %692 = vmatprep.subr.bf16.mxu0 0
      %693 = vmatpush1.bf16.msra.mxu0 0
      %694 = vmatprep.subr.bf16.mxu0 0
      %695 = vmatpush1.bf16.msra.mxu0 0
      %696 = vmatprep.subr.bf16.mxu0 0
      %697 = vmatpush1.bf16.msra.mxu0 0
      %698 = vmatprep.subr.bf16.mxu0 0
      %699 = vmatpush1.bf16.msra.mxu0 0
      %700 = vmatprep.subr.bf16.mxu0 0
      %701 = vmatpush1.bf16.msra.mxu0 0
      %702 = vmatprep.subr.bf16.mxu0 0
      %703 = vmatpush1.bf16.msra.mxu0 0
      %704 = vmatprep.subr.bf16.mxu0 0
      %705 = vmatpush1.bf16.msra.mxu0 0
      %706 = vmatprep.subr.bf16.mxu0 0
      %707 = vmatpush1.bf16.msra.mxu0 0
      %708 = vmatprep.mubr.bf16.mxu0 0
      %709 = vmatmul.mubr.bf16.gmra.mrb[0].mxu0 %v674
      %v710 = vpop.f32.mrb[0].mxu0
      %v711 = vadd.f32 0.0, %v710
      %v712 = vpop.f32.mrb[0].mxu0
      %v713 = vadd.f32 0.0, %v712
      %v714 = vpop.f32.mrb[0].mxu0
      %v715 = vadd.f32 0.0, %v714
      %v716 = vpop.f32.mrb[0].mxu0
      %v717 = vadd.f32 0.0, %v716
      %718 = vdwg.mxu0
      %v719 = vadd.f32 %v659, %v711
      %v720 = vadd.f32 %v660, %v713
      %v721 = vadd.f32 %v661, %v715
      %v722 = vadd.f32 %v662, %v717
      %723 = vrot.lane.b32.xlu0 %v429, 45
      %v724 = vpop.permute.xlu0 %723
      %725 = vrot.lane.b32.xlu0 %v423, 110
      %v726 = vpop.permute.xlu0 %725
      %727 = vrot.lane.b32.xlu0 %v424, 110
      %v728 = vpop.permute.xlu0 %727
      %vm729 = vcmask 900096
      %v730 = vsel %vm729, %v726, %v728
      %v734 = vsel %vm311, %v724, 0
      %736 = vmatprep.subr.bf16.mxu0 %v728
      %737 = vmatpush1.bf16.msra.mxu0 %v730
      %738 = vmatprep.subr.bf16.mxu0 0
      %739 = vmatpush1.bf16.msra.mxu0 0
      %740 = vmatprep.subr.bf16.mxu0 0
      %741 = vmatpush1.bf16.msra.mxu0 0
      %742 = vmatprep.subr.bf16.mxu0 0
      %743 = vmatpush1.bf16.msra.mxu0 0
      %744 = vmatprep.subr.bf16.mxu0 0
      %745 = vmatpush1.bf16.msra.mxu0 0
      %746 = vmatprep.subr.bf16.mxu0 0
      %747 = vmatpush1.bf16.msra.mxu0 0
      %748 = vmatprep.subr.bf16.mxu0 0
      %749 = vmatpush1.bf16.msra.mxu0 0
      %750 = vmatprep.subr.bf16.mxu0 0
      %751 = vmatpush1.bf16.msra.mxu0 0
      %752 = vmatprep.subr.bf16.mxu0 0
      %753 = vmatpush1.bf16.msra.mxu0 0
      %754 = vmatprep.subr.bf16.mxu0 0
      %755 = vmatpush1.bf16.msra.mxu0 0
      %756 = vmatprep.subr.bf16.mxu0 0
      %757 = vmatpush1.bf16.msra.mxu0 0
      %758 = vmatprep.subr.bf16.mxu0 0
      %759 = vmatpush1.bf16.msra.mxu0 0
      %760 = vmatprep.subr.bf16.mxu0 0
      %761 = vmatpush1.bf16.msra.mxu0 0
      %762 = vmatprep.subr.bf16.mxu0 0
      %763 = vmatpush1.bf16.msra.mxu0 0
      %764 = vmatprep.subr.bf16.mxu0 0
      %765 = vmatpush1.bf16.msra.mxu0 0
      %766 = vmatprep.subr.bf16.mxu0 0
      %767 = vmatpush1.bf16.msra.mxu0 0
      %768 = vmatprep.mubr.bf16.mxu0 0
      %769 = vmatmul.mubr.bf16.gmra.mrb[0].mxu0 %v734
      %v770 = vpop.f32.mrb[0].mxu0
      %v771 = vadd.f32 0.0, %v770
      %v772 = vpop.f32.mrb[0].mxu0
      %v773 = vadd.f32 0.0, %v772
      %v774 = vpop.f32.mrb[0].mxu0
      %v775 = vadd.f32 0.0, %v774
      %v776 = vpop.f32.mrb[0].mxu0
      %v777 = vadd.f32 0.0, %v776
      %778 = vdwg.mxu0
      %v779 = vadd.f32 %v719, %v771
      %v780 = vadd.f32 %v720, %v773
      %v781 = vadd.f32 %v721, %v775
      %v782 = vadd.f32 %v722, %v777
      %v783 = vld [vmem:[%s3] sm:$0xff]
      %v784 = vld [vmem:[%s3 + $0x8] sm:$0xff]
      %v786 = vlaneseq
      %v787 = vshrl.u32 %v786, 7
      %v788 = vsub.s32 0, %v787
      %v789 = vrot.slane %v217, %v788
      %v790 = vlaneseq
      %v791 = vshrl.u32 %v790, 7
      %v792 = vsub.s32 1, %v791
      %v793 = vrot.slane %v217, %v792
      %v796 = vmul.f32 %v779, %v789
      %v797 = vmul.f32 %v780, %v793
      %v798 = vmul.f32 %v781, %v789
      %v799 = vmul.f32 %v782, %v793
      %v800 = vsel %vm311, %v797, 0.0
      %v801 = vadd.f32 %v796, %v800
      %802 = vadd.xlane.f32.xlu0 %v801
      %v803 = vpop.xlane.xlu0 %802
      %v804 = vsel %vm311, %v799, 0.0
      %v805 = vadd.f32 %v798, %v804
      %806 = vadd.xlane.f32.xlu0 %v805
      %v807 = vpop.xlane.xlu0 %806
      %v808 = vmul.f32 %v803, 0.0078125
      %v809 = vmul.f32 %v807, 0.0078125
      %v810 = vmul.f32 %v796, %v779
      %v811 = vmul.f32 %v797, %v780
      %v812 = vmul.f32 %v798, %v781
      %v813 = vmul.f32 %v799, %v782
      %v814 = vsel %vm311, %v811, 0.0
      %v815 = vadd.f32 %v810, %v814
      %816 = vadd.xlane.f32.xlu0 %v815
      %v817 = vpop.xlane.xlu0 %816
      %v818 = vsel %vm311, %v813, 0.0
      %v819 = vadd.f32 %v812, %v818
      %820 = vadd.xlane.f32.xlu0 %v819
      %v821 = vpop.xlane.xlu0 %820
      %v822 = vmul.f32 %v817, 0.0078125
      %v823 = vmul.f32 %v821, 0.0078125
      %v824 = vmul.f32 %v808, %v808
      %v825 = vmul.f32 %v809, %v809
      %v826 = vsub.f32 %v822, %v824
      %v827 = vsub.f32 %v823, %v825
      %v828 = vmax.f32 %v826, 0.0
      %v829 = vmax.f32 %v827, 0.0
      %v830 = vsub.f32 %v779, %v808
      %v831 = vsub.f32 %v780, %v808
      %v832 = vsub.f32 %v781, %v809
      %v833 = vsub.f32 %v782, %v809
      %v834 = vadd.f32 %v828, 1e-05
      %v835 = vadd.f32 %v829, 1e-05
      %v836 = vrsqrt.pop %v834
      %v837 = vrsqrt.pop %v835
      %v838 = vmul.f32 %v830, %v836
      %v839 = vmul.f32 %v831, %v836
      %v840 = vmul.f32 %v832, %v837
      %v841 = vmul.f32 %v833, %v837
      %843 = vset.pattern.permute.xlu0 3
      %844 = vperm.xlu0 %843, %v783
      %v845 = vpop.permute.xlu0 %844
      %848 = vset.pattern.permute.xlu0 3
      %849 = vperm.xlu0 %848, %v784
      %v850 = vpop.permute.xlu0 %849
      %v852 = vmul.f32 %v838, %v845
      %v853 = vmul.f32 %v839, %v845
      %v854 = vmul.f32 %v840, %v850
      %v855 = vmul.f32 %v841, %v850
      %856 = vset.pattern.permute.xlu0 4
      %857 = vperm.xlu0 %856, %v783
      %v858 = vpop.permute.xlu0 %857
      %860 = vset.pattern.permute.xlu0 4
      %861 = vperm.xlu0 %860, %v784
      %v862 = vpop.permute.xlu0 %861
      %v864 = vadd.f32 %v852, %v858
      %v865 = vadd.f32 %v853, %v858
      %v866 = vadd.f32 %v854, %v862
      %v867 = vadd.f32 %v855, %v862
      %vm868 = vcmp.ge.f32.partialorder %v864, 0.0
      %vm869 = vcmp.ge.f32.partialorder %v865, 0.0
      %vm870 = vcmp.ge.f32.partialorder %v866, 0.0
      %vm871 = vcmp.ge.f32.partialorder %v867, 0.0
      %872 = vset.pattern.permute.xlu0 5
      %873 = vperm.xlu0 %872, %v783
      %v874 = vpop.permute.xlu0 %873
      %876 = vset.pattern.permute.xlu0 5
      %877 = vperm.xlu0 %876, %v784
      %v878 = vpop.permute.xlu0 %877
      %v880 = vmul.f32 %v874, %v864
      %v881 = vmul.f32 %v874, %v865
      %v882 = vmul.f32 %v878, %v866
      %v883 = vmul.f32 %v878, %v867
      %v884 = vsel %vm868, %v864, %v880
      %v885 = vsel %vm869, %v865, %v881
      %v886 = vsel %vm870, %v866, %v882
      %v887 = vsel %vm871, %v867, %v883
      %v888 = vmul.f32 %v884, %v789
      %v889 = vmul.f32 %v885, %v793
      %v890 = vmul.f32 %v886, %v789
      %v891 = vmul.f32 %v887, %v793
      %v892 = vpack.c.bf16 %v890, %v888
      %v893 = vpack.c.bf16 %v891, %v889
      %896 = vrot.lane.b32.xlu0 %v892, 17
      %v897 = vpop.permute.xlu0 %896
      %898 = vrot.lane.b32.xlu0 %v893, 17
      %v899 = vpop.permute.xlu0 %898
      %vm900 = vcmask 138240
      %v901 = vsel %vm900, %v897, %v899
      %vm904 = vcmask 1047688
      %905 = vst.msk [vmem:[#allocation2 + $0x20] sm:$0xff] %vm904, %v897
      %vm906 = vcmask 269312
      %907 = vst.msk [vmem:[#allocation2 + $0x28] sm:$0xff] %vm906, %v901
      %v908 = vld [vmem:[%s1] sm:$0xff]
      %v909 = vld [vmem:[%s1 + $0x20] sm:$0xff]
      %v910 = vld [vmem:[#allocation2] sm:$0xff]
      %v911 = vld [vmem:[#allocation2 + $0x8] sm:$0xff]
      %v912 = vld [vmem:[#allocation2 + $0x18] sm:$0xff]
      %v913 = vld [vmem:[#allocation2 + $0x20] sm:$0xff]
      %v914 = vld [vmem:[%s1 + $0x4] sm:$0xf]
      %v915 = vld [vmem:[%s1 + $0x24] sm:$0xf]
      %v918 = vunpack.c.l.b16 %v914
      %v919 = vunpack.c.l.b16 %v915
      %v920 = vpack.c.b16 %v919, %v918
      %921 = vrot.lane.b32.xlu0 %v920, 125
      %v922 = vpop.permute.xlu0 %921
      %927 = vrot.lane.b32.xlu0 %v910, 19
      %v928 = vpop.permute.xlu0 %927
      %929 = vrot.lane.b32.xlu0 %v911, 19
      %v930 = vpop.permute.xlu0 %929
      %931 = vrot.lane.b32.xlu0 %v912, 19
      %v932 = vpop.permute.xlu0 %931
      %933 = vrot.lane.b32.xlu0 %v913, 19
      %v934 = vpop.permute.xlu0 %933
      %vm935 = vcmask 154624
      %v936 = vsel %vm935, %v928, %v930
      %v937 = vsel %vm935, %v932, %v934
      %v943 = vsel %vm418, %v922, 0
      %945 = vmatprep.subr.bf16.mxu0 %v930
      %946 = vmatpush1.bf16.msra.mxu0 %v936
      %947 = vmatprep.subr.bf16.mxu0 %v934
      %948 = vmatpush1.bf16.msra.mxu0 %v937
      %949 = vmatprep.subr.bf16.mxu0 0
      %950 = vmatpush1.bf16.msra.mxu0 0
      %951 = vmatprep.subr.bf16.mxu0 0
      %952 = vmatpush1.bf16.msra.mxu0 0
      %953 = vmatprep.subr.bf16.mxu0 0
      %954 = vmatpush1.bf16.msra.mxu0 0
      %955 = vmatprep.subr.bf16.mxu0 0
      %956 = vmatpush1.bf16.msra.mxu0 0
      %957 = vmatprep.subr.bf16.mxu0 0
      %958 = vmatpush1.bf16.msra.mxu0 0
      %959 = vmatprep.subr.bf16.mxu0 0
      %960 = vmatpush1.bf16.msra.mxu0 0
      %961 = vmatprep.subr.bf16.mxu0 0
      %962 = vmatpush1.bf16.msra.mxu0 0
      %963 = vmatprep.subr.bf16.mxu0 0
      %964 = vmatpush1.bf16.msra.mxu0 0
      %965 = vmatprep.subr.bf16.mxu0 0
      %966 = vmatpush1.bf16.msra.mxu0 0
      %967 = vmatprep.subr.bf16.mxu0 0
      %968 = vmatpush1.bf16.msra.mxu0 0
      %969 = vmatprep.subr.bf16.mxu0 0
      %970 = vmatpush1.bf16.msra.mxu0 0
      %971 = vmatprep.subr.bf16.mxu0 0
      %972 = vmatpush1.bf16.msra.mxu0 0
      %973 = vmatprep.subr.bf16.mxu0 0
      %974 = vmatpush1.bf16.msra.mxu0 0
      %975 = vmatprep.subr.bf16.mxu0 0
      %976 = vmatpush1.bf16.msra.mxu0 0
      %977 = vmatprep.mubr.bf16.mxu0 0
      %978 = vmatmul.mubr.bf16.gmra.mrb[0].mxu0 %v943
      %v979 = vpop.f32.mrb[0].mxu0
      %v980 = vadd.f32 0.0, %v979
      %v981 = vpop.f32.mrb[0].mxu0
      %v982 = vadd.f32 0.0, %v981
      %v983 = vpop.f32.mrb[0].mxu0
      %v984 = vadd.f32 0.0, %v983
      %v985 = vpop.f32.mrb[0].mxu0
      %v986 = vadd.f32 0.0, %v985
      %987 = vdwg.mxu0
      %v990 = vunpack.c.l.b16 %v908
      %v991 = vunpack.c.h.b16 %v908
      %v992 = vunpack.c.l.b16 %v909
      %v993 = vunpack.c.h.b16 %v909
      %v994 = vpack.c.b16 %v992, %v990
      %v995 = vpack.c.b16 %v993, %v991
      %996 = vrot.lane.b32.xlu0 %v994, 29
      %v997 = vpop.permute.xlu0 %996
      %998 = vrot.lane.b32.xlu0 %v995, 29
      %v999 = vpop.permute.xlu0 %998
      %vm1000 = vcmask 236544
      %v1001 = vsel %vm1000, %v997, %v999
      %1002 = vrot.lane.b32.xlu0 %v910, 20
      %v1003 = vpop.permute.xlu0 %1002
      %1004 = vrot.lane.b32.xlu0 %v911, 20
      %v1005 = vpop.permute.xlu0 %1004
      %1006 = vrot.lane.b32.xlu0 %v912, 20
      %v1007 = vpop.permute.xlu0 %1006
      %1008 = vrot.lane.b32.xlu0 %v913, 20
      %v1009 = vpop.permute.xlu0 %1008
      %vm1010 = vcmask 162816
      %v1011 = vsel %vm1010, %v1003, %v1005
      %v1012 = vsel %vm1010, %v1007, %v1009
      %v1018 = vsel %vm418, %v1001, 0
      %1020 = vmatprep.subr.bf16.mxu0 %v1005
      %1021 = vmatpush1.bf16.msra.mxu0 %v1011
      %1022 = vmatprep.subr.bf16.mxu0 %v1009
      %1023 = vmatpush1.bf16.msra.mxu0 %v1012
      %1024 = vmatprep.subr.bf16.mxu0 0
      %1025 = vmatpush1.bf16.msra.mxu0 0
      %1026 = vmatprep.subr.bf16.mxu0 0
      %1027 = vmatpush1.bf16.msra.mxu0 0
      %1028 = vmatprep.subr.bf16.mxu0 0
      %1029 = vmatpush1.bf16.msra.mxu0 0
      %1030 = vmatprep.subr.bf16.mxu0 0
      %1031 = vmatpush1.bf16.msra.mxu0 0
      %1032 = vmatprep.subr.bf16.mxu0 0
      %1033 = vmatpush1.bf16.msra.mxu0 0
      %1034 = vmatprep.subr.bf16.mxu0 0
      %1035 = vmatpush1.bf16.msra.mxu0 0
      %1036 = vmatprep.subr.bf16.mxu0 0
      %1037 = vmatpush1.bf16.msra.mxu0 0
      %1038 = vmatprep.subr.bf16.mxu0 0
      %1039 = vmatpush1.bf16.msra.mxu0 0
      %1040 = vmatprep.subr.bf16.mxu0 0
      %1041 = vmatpush1.bf16.msra.mxu0 0
      %1042 = vmatprep.subr.bf16.mxu0 0
      %1043 = vmatpush1.bf16.msra.mxu0 0
      %1044 = vmatprep.subr.bf16.mxu0 0
      %1045 = vmatpush1.bf16.msra.mxu0 0
      %1046 = vmatprep.subr.bf16.mxu0 0
      %1047 = vmatpush1.bf16.msra.mxu0 0
      %1048 = vmatprep.subr.bf16.mxu0 0
      %1049 = vmatpush1.bf16.msra.mxu0 0
      %1050 = vmatprep.subr.bf16.mxu0 0
      %1051 = vmatpush1.bf16.msra.mxu0 0
      %1052 = vmatprep.mubr.bf16.mxu0 0
      %1053 = vmatmul.mubr.bf16.gmra.mrb[0].mxu0 %v1018
      %v1054 = vpop.f32.mrb[0].mxu0
      %v1055 = vadd.f32 %v980, %v1054
      %v1056 = vpop.f32.mrb[0].mxu0
      %v1057 = vadd.f32 %v982, %v1056
      %v1058 = vpop.f32.mrb[0].mxu0
      %v1059 = vadd.f32 %v984, %v1058
      %v1060 = vpop.f32.mrb[0].mxu0
      %v1061 = vadd.f32 %v986, %v1060
      %1062 = vdwg.mxu0
      %1063 = vrot.lane.b32.xlu0 %v920, 93
      %v1064 = vpop.permute.xlu0 %1063
      %1065 = vrot.lane.b32.xlu0 %v910, 18
      %v1066 = vpop.permute.xlu0 %1065
      %1067 = vrot.lane.b32.xlu0 %v911, 18
      %v1068 = vpop.permute.xlu0 %1067
      %1069 = vrot.lane.b32.xlu0 %v912, 18
      %v1070 = vpop.permute.xlu0 %1069
      %1071 = vrot.lane.b32.xlu0 %v913, 18
      %v1072 = vpop.permute.xlu0 %1071
      %vm1073 = vcmask 146432
      %v1074 = vsel %vm1073, %v1066, %v1068
      %v1075 = vsel %vm1073, %v1070, %v1072
      %v1081 = vsel %vm418, %v1064, 0
      %1083 = vmatprep.subr.bf16.mxu0 %v1068
      %1084 = vmatpush1.bf16.msra.mxu0 %v1074
      %1085 = vmatprep.subr.bf16.mxu0 %v1072
      %1086 = vmatpush1.bf16.msra.mxu0 %v1075
      %1087 = vmatprep.subr.bf16.mxu0 0
      %1088 = vmatpush1.bf16.msra.mxu0 0
      %1089 = vmatprep.subr.bf16.mxu0 0
      %1090 = vmatpush1.bf16.msra.mxu0 0
      %1091 = vmatprep.subr.bf16.mxu0 0
      %1092 = vmatpush1.bf16.msra.mxu0 0
      %1093 = vmatprep.subr.bf16.mxu0 0
      %1094 = vmatpush1.bf16.msra.mxu0 0
      %1095 = vmatprep.subr.bf16.mxu0 0
      %1096 = vmatpush1.bf16.msra.mxu0 0
      %1097 = vmatprep.subr.bf16.mxu0 0
      %1098 = vmatpush1.bf16.msra.mxu0 0
      %1099 = vmatprep.subr.bf16.mxu0 0
      %1100 = vmatpush1.bf16.msra.mxu0 0
      %1101 = vmatprep.subr.bf16.mxu0 0
      %1102 = vmatpush1.bf16.msra.mxu0 0
      %1103 = vmatprep.subr.bf16.mxu0 0
      %1104 = vmatpush1.bf16.msra.mxu0 0
      %1105 = vmatprep.subr.bf16.mxu0 0
      %1106 = vmatpush1.bf16.msra.mxu0 0
      %1107 = vmatprep.subr.bf16.mxu0 0
      %1108 = vmatpush1.bf16.msra.mxu0 0
      %1109 = vmatprep.subr.bf16.mxu0 0
      %1110 = vmatpush1.bf16.msra.mxu0 0
      %1111 = vmatprep.subr.bf16.mxu0 0
      %1112 = vmatpush1.bf16.msra.mxu0 0
      %1113 = vmatprep.subr.bf16.mxu0 0
      %1114 = vmatpush1.bf16.msra.mxu0 0
      %1115 = vmatprep.mubr.bf16.mxu0 0
      %1116 = vmatmul.mubr.bf16.gmra.mrb[0].mxu0 %v1081
      %v1117 = vpop.f32.mrb[0].mxu0
      %v1118 = vadd.f32 0.0, %v1117
      %v1119 = vpop.f32.mrb[0].mxu0
      %v1120 = vadd.f32 0.0, %v1119
      %v1121 = vpop.f32.mrb[0].mxu0
      %v1122 = vadd.f32 0.0, %v1121
      %v1123 = vpop.f32.mrb[0].mxu0
      %v1124 = vadd.f32 0.0, %v1123
      %1125 = vdwg.mxu0
      %v1126 = vadd.f32 %v1055, %v1118
      %v1127 = vadd.f32 %v1057, %v1120
      %v1128 = vadd.f32 %v1059, %v1122
      %v1129 = vadd.f32 %v1061, %v1124
      %v1130 = vld [vmem:[#allocation2 + $0x8] sm:$0xff]
      %v1131 = vld [vmem:[#allocation2 + $0x10] sm:$0xff]
      %v1132 = vld [vmem:[#allocation2 + $0x20] sm:$0xff]
      %v1133 = vld [vmem:[#allocation2 + $0x28] sm:$0xff]
      %1134 = vrot.lane.b32.xlu0 %v920, 61
      %v1135 = vpop.permute.xlu0 %1134
      %1140 = vrot.lane.b32.xlu0 %v1130, 112
      %v1141 = vpop.permute.xlu0 %1140
      %1142 = vrot.lane.b32.xlu0 %v1131, 112
      %v1143 = vpop.permute.xlu0 %1142
      %1144 = vrot.lane.b32.xlu0 %v1132, 112
      %v1145 = vpop.permute.xlu0 %1144
      %1146 = vrot.lane.b32.xlu0 %v1133, 112
      %v1147 = vpop.permute.xlu0 %1146
      %v1148 = vsel %vm609, %v1141, %v1143
      %v1149 = vsel %vm609, %v1145, %v1147
      %v1155 = vsel %vm418, %v1135, 0
      %1157 = vmatprep.subr.bf16.mxu0 %v1143
      %1158 = vmatpush1.bf16.msra.mxu0 %v1148
      %1159 = vmatprep.subr.bf16.mxu0 %v1147
      %1160 = vmatpush1.bf16.msra.mxu0 %v1149
      %1161 = vmatprep.subr.bf16.mxu0 0
      %1162 = vmatpush1.bf16.msra.mxu0 0
      %1163 = vmatprep.subr.bf16.mxu0 0
      %1164 = vmatpush1.bf16.msra.mxu0 0
      %1165 = vmatprep.subr.bf16.mxu0 0
      %1166 = vmatpush1.bf16.msra.mxu0 0
      %1167 = vmatprep.subr.bf16.mxu0 0
      %1168 = vmatpush1.bf16.msra.mxu0 0
      %1169 = vmatprep.subr.bf16.mxu0 0
      %1170 = vmatpush1.bf16.msra.mxu0 0
      %1171 = vmatprep.subr.bf16.mxu0 0
      %1172 = vmatpush1.bf16.msra.mxu0 0
      %1173 = vmatprep.subr.bf16.mxu0 0
      %1174 = vmatpush1.bf16.msra.mxu0 0
      %1175 = vmatprep.subr.bf16.mxu0 0
      %1176 = vmatpush1.bf16.msra.mxu0 0
      %1177 = vmatprep.subr.bf16.mxu0 0
      %1178 = vmatpush1.bf16.msra.mxu0 0
      %1179 = vmatprep.subr.bf16.mxu0 0
      %1180 = vmatpush1.bf16.msra.mxu0 0
      %1181 = vmatprep.subr.bf16.mxu0 0
      %1182 = vmatpush1.bf16.msra.mxu0 0
      %1183 = vmatprep.subr.bf16.mxu0 0
      %1184 = vmatpush1.bf16.msra.mxu0 0
      %1185 = vmatprep.subr.bf16.mxu0 0
      %1186 = vmatpush1.bf16.msra.mxu0 0
      %1187 = vmatprep.subr.bf16.mxu0 0
      %1188 = vmatpush1.bf16.msra.mxu0 0
      %1189 = vmatprep.mubr.bf16.mxu0 0
      %1190 = vmatmul.mubr.bf16.gmra.mrb[0].mxu0 %v1155
      %v1191 = vpop.f32.mrb[0].mxu0
      %v1192 = vadd.f32 0.0, %v1191
      %v1193 = vpop.f32.mrb[0].mxu0
      %v1194 = vadd.f32 0.0, %v1193
      %v1195 = vpop.f32.mrb[0].mxu0
      %v1196 = vadd.f32 0.0, %v1195
      %v1197 = vpop.f32.mrb[0].mxu0
      %v1198 = vadd.f32 0.0, %v1197
      %1199 = vdwg.mxu0
      %v1200 = vadd.f32 %v1126, %v1192
      %v1201 = vadd.f32 %v1127, %v1194
      %v1202 = vadd.f32 %v1128, %v1196
      %v1203 = vadd.f32 %v1129, %v1198
      %v1204 = vld [vmem:[%s1 + $0x4] sm:$0xff]
      %v1205 = vld [vmem:[%s1 + $0x24] sm:$0xff]
      %v1208 = vunpack.c.l.b16 %v1204
      %v1209 = vunpack.c.h.b16 %v1204
      %v1210 = vunpack.c.l.b16 %v1205
      %v1211 = vunpack.c.h.b16 %v1205
      %v1212 = vpack.c.b16 %v1210, %v1208
      %v1213 = vpack.c.b16 %v1211, %v1209
      %1214 = vrot.lane.b32.xlu0 %v1212, 29
      %v1215 = vpop.permute.xlu0 %1214
      %1216 = vrot.lane.b32.xlu0 %v1213, 29
      %v1217 = vpop.permute.xlu0 %1216
      %v1218 = vsel %vm1000, %v1215, %v1217
      %1219 = vrot.lane.b32.xlu0 %v1130, 111
      %v1220 = vpop.permute.xlu0 %1219
      %1221 = vrot.lane.b32.xlu0 %v1131, 111
      %v1222 = vpop.permute.xlu0 %1221
      %1223 = vrot.lane.b32.xlu0 %v1132, 111
      %v1224 = vpop.permute.xlu0 %1223
      %1225 = vrot.lane.b32.xlu0 %v1133, 111
      %v1226 = vpop.permute.xlu0 %1225
      %v1227 = vsel %vm669, %v1220, %v1222
      %v1228 = vsel %vm669, %v1224, %v1226
      %v1234 = vsel %vm418, %v1218, 0
      %1236 = vmatprep.subr.bf16.mxu0 %v1222
      %1237 = vmatpush1.bf16.msra.mxu0 %v1227
      %1238 = vmatprep.subr.bf16.mxu0 %v1226
      %1239 = vmatpush1.bf16.msra.mxu0 %v1228
      %1240 = vmatprep.subr.bf16.mxu0 0
      %1241 = vmatpush1.bf16.msra.mxu0 0
      %1242 = vmatprep.subr.bf16.mxu0 0
      %1243 = vmatpush1.bf16.msra.mxu0 0
      %1244 = vmatprep.subr.bf16.mxu0 0
      %1245 = vmatpush1.bf16.msra.mxu0 0
      %1246 = vmatprep.subr.bf16.mxu0 0
      %1247 = vmatpush1.bf16.msra.mxu0 0
      %1248 = vmatprep.subr.bf16.mxu0 0
      %1249 = vmatpush1.bf16.msra.mxu0 0
      %1250 = vmatprep.subr.bf16.mxu0 0
      %1251 = vmatpush1.bf16.msra.mxu0 0
      %1252 = vmatprep.subr.bf16.mxu0 0
      %1253 = vmatpush1.bf16.msra.mxu0 0
      %1254 = vmatprep.subr.bf16.mxu0 0
      %1255 = vmatpush1.bf16.msra.mxu0 0
      %1256 = vmatprep.subr.bf16.mxu0 0
      %1257 = vmatpush1.bf16.msra.mxu0 0
      %1258 = vmatprep.subr.bf16.mxu0 0
      %1259 = vmatpush1.bf16.msra.mxu0 0
      %1260 = vmatprep.subr.bf16.mxu0 0
      %1261 = vmatpush1.bf16.msra.mxu0 0
      %1262 = vmatprep.subr.bf16.mxu0 0
      %1263 = vmatpush1.bf16.msra.mxu0 0
      %1264 = vmatprep.subr.bf16.mxu0 0
      %1265 = vmatpush1.bf16.msra.mxu0 0
      %1266 = vmatprep.subr.bf16.mxu0 0
      %1267 = vmatpush1.bf16.msra.mxu0 0
      %1268 = vmatprep.mubr.bf16.mxu0 0
      %1269 = vmatmul.mubr.bf16.gmra.mrb[0].mxu0 %v1234
      %v1270 = vpop.f32.mrb[0].mxu0
      %v1271 = vadd.f32 0.0, %v1270
      %v1272 = vpop.f32.mrb[0].mxu0
      %v1273 = vadd.f32 0.0, %v1272
      %v1274 = vpop.f32.mrb[0].mxu0
      %v1275 = vadd.f32 0.0, %v1274
      %v1276 = vpop.f32.mrb[0].mxu0
      %v1277 = vadd.f32 0.0, %v1276
      %1278 = vdwg.mxu0
      %v1279 = vadd.f32 %v1200, %v1271
      %v1280 = vadd.f32 %v1201, %v1273
      %v1281 = vadd.f32 %v1202, %v1275
      %v1282 = vadd.f32 %v1203, %v1277
      %v1283 = vld [vmem:[%s1 + $0x8] sm:$0xf]
      %v1284 = vld [vmem:[%s1 + $0x28] sm:$0xf]
      %v1287 = vunpack.c.l.b16 %v1283
      %v1288 = vunpack.c.l.b16 %v1284
      %v1289 = vpack.c.b16 %v1288, %v1287
      %1290 = vrot.lane.b32.xlu0 %v1289, 125
      %v1291 = vpop.permute.xlu0 %1290
      %1292 = vrot.lane.b32.xlu0 %v1130, 110
      %v1293 = vpop.permute.xlu0 %1292
      %1294 = vrot.lane.b32.xlu0 %v1131, 110
      %v1295 = vpop.permute.xlu0 %1294
      %1296 = vrot.lane.b32.xlu0 %v1132, 110
      %v1297 = vpop.permute.xlu0 %1296
      %1298 = vrot.lane.b32.xlu0 %v1133, 110
      %v1299 = vpop.permute.xlu0 %1298
      %v1300 = vsel %vm729, %v1293, %v1295
      %v1301 = vsel %vm729, %v1297, %v1299
      %v1307 = vsel %vm418, %v1291, 0
      %1309 = vmatprep.subr.bf16.mxu0 %v1295
      %1310 = vmatpush1.bf16.msra.mxu0 %v1300
      %1311 = vmatprep.subr.bf16.mxu0 %v1299
      %1312 = vmatpush1.bf16.msra.mxu0 %v1301
      %1313 = vmatprep.subr.bf16.mxu0 0
      %1314 = vmatpush1.bf16.msra.mxu0 0
      %1315 = vmatprep.subr.bf16.mxu0 0
      %1316 = vmatpush1.bf16.msra.mxu0 0
      %1317 = vmatprep.subr.bf16.mxu0 0
      %1318 = vmatpush1.bf16.msra.mxu0 0
      %1319 = vmatprep.subr.bf16.mxu0 0
      %1320 = vmatpush1.bf16.msra.mxu0 0
      %1321 = vmatprep.subr.bf16.mxu0 0
      %1322 = vmatpush1.bf16.msra.mxu0 0
      %1323 = vmatprep.subr.bf16.mxu0 0
      %1324 = vmatpush1.bf16.msra.mxu0 0
      %1325 = vmatprep.subr.bf16.mxu0 0
      %1326 = vmatpush1.bf16.msra.mxu0 0
      %1327 = vmatprep.subr.bf16.mxu0 0
      %1328 = vmatpush1.bf16.msra.mxu0 0
      %1329 = vmatprep.subr.bf16.mxu0 0
      %1330 = vmatpush1.bf16.msra.mxu0 0
      %1331 = vmatprep.subr.bf16.mxu0 0
      %1332 = vmatpush1.bf16.msra.mxu0 0
      %1333 = vmatprep.subr.bf16.mxu0 0
      %1334 = vmatpush1.bf16.msra.mxu0 0
      %1335 = vmatprep.subr.bf16.mxu0 0
      %1336 = vmatpush1.bf16.msra.mxu0 0
      %1337 = vmatprep.subr.bf16.mxu0 0
      %1338 = vmatpush1.bf16.msra.mxu0 0
      %1339 = vmatprep.subr.bf16.mxu0 0
      %1340 = vmatpush1.bf16.msra.mxu0 0
      %1341 = vmatprep.mubr.bf16.mxu0 0
      %1342 = vmatmul.mubr.bf16.gmra.mrb[0].mxu0 %v1307
      %v1343 = vpop.f32.mrb[0].mxu0
      %v1344 = vadd.f32 0.0, %v1343
      %v1345 = vpop.f32.mrb[0].mxu0
      %v1346 = vadd.f32 0.0, %v1345
      %v1347 = vpop.f32.mrb[0].mxu0
      %v1348 = vadd.f32 0.0, %v1347
      %v1349 = vpop.f32.mrb[0].mxu0
      %v1350 = vadd.f32 0.0, %v1349
      %1351 = vdwg.mxu0
      %v1352 = vadd.f32 %v1279, %v1344
      %v1353 = vadd.f32 %v1280, %v1346
      %v1354 = vadd.f32 %v1281, %v1348
      %v1355 = vadd.f32 %v1282, %v1350
      %v1356 = vld [vmem:[%s3] sm:$0xff]
      %v1357 = vld [vmem:[%s3 + $0x8] sm:$0xff]
      %v1358 = vmul.f32 %v1352, %v789
      %v1359 = vmul.f32 %v1353, %v793
      %v1360 = vmul.f32 %v1354, %v789
      %v1361 = vmul.f32 %v1355, %v793
      %v1362 = vsel %vm311, %v1359, 0.0
      %v1363 = vadd.f32 %v1358, %v1362
      %1364 = vadd.xlane.f32.xlu0 %v1363
      %v1365 = vpop.xlane.xlu0 %1364
      %v1366 = vsel %vm311, %v1361, 0.0
      %v1367 = vadd.f32 %v1360, %v1366
      %1368 = vadd.xlane.f32.xlu0 %v1367
      %v1369 = vpop.xlane.xlu0 %1368
      %v1370 = vmul.f32 %v1365, 0.0078125
      %v1371 = vmul.f32 %v1369, 0.0078125
      %v1372 = vmul.f32 %v1358, %v1352
      %v1373 = vmul.f32 %v1359, %v1353
      %v1374 = vmul.f32 %v1360, %v1354
      %v1375 = vmul.f32 %v1361, %v1355
      %v1376 = vsel %vm311, %v1373, 0.0
      %v1377 = vadd.f32 %v1372, %v1376
      %1378 = vadd.xlane.f32.xlu0 %v1377
      %v1379 = vpop.xlane.xlu0 %1378
      %v1380 = vsel %vm311, %v1375, 0.0
      %v1381 = vadd.f32 %v1374, %v1380
      %1382 = vadd.xlane.f32.xlu0 %v1381
      %v1383 = vpop.xlane.xlu0 %1382
      %v1384 = vmul.f32 %v1379, 0.0078125
      %v1385 = vmul.f32 %v1383, 0.0078125
      %v1386 = vmul.f32 %v1370, %v1370
      %v1387 = vmul.f32 %v1371, %v1371
      %v1388 = vsub.f32 %v1384, %v1386
      %v1389 = vsub.f32 %v1385, %v1387
      %v1390 = vmax.f32 %v1388, 0.0
      %v1391 = vmax.f32 %v1389, 0.0
      %v1392 = vsub.f32 %v1352, %v1370
      %v1393 = vsub.f32 %v1353, %v1370
      %v1394 = vsub.f32 %v1354, %v1371
      %v1395 = vsub.f32 %v1355, %v1371
      %v1396 = vadd.f32 %v1390, 1e-05
      %v1397 = vadd.f32 %v1391, 1e-05
      %v1398 = vrsqrt.pop %v1396
      %v1399 = vrsqrt.pop %v1397
      %v1400 = vmul.f32 %v1392, %v1398
      %v1401 = vmul.f32 %v1393, %v1398
      %v1402 = vmul.f32 %v1394, %v1399
      %v1403 = vmul.f32 %v1395, %v1399
      %1405 = vset.pattern.permute.xlu0 6
      %1406 = vperm.xlu0 %1405, %v1356
      %v1407 = vpop.permute.xlu0 %1406
      %1410 = vset.pattern.permute.xlu0 6
      %1411 = vperm.xlu0 %1410, %v1357
      %v1412 = vpop.permute.xlu0 %1411
      %v1414 = vmul.f32 %v1400, %v1407
      %v1415 = vmul.f32 %v1401, %v1407
      %v1416 = vmul.f32 %v1402, %v1412
      %v1417 = vmul.f32 %v1403, %v1412
      %1418 = vset.pattern.permute.xlu0 7
      %1419 = vperm.xlu0 %1418, %v1356
      %v1420 = vpop.permute.xlu0 %1419
      %1422 = vset.pattern.permute.xlu0 7
      %1423 = vperm.xlu0 %1422, %v1357
      %v1424 = vpop.permute.xlu0 %1423
      %v1426 = vadd.f32 %v1414, %v1420
      %v1427 = vadd.f32 %v1415, %v1420
      %v1428 = vadd.f32 %v1416, %v1424
      %v1429 = vadd.f32 %v1417, %v1424
      %vm1430 = vcmp.ge.f32.partialorder %v1426, 0.0
      %vm1431 = vcmp.ge.f32.partialorder %v1427, 0.0
      %vm1432 = vcmp.ge.f32.partialorder %v1428, 0.0
      %vm1433 = vcmp.ge.f32.partialorder %v1429, 0.0
      %1434 = vset.pattern.permute.xlu0 8
      %1435 = vperm.xlu0 %1434, %v1356
      %v1436 = vpop.permute.xlu0 %1435
      %1438 = vset.pattern.permute.xlu0 8
      %1439 = vperm.xlu0 %1438, %v1357
      %v1440 = vpop.permute.xlu0 %1439
      %v1442 = vmul.f32 %v1436, %v1426
      %v1443 = vmul.f32 %v1436, %v1427
      %v1444 = vmul.f32 %v1440, %v1428
      %v1445 = vmul.f32 %v1440, %v1429
      %v1446 = vsel %vm1430, %v1426, %v1442
      %v1447 = vsel %vm1431, %v1427, %v1443
      %v1448 = vsel %vm1432, %v1428, %v1444
      %v1449 = vsel %vm1433, %v1429, %v1445
      %v1450 = vmul.f32 %v1446, %v789
      %v1451 = vmul.f32 %v1447, %v793
      %v1452 = vmul.f32 %v1448, %v789
      %v1453 = vmul.f32 %v1449, %v793
      %v1454 = vpack.c.bf16 %v1452, %v1450
      %v1455 = vpack.c.bf16 %v1453, %v1451
      %1458 = vrot.lane.b32.xlu0 %v1454, 17
      %v1459 = vpop.permute.xlu0 %1458
      %1460 = vrot.lane.b32.xlu0 %v1455, 17
      %v1461 = vpop.permute.xlu0 %1460
      %v1462 = vsel %vm900, %v1459, %v1461
      %1465 = vst.msk [vmem:[#allocation2 + $0x38] sm:$0xff] %vm904, %v1459
      %1466 = vst.msk [vmem:[#allocation2 + $0x40] sm:$0xff] %vm906, %v1462
      %v1467 = vld [vmem:[%s1 + $0x8] sm:$0xf]
      %v1468 = vld [vmem:[%s1 + $0x28] sm:$0xf]
      %v1469 = vld [vmem:[#allocation2] sm:$0xff]
      %v1470 = vld [vmem:[#allocation2 + $0x8] sm:$0xff]
      %v1471 = vld [vmem:[#allocation2 + $0x18] sm:$0xff]
      %v1472 = vld [vmem:[#allocation2 + $0x20] sm:$0xff]
      %v1473 = vld [vmem:[#allocation2 + $0x30] sm:$0xff]
      %v1474 = vld [vmem:[#allocation2 + $0x38] sm:$0xff]
      %v1475 = vld [vmem:[%s1 + $0x8] sm:$0xff]
      %v1476 = vld [vmem:[%s1 + $0x28] sm:$0xff]
      %v1479 = vunpack.c.l.b16 %v1475
      %v1480 = vunpack.c.h.b16 %v1475
      %v1481 = vunpack.c.l.b16 %v1476
      %v1482 = vunpack.c.h.b16 %v1476
      %v1483 = vpack.c.b16 %v1481, %v1479
      %v1484 = vpack.c.b16 %v1482, %v1480
      %1485 = vrot.lane.b32.xlu0 %v1483, 45
      %v1486 = vpop.permute.xlu0 %1485
      %1487 = vrot.lane.b32.xlu0 %v1484, 45
      %v1488 = vpop.permute.xlu0 %1487
      %vm1489 = vcmask 367616
      %v1490 = vsel %vm1489, %v1486, %v1488
      %1497 = vrot.lane.b32.xlu0 %v1469, 55
      %v1498 = vpop.permute.xlu0 %1497
      %1499 = vrot.lane.b32.xlu0 %v1470, 55
      %v1500 = vpop.permute.xlu0 %1499
      %1501 = vrot.lane.b32.xlu0 %v1471, 55
      %v1502 = vpop.permute.xlu0 %1501
      %1503 = vrot.lane.b32.xlu0 %v1472, 55
      %v1504 = vpop.permute.xlu0 %1503
      %1505 = vrot.lane.b32.xlu0 %v1473, 55
      %v1506 = vpop.permute.xlu0 %1505
      %1507 = vrot.lane.b32.xlu0 %v1474, 55
      %v1508 = vpop.permute.xlu0 %1507
      %vm1509 = vcmask 449536
      %v1510 = vsel %vm1509, %v1498, %v1500
      %v1511 = vsel %vm1509, %v1502, %v1504
      %v1512 = vsel %vm1509, %v1506, %v1508
      %vm1519 = vcmask 392192
      %v1521 = vsel %vm1519, %v1490, 0
      %1523 = vmatprep.subr.bf16.mxu0 %v1500
      %1524 = vmatpush1.bf16.msra.mxu0 %v1510
      %1525 = vmatprep.subr.bf16.mxu0 %v1504
      %1526 = vmatpush1.bf16.msra.mxu0 %v1511
      %1527 = vmatprep.subr.bf16.mxu0 %v1508
      %1528 = vmatpush1.bf16.msra.mxu0 %v1512
      %1529 = vmatprep.subr.bf16.mxu0 0
      %1530 = vmatpush1.bf16.msra.mxu0 0
      %1531 = vmatprep.subr.bf16.mxu0 0
      %1532 = vmatpush1.bf16.msra.mxu0 0
      %1533 = vmatprep.subr.bf16.mxu0 0
      %1534 = vmatpush1.bf16.msra.mxu0 0
      %1535 = vmatprep.subr.bf16.mxu0 0
      %1536 = vmatpush1.bf16.msra.mxu0 0
      %1537 = vmatprep.subr.bf16.mxu0 0
      %1538 = vmatpush1.bf16.msra.mxu0 0
      %1539 = vmatprep.subr.bf16.mxu0 0
      %1540 = vmatpush1.bf16.msra.mxu0 0
      %1541 = vmatprep.subr.bf16.mxu0 0
      %1542 = vmatpush1.bf16.msra.mxu0 0
      %1543 = vmatprep.subr.bf16.mxu0 0
      %1544 = vmatpush1.bf16.msra.mxu0 0
      %1545 = vmatprep.subr.bf16.mxu0 0
      %1546 = vmatpush1.bf16.msra.mxu0 0
      %1547 = vmatprep.subr.bf16.mxu0 0
      %1548 = vmatpush1.bf16.msra.mxu0 0
      %1549 = vmatprep.subr.bf16.mxu0 0
      %1550 = vmatpush1.bf16.msra.mxu0 0
      %1551 = vmatprep.subr.bf16.mxu0 0
      %1552 = vmatpush1.bf16.msra.mxu0 0
      %1553 = vmatprep.subr.bf16.mxu0 0
      %1554 = vmatpush1.bf16.msra.mxu0 0
      %1555 = vmatprep.mubr.bf16.mxu0 0
      %1556 = vmatmul.mubr.bf16.gmra.mrb[0].mxu0 %v1521
      %v1557 = vpop.f32.mrb[0].mxu0
      %v1558 = vadd.f32 0.0, %v1557
      %v1559 = vpop.f32.mrb[0].mxu0
      %v1560 = vadd.f32 0.0, %v1559
      %v1561 = vpop.f32.mrb[0].mxu0
      %v1562 = vadd.f32 0.0, %v1561
      %v1563 = vpop.f32.mrb[0].mxu0
      %v1564 = vadd.f32 0.0, %v1563
      %1565 = vdwg.mxu0
      %v1568 = vunpack.c.l.b16 %v1467
      %v1569 = vunpack.c.l.b16 %v1468
      %v1570 = vpack.c.b16 %v1569, %v1568
      %1571 = vrot.lane.b32.xlu0 %v1570, 93
      %v1572 = vpop.permute.xlu0 %1571
      %1573 = vrot.lane.b32.xlu0 %v1469, 56
      %v1574 = vpop.permute.xlu0 %1573
      %1575 = vrot.lane.b32.xlu0 %v1470, 56
      %v1576 = vpop.permute.xlu0 %1575
      %1577 = vrot.lane.b32.xlu0 %v1471, 56
      %v1578 = vpop.permute.xlu0 %1577
      %1579 = vrot.lane.b32.xlu0 %v1472, 56
      %v1580 = vpop.permute.xlu0 %1579
      %1581 = vrot.lane.b32.xlu0 %v1473, 56
      %v1582 = vpop.permute.xlu0 %1581
      %1583 = vrot.lane.b32.xlu0 %v1474, 56
      %v1584 = vpop.permute.xlu0 %1583
      %vm1585 = vcmask 457728
      %v1586 = vsel %vm1585, %v1574, %v1576
      %v1587 = vsel %vm1585, %v1578, %v1580
      %v1588 = vsel %vm1585, %v1582, %v1584
      %v1596 = vsel %vm1519, %v1572, 0
      %1598 = vmatprep.subr.bf16.mxu0 %v1576
      %1599 = vmatpush1.bf16.msra.mxu0 %v1586
      %1600 = vmatprep.subr.bf16.mxu0 %v1580
      %1601 = vmatpush1.bf16.msra.mxu0 %v1587
      %1602 = vmatprep.subr.bf16.mxu0 %v1584
      %1603 = vmatpush1.bf16.msra.mxu0 %v1588
      %1604 = vmatprep.subr.bf16.mxu0 0
      %1605 = vmatpush1.bf16.msra.mxu0 0
      %1606 = vmatprep.subr.bf16.mxu0 0
      %1607 = vmatpush1.bf16.msra.mxu0 0
      %1608 = vmatprep.subr.bf16.mxu0 0
      %1609 = vmatpush1.bf16.msra.mxu0 0
      %1610 = vmatprep.subr.bf16.mxu0 0
      %1611 = vmatpush1.bf16.msra.mxu0 0
      %1612 = vmatprep.subr.bf16.mxu0 0
      %1613 = vmatpush1.bf16.msra.mxu0 0
      %1614 = vmatprep.subr.bf16.mxu0 0
      %1615 = vmatpush1.bf16.msra.mxu0 0
      %1616 = vmatprep.subr.bf16.mxu0 0
      %1617 = vmatpush1.bf16.msra.mxu0 0
      %1618 = vmatprep.subr.bf16.mxu0 0
      %1619 = vmatpush1.bf16.msra.mxu0 0
      %1620 = vmatprep.subr.bf16.mxu0 0
      %1621 = vmatpush1.bf16.msra.mxu0 0
      %1622 = vmatprep.subr.bf16.mxu0 0
      %1623 = vmatpush1.bf16.msra.mxu0 0
      %1624 = vmatprep.subr.bf16.mxu0 0
      %1625 = vmatpush1.bf16.msra.mxu0 0
      %1626 = vmatprep.subr.bf16.mxu0 0
      %1627 = vmatpush1.bf16.msra.mxu0 0
      %1628 = vmatprep.subr.bf16.mxu0 0
      %1629 = vmatpush1.bf16.msra.mxu0 0
      %1630 = vmatprep.mubr.bf16.mxu0 0
      %1631 = vmatmul.mubr.bf16.gmra.mrb[0].mxu0 %v1596
      %v1632 = vpop.f32.mrb[0].mxu0
      %v1633 = vadd.f32 %v1558, %v1632
      %v1634 = vpop.f32.mrb[0].mxu0
      %v1635 = vadd.f32 %v1560, %v1634
      %v1636 = vpop.f32.mrb[0].mxu0
      %v1637 = vadd.f32 %v1562, %v1636
      %v1638 = vpop.f32.mrb[0].mxu0
      %v1639 = vadd.f32 %v1564, %v1638
      %1640 = vdwg.mxu0
      %v1641 = vld [vmem:[%s1 + $0xc] sm:$0xf]
      %v1642 = vld [vmem:[%s1 + $0x2c] sm:$0xf]
      %v1645 = vunpack.c.l.b16 %v1641
      %v1646 = vunpack.c.l.b16 %v1642
      %v1647 = vpack.c.b16 %v1646, %v1645
      %1648 = vrot.lane.b32.xlu0 %v1647, 125
      %v1649 = vpop.permute.xlu0 %1648
      %1650 = vrot.lane.b32.xlu0 %v1469, 54
      %v1651 = vpop.permute.xlu0 %1650
      %1652 = vrot.lane.b32.xlu0 %v1470, 54
      %v1653 = vpop.permute.xlu0 %1652
      %1654 = vrot.lane.b32.xlu0 %v1471, 54
      %v1655 = vpop.permute.xlu0 %1654
      %1656 = vrot.lane.b32.xlu0 %v1472, 54
      %v1657 = vpop.permute.xlu0 %1656
      %1658 = vrot.lane.b32.xlu0 %v1473, 54
      %v1659 = vpop.permute.xlu0 %1658
      %1660 = vrot.lane.b32.xlu0 %v1474, 54
      %v1661 = vpop.permute.xlu0 %1660
      %vm1662 = vcmask 441344
      %v1663 = vsel %vm1662, %v1651, %v1653
      %v1664 = vsel %vm1662, %v1655, %v1657
      %v1665 = vsel %vm1662, %v1659, %v1661
      %v1673 = vsel %vm1519, %v1649, 0
      %1675 = vmatprep.subr.bf16.mxu0 %v1653
      %1676 = vmatpush1.bf16.msra.mxu0 %v1663
      %1677 = vmatprep.subr.bf16.mxu0 %v1657
      %1678 = vmatpush1.bf16.msra.mxu0 %v1664
      %1679 = vmatprep.subr.bf16.mxu0 %v1661
      %1680 = vmatpush1.bf16.msra.mxu0 %v1665
      %1681 = vmatprep.subr.bf16.mxu0 0
      %1682 = vmatpush1.bf16.msra.mxu0 0
      %1683 = vmatprep.subr.bf16.mxu0 0
      %1684 = vmatpush1.bf16.msra.mxu0 0
      %1685 = vmatprep.subr.bf16.mxu0 0
      %1686 = vmatpush1.bf16.msra.mxu0 0
      %1687 = vmatprep.subr.bf16.mxu0 0
      %1688 = vmatpush1.bf16.msra.mxu0 0
      %1689 = vmatprep.subr.bf16.mxu0 0
      %1690 = vmatpush1.bf16.msra.mxu0 0
      %1691 = vmatprep.subr.bf16.mxu0 0
      %1692 = vmatpush1.bf16.msra.mxu0 0
      %1693 = vmatprep.subr.bf16.mxu0 0
      %1694 = vmatpush1.bf16.msra.mxu0 0
      %1695 = vmatprep.subr.bf16.mxu0 0
      %1696 = vmatpush1.bf16.msra.mxu0 0
      %1697 = vmatprep.subr.bf16.mxu0 0
      %1698 = vmatpush1.bf16.msra.mxu0 0
      %1699 = vmatprep.subr.bf16.mxu0 0
      %1700 = vmatpush1.bf16.msra.mxu0 0
      %1701 = vmatprep.subr.bf16.mxu0 0
      %1702 = vmatpush1.bf16.msra.mxu0 0
      %1703 = vmatprep.subr.bf16.mxu0 0
      %1704 = vmatpush1.bf16.msra.mxu0 0
      %1705 = vmatprep.subr.bf16.mxu0 0
      %1706 = vmatpush1.bf16.msra.mxu0 0
      %1707 = vmatprep.mubr.bf16.mxu0 0
      %1708 = vmatmul.mubr.bf16.gmra.mrb[0].mxu0 %v1673
      %v1709 = vpop.f32.mrb[0].mxu0
      %v1710 = vadd.f32 0.0, %v1709
      %v1711 = vpop.f32.mrb[0].mxu0
      %v1712 = vadd.f32 0.0, %v1711
      %v1713 = vpop.f32.mrb[0].mxu0
      %v1714 = vadd.f32 0.0, %v1713
      %v1715 = vpop.f32.mrb[0].mxu0
      %v1716 = vadd.f32 0.0, %v1715
      %1717 = vdwg.mxu0
      %v1718 = vadd.f32 %v1633, %v1710
      %v1719 = vadd.f32 %v1635, %v1712
      %v1720 = vadd.f32 %v1637, %v1714
      %v1721 = vadd.f32 %v1639, %v1716
      %v1722 = vld [vmem:[#allocation2 + $0x8] sm:$0xff]
      %v1723 = vld [vmem:[#allocation2 + $0x10] sm:$0xff]
      %v1724 = vld [vmem:[#allocation2 + $0x20] sm:$0xff]
      %v1725 = vld [vmem:[#allocation2 + $0x28] sm:$0xff]
      %v1726 = vld [vmem:[#allocation2 + $0x38] sm:$0xff]
      %v1727 = vld [vmem:[#allocation2 + $0x40] sm:$0xff]
      %1728 = vrot.lane.b32.xlu0 %v1647, 77
      %v1729 = vpop.permute.xlu0 %1728
      %1736 = vrot.lane.b32.xlu0 %v1722, 112
      %v1737 = vpop.permute.xlu0 %1736
      %1738 = vrot.lane.b32.xlu0 %v1723, 112
      %v1739 = vpop.permute.xlu0 %1738
      %1740 = vrot.lane.b32.xlu0 %v1724, 112
      %v1741 = vpop.permute.xlu0 %1740
      %1742 = vrot.lane.b32.xlu0 %v1725, 112
      %v1743 = vpop.permute.xlu0 %1742
      %1744 = vrot.lane.b32.xlu0 %v1726, 112
      %v1745 = vpop.permute.xlu0 %1744
      %1746 = vrot.lane.b32.xlu0 %v1727, 112
      %v1747 = vpop.permute.xlu0 %1746
      %v1748 = vsel %vm609, %v1737, %v1739
      %v1749 = vsel %vm609, %v1741, %v1743
      %v1750 = vsel %vm609, %v1745, %v1747
      %v1758 = vsel %vm1519, %v1729, 0
      %1760 = vmatprep.subr.bf16.mxu0 %v1739
      %1761 = vmatpush1.bf16.msra.mxu0 %v1748
      %1762 = vmatprep.subr.bf16.mxu0 %v1743
      %1763 = vmatpush1.bf16.msra.mxu0 %v1749
      %1764 = vmatprep.subr.bf16.mxu0 %v1747
      %1765 = vmatpush1.bf16.msra.mxu0 %v1750
      %1766 = vmatprep.subr.bf16.mxu0 0
      %1767 = vmatpush1.bf16.msra.mxu0 0
      %1768 = vmatprep.subr.bf16.mxu0 0
      %1769 = vmatpush1.bf16.msra.mxu0 0
      %1770 = vmatprep.subr.bf16.mxu0 0
      %1771 = vmatpush1.bf16.msra.mxu0 0
      %1772 = vmatprep.subr.bf16.mxu0 0
      %1773 = vmatpush1.bf16.msra.mxu0 0
      %1774 = vmatprep.subr.bf16.mxu0 0
      %1775 = vmatpush1.bf16.msra.mxu0 0
      %1776 = vmatprep.subr.bf16.mxu0 0
      %1777 = vmatpush1.bf16.msra.mxu0 0
      %1778 = vmatprep.subr.bf16.mxu0 0
      %1779 = vmatpush1.bf16.msra.mxu0 0
      %1780 = vmatprep.subr.bf16.mxu0 0
      %1781 = vmatpush1.bf16.msra.mxu0 0
      %1782 = vmatprep.subr.bf16.mxu0 0
      %1783 = vmatpush1.bf16.msra.mxu0 0
      %1784 = vmatprep.subr.bf16.mxu0 0
      %1785 = vmatpush1.bf16.msra.mxu0 0
      %1786 = vmatprep.subr.bf16.mxu0 0
      %1787 = vmatpush1.bf16.msra.mxu0 0
      %1788 = vmatprep.subr.bf16.mxu0 0
      %1789 = vmatpush1.bf16.msra.mxu0 0
      %1790 = vmatprep.subr.bf16.mxu0 0
      %1791 = vmatpush1.bf16.msra.mxu0 0
      %1792 = vmatprep.mubr.bf16.mxu0 0
      %1793 = vmatmul.mubr.bf16.gmra.mrb[0].mxu0 %v1758
      %v1794 = vpop.f32.mrb[0].mxu0
      %v1795 = vadd.f32 0.0, %v1794
      %v1796 = vpop.f32.mrb[0].mxu0
      %v1797 = vadd.f32 0.0, %v1796
      %v1798 = vpop.f32.mrb[0].mxu0
      %v1799 = vadd.f32 0.0, %v1798
      %v1800 = vpop.f32.mrb[0].mxu0
      %v1801 = vadd.f32 0.0, %v1800
      %1802 = vdwg.mxu0
      %v1803 = vadd.f32 %v1718, %v1795
      %v1804 = vadd.f32 %v1719, %v1797
      %v1805 = vadd.f32 %v1720, %v1799
      %v1806 = vadd.f32 %v1721, %v1801
      %v1807 = vld [vmem:[%s1 + $0xc] sm:$0xff]
      %v1808 = vld [vmem:[%s1 + $0x2c] sm:$0xff]
      %v1811 = vunpack.c.l.b16 %v1807
      %v1812 = vunpack.c.h.b16 %v1807
      %v1813 = vunpack.c.l.b16 %v1808
      %v1814 = vunpack.c.h.b16 %v1808
      %v1815 = vpack.c.b16 %v1813, %v1811
      %v1816 = vpack.c.b16 %v1814, %v1812
      %1817 = vrot.lane.b32.xlu0 %v1815, 29
      %v1818 = vpop.permute.xlu0 %1817
      %1819 = vrot.lane.b32.xlu0 %v1816, 29
      %v1820 = vpop.permute.xlu0 %1819
      %v1821 = vsel %vm1000, %v1818, %v1820
      %1822 = vrot.lane.b32.xlu0 %v1722, 111
      %v1823 = vpop.permute.xlu0 %1822
      %1824 = vrot.lane.b32.xlu0 %v1723, 111
      %v1825 = vpop.permute.xlu0 %1824
      %1826 = vrot.lane.b32.xlu0 %v1724, 111
      %v1827 = vpop.permute.xlu0 %1826
      %1828 = vrot.lane.b32.xlu0 %v1725, 111
      %v1829 = vpop.permute.xlu0 %1828
      %1830 = vrot.lane.b32.xlu0 %v1726, 111
      %v1831 = vpop.permute.xlu0 %1830
      %1832 = vrot.lane.b32.xlu0 %v1727, 111
      %v1833 = vpop.permute.xlu0 %1832
      %v1834 = vsel %vm669, %v1823, %v1825
      %v1835 = vsel %vm669, %v1827, %v1829
      %v1836 = vsel %vm669, %v1831, %v1833
      %v1844 = vsel %vm1519, %v1821, 0
      %1846 = vmatprep.subr.bf16.mxu0 %v1825
      %1847 = vmatpush1.bf16.msra.mxu0 %v1834
      %1848 = vmatprep.subr.bf16.mxu0 %v1829
      %1849 = vmatpush1.bf16.msra.mxu0 %v1835
      %1850 = vmatprep.subr.bf16.mxu0 %v1833
      %1851 = vmatpush1.bf16.msra.mxu0 %v1836
      %1852 = vmatprep.subr.bf16.mxu0 0
      %1853 = vmatpush1.bf16.msra.mxu0 0
      %1854 = vmatprep.subr.bf16.mxu0 0
      %1855 = vmatpush1.bf16.msra.mxu0 0
      %1856 = vmatprep.subr.bf16.mxu0 0
      %1857 = vmatpush1.bf16.msra.mxu0 0
      %1858 = vmatprep.subr.bf16.mxu0 0
      %1859 = vmatpush1.bf16.msra.mxu0 0
      %1860 = vmatprep.subr.bf16.mxu0 0
      %1861 = vmatpush1.bf16.msra.mxu0 0
      %1862 = vmatprep.subr.bf16.mxu0 0
      %1863 = vmatpush1.bf16.msra.mxu0 0
      %1864 = vmatprep.subr.bf16.mxu0 0
      %1865 = vmatpush1.bf16.msra.mxu0 0
      %1866 = vmatprep.subr.bf16.mxu0 0
      %1867 = vmatpush1.bf16.msra.mxu0 0
      %1868 = vmatprep.subr.bf16.mxu0 0
      %1869 = vmatpush1.bf16.msra.mxu0 0
      %1870 = vmatprep.subr.bf16.mxu0 0
      %1871 = vmatpush1.bf16.msra.mxu0 0
      %1872 = vmatprep.subr.bf16.mxu0 0
      %1873 = vmatpush1.bf16.msra.mxu0 0
      %1874 = vmatprep.subr.bf16.mxu0 0
      %1875 = vmatpush1.bf16.msra.mxu0 0
      %1876 = vmatprep.subr.bf16.mxu0 0
      %1877 = vmatpush1.bf16.msra.mxu0 0
      %1878 = vmatprep.mubr.bf16.mxu0 0
      %1879 = vmatmul.mubr.bf16.gmra.mrb[0].mxu0 %v1844
      %v1880 = vpop.f32.mrb[0].mxu0
      %v1881 = vadd.f32 0.0, %v1880
      %v1882 = vpop.f32.mrb[0].mxu0
      %v1883 = vadd.f32 0.0, %v1882
      %v1884 = vpop.f32.mrb[0].mxu0
      %v1885 = vadd.f32 0.0, %v1884
      %v1886 = vpop.f32.mrb[0].mxu0
      %v1887 = vadd.f32 0.0, %v1886
      %1888 = vdwg.mxu0
      %v1889 = vadd.f32 %v1803, %v1881
      %v1890 = vadd.f32 %v1804, %v1883
      %v1891 = vadd.f32 %v1805, %v1885
      %v1892 = vadd.f32 %v1806, %v1887
      %v1893 = vld [vmem:[%s1 + $0x10] sm:$0xf]
      %v1894 = vld [vmem:[%s1 + $0x30] sm:$0xf]
      %v1897 = vunpack.c.l.b16 %v1893
      %v1898 = vunpack.c.l.b16 %v1894
      %v1899 = vpack.c.b16 %v1898, %v1897
      %1900 = vrot.lane.b32.xlu0 %v1899, 109
      %v1901 = vpop.permute.xlu0 %1900
      %1902 = vrot.lane.b32.xlu0 %v1722, 110
      %v1903 = vpop.permute.xlu0 %1902
      %1904 = vrot.lane.b32.xlu0 %v1723, 110
      %v1905 = vpop.permute.xlu0 %1904
      %1906 = vrot.lane.b32.xlu0 %v1724, 110
      %v1907 = vpop.permute.xlu0 %1906
      %1908 = vrot.lane.b32.xlu0 %v1725, 110
      %v1909 = vpop.permute.xlu0 %1908
      %1910 = vrot.lane.b32.xlu0 %v1726, 110
      %v1911 = vpop.permute.xlu0 %1910
      %1912 = vrot.lane.b32.xlu0 %v1727, 110
      %v1913 = vpop.permute.xlu0 %1912
      %v1914 = vsel %vm729, %v1903, %v1905
      %v1915 = vsel %vm729, %v1907, %v1909
      %v1916 = vsel %vm729, %v1911, %v1913
      %v1924 = vsel %vm1519, %v1901, 0
      %1926 = vmatprep.subr.bf16.mxu0 %v1905
      %1927 = vmatpush1.bf16.msra.mxu0 %v1914
      %1928 = vmatprep.subr.bf16.mxu0 %v1909
      %1929 = vmatpush1.bf16.msra.mxu0 %v1915
      %1930 = vmatprep.subr.bf16.mxu0 %v1913
      %1931 = vmatpush1.bf16.msra.mxu0 %v1916
      %1932 = vmatprep.subr.bf16.mxu0 0
      %1933 = vmatpush1.bf16.msra.mxu0 0
      %1934 = vmatprep.subr.bf16.mxu0 0
      %1935 = vmatpush1.bf16.msra.mxu0 0
      %1936 = vmatprep.subr.bf16.mxu0 0
      %1937 = vmatpush1.bf16.msra.mxu0 0
      %1938 = vmatprep.subr.bf16.mxu0 0
      %1939 = vmatpush1.bf16.msra.mxu0 0
      %1940 = vmatprep.subr.bf16.mxu0 0
      %1941 = vmatpush1.bf16.msra.mxu0 0
      %1942 = vmatprep.subr.bf16.mxu0 0
      %1943 = vmatpush1.bf16.msra.mxu0 0
      %1944 = vmatprep.subr.bf16.mxu0 0
      %1945 = vmatpush1.bf16.msra.mxu0 0
      %1946 = vmatprep.subr.bf16.mxu0 0
      %1947 = vmatpush1.bf16.msra.mxu0 0
      %1948 = vmatprep.subr.bf16.mxu0 0
      %1949 = vmatpush1.bf16.msra.mxu0 0
      %1950 = vmatprep.subr.bf16.mxu0 0
      %1951 = vmatpush1.bf16.msra.mxu0 0
      %1952 = vmatprep.subr.bf16.mxu0 0
      %1953 = vmatpush1.bf16.msra.mxu0 0
      %1954 = vmatprep.subr.bf16.mxu0 0
      %1955 = vmatpush1.bf16.msra.mxu0 0
      %1956 = vmatprep.subr.bf16.mxu0 0
      %1957 = vmatpush1.bf16.msra.mxu0 0
      %1958 = vmatprep.mubr.bf16.mxu0 0
      %1959 = vmatmul.mubr.bf16.gmra.mrb[0].mxu0 %v1924
      %v1960 = vpop.f32.mrb[0].mxu0
      %v1961 = vadd.f32 0.0, %v1960
      %v1962 = vpop.f32.mrb[0].mxu0
      %v1963 = vadd.f32 0.0, %v1962
      %v1964 = vpop.f32.mrb[0].mxu0
      %v1965 = vadd.f32 0.0, %v1964
      %v1966 = vpop.f32.mrb[0].mxu0
      %v1967 = vadd.f32 0.0, %v1966
      %1968 = vdwg.mxu0
      %v1969 = vadd.f32 %v1889, %v1961
      %v1970 = vadd.f32 %v1890, %v1963
      %v1971 = vadd.f32 %v1891, %v1965
      %v1972 = vadd.f32 %v1892, %v1967
      %v1973 = vld [vmem:[%s3] sm:$0xff]
      %v1974 = vld [vmem:[%s3 + $0x8] sm:$0xff]
      %v1975 = vmul.f32 %v1969, %v789
      %v1976 = vmul.f32 %v1970, %v793
      %v1977 = vmul.f32 %v1971, %v789
      %v1978 = vmul.f32 %v1972, %v793
      %v1979 = vsel %vm311, %v1976, 0.0
      %v1980 = vadd.f32 %v1975, %v1979
      %1981 = vadd.xlane.f32.xlu0 %v1980
      %v1982 = vpop.xlane.xlu0 %1981
      %v1983 = vsel %vm311, %v1978, 0.0
      %v1984 = vadd.f32 %v1977, %v1983
      %1985 = vadd.xlane.f32.xlu0 %v1984
      %v1986 = vpop.xlane.xlu0 %1985
      %v1987 = vmul.f32 %v1982, 0.0078125
      %v1988 = vmul.f32 %v1986, 0.0078125
      %v1989 = vmul.f32 %v1975, %v1969
      %v1990 = vmul.f32 %v1976, %v1970
      %v1991 = vmul.f32 %v1977, %v1971
      %v1992 = vmul.f32 %v1978, %v1972
      %v1993 = vsel %vm311, %v1990, 0.0
      %v1994 = vadd.f32 %v1989, %v1993
      %1995 = vadd.xlane.f32.xlu0 %v1994
      %v1996 = vpop.xlane.xlu0 %1995
      %v1997 = vsel %vm311, %v1992, 0.0
      %v1998 = vadd.f32 %v1991, %v1997
      %1999 = vadd.xlane.f32.xlu0 %v1998
      %v2000 = vpop.xlane.xlu0 %1999
      %v2001 = vmul.f32 %v1996, 0.0078125
      %v2002 = vmul.f32 %v2000, 0.0078125
      %v2003 = vmul.f32 %v1987, %v1987
      %v2004 = vmul.f32 %v1988, %v1988
      %v2005 = vsub.f32 %v2001, %v2003
      %v2006 = vsub.f32 %v2002, %v2004
      %v2007 = vmax.f32 %v2005, 0.0
      %v2008 = vmax.f32 %v2006, 0.0
      %v2009 = vsub.f32 %v1969, %v1987
      %v2010 = vsub.f32 %v1970, %v1987
      %v2011 = vsub.f32 %v1971, %v1988
      %v2012 = vsub.f32 %v1972, %v1988
      %v2013 = vadd.f32 %v2007, 1e-05
      %v2014 = vadd.f32 %v2008, 1e-05
      %v2015 = vrsqrt.pop %v2013
      %v2016 = vrsqrt.pop %v2014
      %v2017 = vmul.f32 %v2009, %v2015
      %v2018 = vmul.f32 %v2010, %v2015
      %v2019 = vmul.f32 %v2011, %v2016
      %v2020 = vmul.f32 %v2012, %v2016
      %2022 = vset.pattern.permute.xlu0 9
      %2023 = vperm.xlu0 %2022, %v1973
      %v2024 = vpop.permute.xlu0 %2023
      %2027 = vset.pattern.permute.xlu0 9
      %2028 = vperm.xlu0 %2027, %v1974
      %v2029 = vpop.permute.xlu0 %2028
      %v2031 = vmul.f32 %v2017, %v2024
      %v2032 = vmul.f32 %v2018, %v2024
      %v2033 = vmul.f32 %v2019, %v2029
      %v2034 = vmul.f32 %v2020, %v2029
      %2035 = vset.pattern.permute.xlu0 10
      %2036 = vperm.xlu0 %2035, %v1973
      %v2037 = vpop.permute.xlu0 %2036
      %2039 = vset.pattern.permute.xlu0 10
      %2040 = vperm.xlu0 %2039, %v1974
      %v2041 = vpop.permute.xlu0 %2040
      %v2043 = vadd.f32 %v2031, %v2037
      %v2044 = vadd.f32 %v2032, %v2037
      %v2045 = vadd.f32 %v2033, %v2041
      %v2046 = vadd.f32 %v2034, %v2041
      %vm2047 = vcmp.ge.f32.partialorder %v2043, 0.0
      %vm2048 = vcmp.ge.f32.partialorder %v2044, 0.0
      %vm2049 = vcmp.ge.f32.partialorder %v2045, 0.0
      %vm2050 = vcmp.ge.f32.partialorder %v2046, 0.0
      %2051 = vset.pattern.permute.xlu0 11
      %2052 = vperm.xlu0 %2051, %v1973
      %v2053 = vpop.permute.xlu0 %2052
      %2055 = vset.pattern.permute.xlu0 11
      %2056 = vperm.xlu0 %2055, %v1974
      %v2057 = vpop.permute.xlu0 %2056
      %v2059 = vmul.f32 %v2053, %v2043
      %v2060 = vmul.f32 %v2053, %v2044
      %v2061 = vmul.f32 %v2057, %v2045
      %v2062 = vmul.f32 %v2057, %v2046
      %v2063 = vsel %vm2047, %v2043, %v2059
      %v2064 = vsel %vm2048, %v2044, %v2060
      %v2065 = vsel %vm2049, %v2045, %v2061
      %v2066 = vsel %vm2050, %v2046, %v2062
      %v2067 = vmul.f32 %v2063, %v789
      %v2068 = vmul.f32 %v2064, %v793
      %v2069 = vmul.f32 %v2065, %v789
      %v2070 = vmul.f32 %v2066, %v793
      %v2071 = vpack.c.bf16 %v2069, %v2067
      %v2072 = vpack.c.bf16 %v2070, %v2068
      %2075 = vrot.lane.b32.xlu0 %v2071, 17
      %v2076 = vpop.permute.xlu0 %2075
      %2077 = vrot.lane.b32.xlu0 %v2072, 17
      %v2078 = vpop.permute.xlu0 %2077
      %v2079 = vsel %vm900, %v2076, %v2078
      %2082 = vst.msk [vmem:[#allocation2 + $0x50] sm:$0xff] %vm904, %v2076
      %2083 = vst.msk [vmem:[#allocation2 + $0x58] sm:$0xff] %vm906, %v2079
      %v2084 = vld [vmem:[%s1 + $0x10] sm:$0xff]
      %v2085 = vld [vmem:[%s1 + $0x30] sm:$0xff]
      %v2086 = vld [vmem:[#allocation2] sm:$0xff]
      %v2087 = vld [vmem:[#allocation2 + $0x8] sm:$0xff]
      %v2088 = vld [vmem:[#allocation2 + $0x18] sm:$0xff]
      %v2089 = vld [vmem:[#allocation2 + $0x20] sm:$0xff]
      %v2090 = vld [vmem:[#allocation2 + $0x30] sm:$0xff]
      %v2091 = vld [vmem:[#allocation2 + $0x38] sm:$0xff]
      %v2092 = vld [vmem:[#allocation2 + $0x48] sm:$0xff]
      %v2093 = vld [vmem:[#allocation2 + $0x50] sm:$0xff]
      %v2094 = vld [vmem:[%s1 + $0x14] sm:$0xf]
      %v2095 = vld [vmem:[%s1 + $0x34] sm:$0xf]
      %v2098 = vunpack.c.l.b16 %v2094
      %v2099 = vunpack.c.l.b16 %v2095
      %v2100 = vpack.c.b16 %v2099, %v2098
      %2101 = vrot.lane.b32.xlu0 %v2100, 125
      %v2102 = vpop.permute.xlu0 %2101
      %2111 = vrot.lane.b32.xlu0 %v2086, 127
      %v2112 = vpop.permute.xlu0 %2111
      %2113 = vrot.lane.b32.xlu0 %v2087, 127
      %v2114 = vpop.permute.xlu0 %2113
      %2115 = vrot.lane.b32.xlu0 %v2088, 127
      %v2116 = vpop.permute.xlu0 %2115
      %2117 = vrot.lane.b32.xlu0 %v2089, 127
      %v2118 = vpop.permute.xlu0 %2117
      %2119 = vrot.lane.b32.xlu0 %v2090, 127
      %v2120 = vpop.permute.xlu0 %2119
      %2121 = vrot.lane.b32.xlu0 %v2091, 127
      %v2122 = vpop.permute.xlu0 %2121
      %2123 = vrot.lane.b32.xlu0 %v2092, 127
      %v2124 = vpop.permute.xlu0 %2123
      %2125 = vrot.lane.b32.xlu0 %v2093, 127
      %v2126 = vpop.permute.xlu0 %2125
      %vm2127 = vcmask 1039360
      %v2128 = vsel %vm2127, %v2112, %v2114
      %v2129 = vsel %vm2127, %v2116, %v2118
      %v2130 = vsel %vm2127, %v2120, %v2122
      %v2131 = vsel %vm2127, %v2124, %v2126
      %vm2140 = vcmask 523264
      %v2142 = vsel %vm2140, %v2102, 0
      %2144 = vmatprep.subr.bf16.mxu0 %v2114
      %2145 = vmatpush1.bf16.msra.mxu0 %v2128
      %2146 = vmatprep.subr.bf16.mxu0 %v2118
      %2147 = vmatpush1.bf16.msra.mxu0 %v2129
      %2148 = vmatprep.subr.bf16.mxu0 %v2122
      %2149 = vmatpush1.bf16.msra.mxu0 %v2130
      %2150 = vmatprep.subr.bf16.mxu0 %v2126
      %2151 = vmatpush1.bf16.msra.mxu0 %v2131
      %2152 = vmatprep.subr.bf16.mxu0 0
      %2153 = vmatpush1.bf16.msra.mxu0 0
      %2154 = vmatprep.subr.bf16.mxu0 0
      %2155 = vmatpush1.bf16.msra.mxu0 0
      %2156 = vmatprep.subr.bf16.mxu0 0
      %2157 = vmatpush1.bf16.msra.mxu0 0
      %2158 = vmatprep.subr.bf16.mxu0 0
      %2159 = vmatpush1.bf16.msra.mxu0 0
      %2160 = vmatprep.subr.bf16.mxu0 0
      %2161 = vmatpush1.bf16.msra.mxu0 0
      %2162 = vmatprep.subr.bf16.mxu0 0
      %2163 = vmatpush1.bf16.msra.mxu0 0
      %2164 = vmatprep.subr.bf16.mxu0 0
      %2165 = vmatpush1.bf16.msra.mxu0 0
      %2166 = vmatprep.subr.bf16.mxu0 0
      %2167 = vmatpush1.bf16.msra.mxu0 0
      %2168 = vmatprep.subr.bf16.mxu0 0
      %2169 = vmatpush1.bf16.msra.mxu0 0
      %2170 = vmatprep.subr.bf16.mxu0 0
      %2171 = vmatpush1.bf16.msra.mxu0 0
      %2172 = vmatprep.subr.bf16.mxu0 0
      %2173 = vmatpush1.bf16.msra.mxu0 0
      %2174 = vmatprep.subr.bf16.mxu0 0
      %2175 = vmatpush1.bf16.msra.mxu0 0
      %2176 = vmatprep.mubr.bf16.mxu0 0
      %2177 = vmatmul.mubr.bf16.gmra.mrb[0].mxu0 %v2142
      %v2178 = vpop.f32.mrb[0].mxu0
      %v2179 = vadd.f32 0.0, %v2178
      %v2180 = vpop.f32.mrb[0].mxu0
      %v2181 = vadd.f32 0.0, %v2180
      %v2182 = vpop.f32.mrb[0].mxu0
      %v2183 = vadd.f32 0.0, %v2182
      %v2184 = vpop.f32.mrb[0].mxu0
      %v2185 = vadd.f32 0.0, %v2184
      %2186 = vdwg.mxu0
      %v2189 = vunpack.c.l.b16 %v2084
      %v2190 = vunpack.c.h.b16 %v2084
      %v2191 = vunpack.c.l.b16 %v2085
      %v2192 = vunpack.c.h.b16 %v2085
      %v2193 = vpack.c.b16 %v2191, %v2189
      %v2194 = vpack.c.b16 %v2192, %v2190
      %2195 = vrot.lane.b32.xlu0 %v2193, 61
      %v2196 = vpop.permute.xlu0 %2195
      %2197 = vrot.lane.b32.xlu0 %v2194, 61
      %v2198 = vpop.permute.xlu0 %2197
      %vm2199 = vcmask 498688
      %v2200 = vsel %vm2199, %v2196, %v2198
      %v2202 = vsel %vm2140, %v2200, 0
      %2204 = vmatprep.subr.bf16.mxu0 %v2087
      %2205 = vmatpush1.bf16.msra.mxu0 %v2086
      %2206 = vmatprep.subr.bf16.mxu0 %v2089
      %2207 = vmatpush1.bf16.msra.mxu0 %v2088
      %2208 = vmatprep.subr.bf16.mxu0 %v2091
      %2209 = vmatpush1.bf16.msra.mxu0 %v2090
      %2210 = vmatprep.subr.bf16.mxu0 %v2093
      %2211 = vmatpush1.bf16.msra.mxu0 %v2092
      %2212 = vmatprep.subr.bf16.mxu0 0
      %2213 = vmatpush1.bf16.msra.mxu0 0
      %2214 = vmatprep.subr.bf16.mxu0 0
      %2215 = vmatpush1.bf16.msra.mxu0 0
      %2216 = vmatprep.subr.bf16.mxu0 0
      %2217 = vmatpush1.bf16.msra.mxu0 0
      %2218 = vmatprep.subr.bf16.mxu0 0
      %2219 = vmatpush1.bf16.msra.mxu0 0
      %2220 = vmatprep.subr.bf16.mxu0 0
      %2221 = vmatpush1.bf16.msra.mxu0 0
      %2222 = vmatprep.subr.bf16.mxu0 0
      %2223 = vmatpush1.bf16.msra.mxu0 0
      %2224 = vmatprep.subr.bf16.mxu0 0
      %2225 = vmatpush1.bf16.msra.mxu0 0
      %2226 = vmatprep.subr.bf16.mxu0 0
      %2227 = vmatpush1.bf16.msra.mxu0 0
      %2228 = vmatprep.subr.bf16.mxu0 0
      %2229 = vmatpush1.bf16.msra.mxu0 0
      %2230 = vmatprep.subr.bf16.mxu0 0
      %2231 = vmatpush1.bf16.msra.mxu0 0
      %2232 = vmatprep.subr.bf16.mxu0 0
      %2233 = vmatpush1.bf16.msra.mxu0 0
      %2234 = vmatprep.subr.bf16.mxu0 0
      %2235 = vmatpush1.bf16.msra.mxu0 0
      %2236 = vmatprep.mubr.bf16.mxu0 0
      %2237 = vmatmul.mubr.bf16.gmra.mrb[0].mxu0 %v2202
      %v2238 = vpop.f32.mrb[0].mxu0
      %v2239 = vadd.f32 %v2179, %v2238
      %v2240 = vpop.f32.mrb[0].mxu0
      %v2241 = vadd.f32 %v2181, %v2240
      %v2242 = vpop.f32.mrb[0].mxu0
      %v2243 = vadd.f32 %v2183, %v2242
      %v2244 = vpop.f32.mrb[0].mxu0
      %v2245 = vadd.f32 %v2185, %v2244
      %2246 = vdwg.mxu0
      %v2247 = vld [vmem:[%s1 + $0x14] sm:$0xff]
      %v2248 = vld [vmem:[%s1 + $0x34] sm:$0xff]
      %v2251 = vunpack.c.l.b16 %v2247
      %v2252 = vunpack.c.h.b16 %v2247
      %v2253 = vunpack.c.l.b16 %v2248
      %v2254 = vunpack.c.h.b16 %v2248
      %v2255 = vpack.c.b16 %v2253, %v2251
      %v2256 = vpack.c.b16 %v2254, %v2252
      %2257 = vrot.lane.b32.xlu0 %v2255, 61
      %v2258 = vpop.permute.xlu0 %2257
      %2259 = vrot.lane.b32.xlu0 %v2256, 61
      %v2260 = vpop.permute.xlu0 %2259
      %v2261 = vsel %vm2199, %v2258, %v2260
      %2262 = vrot.lane.b32.xlu0 %v2086, 126
      %v2263 = vpop.permute.xlu0 %2262
      %2264 = vrot.lane.b32.xlu0 %v2087, 126
      %v2265 = vpop.permute.xlu0 %2264
      %2266 = vrot.lane.b32.xlu0 %v2088, 126
      %v2267 = vpop.permute.xlu0 %2266
      %2268 = vrot.lane.b32.xlu0 %v2089, 126
      %v2269 = vpop.permute.xlu0 %2268
      %2270 = vrot.lane.b32.xlu0 %v2090, 126
      %v2271 = vpop.permute.xlu0 %2270
      %2272 = vrot.lane.b32.xlu0 %v2091, 126
      %v2273 = vpop.permute.xlu0 %2272
      %2274 = vrot.lane.b32.xlu0 %v2092, 126
      %v2275 = vpop.permute.xlu0 %2274
      %2276 = vrot.lane.b32.xlu0 %v2093, 126
      %v2277 = vpop.permute.xlu0 %2276
      %vm2278 = vcmask 1031168
      %v2279 = vsel %vm2278, %v2263, %v2265
      %v2280 = vsel %vm2278, %v2267, %v2269
      %v2281 = vsel %vm2278, %v2271, %v2273
      %v2282 = vsel %vm2278, %v2275, %v2277
      %v2292 = vsel %vm2140, %v2261, 0
      %2294 = vmatprep.subr.bf16.mxu0 %v2265
      %2295 = vmatpush1.bf16.msra.mxu0 %v2279
      %2296 = vmatprep.subr.bf16.mxu0 %v2269
      %2297 = vmatpush1.bf16.msra.mxu0 %v2280
      %2298 = vmatprep.subr.bf16.mxu0 %v2273
      %2299 = vmatpush1.bf16.msra.mxu0 %v2281
      %2300 = vmatprep.subr.bf16.mxu0 %v2277
      %2301 = vmatpush1.bf16.msra.mxu0 %v2282
      %2302 = vmatprep.subr.bf16.mxu0 0
      %2303 = vmatpush1.bf16.msra.mxu0 0
      %2304 = vmatprep.subr.bf16.mxu0 0
      %2305 = vmatpush1.bf16.msra.mxu0 0
      %2306 = vmatprep.subr.bf16.mxu0 0
      %2307 = vmatpush1.bf16.msra.mxu0 0
      %2308 = vmatprep.subr.bf16.mxu0 0
      %2309 = vmatpush1.bf16.msra.mxu0 0
      %2310 = vmatprep.subr.bf16.mxu0 0
      %2311 = vmatpush1.bf16.msra.mxu0 0
      %2312 = vmatprep.subr.bf16.mxu0 0
      %2313 = vmatpush1.bf16.msra.mxu0 0
      %2314 = vmatprep.subr.bf16.mxu0 0
      %2315 = vmatpush1.bf16.msra.mxu0 0
      %2316 = vmatprep.subr.bf16.mxu0 0
      %2317 = vmatpush1.bf16.msra.mxu0 0
      %2318 = vmatprep.subr.bf16.mxu0 0
      %2319 = vmatpush1.bf16.msra.mxu0 0
      %2320 = vmatprep.subr.bf16.mxu0 0
      %2321 = vmatpush1.bf16.msra.mxu0 0
      %2322 = vmatprep.subr.bf16.mxu0 0
      %2323 = vmatpush1.bf16.msra.mxu0 0
      %2324 = vmatprep.subr.bf16.mxu0 0
      %2325 = vmatpush1.bf16.msra.mxu0 0
      %2326 = vmatprep.mubr.bf16.mxu0 0
      %2327 = vmatmul.mubr.bf16.gmra.mrb[0].mxu0 %v2292
      %v2328 = vpop.f32.mrb[0].mxu0
      %v2329 = vadd.f32 0.0, %v2328
      %v2330 = vpop.f32.mrb[0].mxu0
      %v2331 = vadd.f32 0.0, %v2330
      %v2332 = vpop.f32.mrb[0].mxu0
      %v2333 = vadd.f32 0.0, %v2332
      %v2334 = vpop.f32.mrb[0].mxu0
      %v2335 = vadd.f32 0.0, %v2334
      %2336 = vdwg.mxu0
      %v2337 = vadd.f32 %v2239, %v2329
      %v2338 = vadd.f32 %v2241, %v2331
      %v2339 = vadd.f32 %v2243, %v2333
      %v2340 = vadd.f32 %v2245, %v2335
      %v2341 = vld [vmem:[%s1 + $0x18] sm:$0xf]
      %v2342 = vld [vmem:[%s1 + $0x38] sm:$0xf]
      %v2343 = vld [vmem:[#allocation2 + $0x8] sm:$0xff]
      %v2344 = vld [vmem:[#allocation2 + $0x10] sm:$0xff]
      %v2345 = vld [vmem:[#allocation2 + $0x20] sm:$0xff]
      %v2346 = vld [vmem:[#allocation2 + $0x28] sm:$0xff]
      %v2347 = vld [vmem:[#allocation2 + $0x38] sm:$0xff]
      %v2348 = vld [vmem:[#allocation2 + $0x40] sm:$0xff]
      %v2349 = vld [vmem:[#allocation2 + $0x50] sm:$0xff]
      %v2350 = vld [vmem:[#allocation2 + $0x58] sm:$0xff]
      %v2353 = vunpack.c.l.b16 %v2341
      %v2354 = vunpack.c.l.b16 %v2342
      %v2355 = vpack.c.b16 %v2354, %v2353
      %2356 = vrot.lane.b32.xlu0 %v2355, 125
      %v2357 = vpop.permute.xlu0 %2356
      %2366 = vrot.lane.b32.xlu0 %v2343, 112
      %v2367 = vpop.permute.xlu0 %2366
      %2368 = vrot.lane.b32.xlu0 %v2344, 112
      %v2369 = vpop.permute.xlu0 %2368
      %2370 = vrot.lane.b32.xlu0 %v2345, 112
      %v2371 = vpop.permute.xlu0 %2370
      %2372 = vrot.lane.b32.xlu0 %v2346, 112
      %v2373 = vpop.permute.xlu0 %2372
      %2374 = vrot.lane.b32.xlu0 %v2347, 112
      %v2375 = vpop.permute.xlu0 %2374
      %2376 = vrot.lane.b32.xlu0 %v2348, 112
      %v2377 = vpop.permute.xlu0 %2376
      %2378 = vrot.lane.b32.xlu0 %v2349, 112
      %v2379 = vpop.permute.xlu0 %2378
      %2380 = vrot.lane.b32.xlu0 %v2350, 112
      %v2381 = vpop.permute.xlu0 %2380
      %v2382 = vsel %vm609, %v2367, %v2369
      %v2383 = vsel %vm609, %v2371, %v2373
      %v2384 = vsel %vm609, %v2375, %v2377
      %v2385 = vsel %vm609, %v2379, %v2381
      %v2395 = vsel %vm2140, %v2357, 0
      %2397 = vmatprep.subr.bf16.mxu0 %v2369
      %2398 = vmatpush1.bf16.msra.mxu0 %v2382
      %2399 = vmatprep.subr.bf16.mxu0 %v2373
      %2400 = vmatpush1.bf16.msra.mxu0 %v2383
      %2401 = vmatprep.subr.bf16.mxu0 %v2377
      %2402 = vmatpush1.bf16.msra.mxu0 %v2384
      %2403 = vmatprep.subr.bf16.mxu0 %v2381
      %2404 = vmatpush1.bf16.msra.mxu0 %v2385
      %2405 = vmatprep.subr.bf16.mxu0 0
      %2406 = vmatpush1.bf16.msra.mxu0 0
      %2407 = vmatprep.subr.bf16.mxu0 0
      %2408 = vmatpush1.bf16.msra.mxu0 0
      %2409 = vmatprep.subr.bf16.mxu0 0
      %2410 = vmatpush1.bf16.msra.mxu0 0
      %2411 = vmatprep.subr.bf16.mxu0 0
      %2412 = vmatpush1.bf16.msra.mxu0 0
      %2413 = vmatprep.subr.bf16.mxu0 0
      %2414 = vmatpush1.bf16.msra.mxu0 0
      %2415 = vmatprep.subr.bf16.mxu0 0
      %2416 = vmatpush1.bf16.msra.mxu0 0
      %2417 = vmatprep.subr.bf16.mxu0 0
      %2418 = vmatpush1.bf16.msra.mxu0 0
      %2419 = vmatprep.subr.bf16.mxu0 0
      %2420 = vmatpush1.bf16.msra.mxu0 0
      %2421 = vmatprep.subr.bf16.mxu0 0
      %2422 = vmatpush1.bf16.msra.mxu0 0
      %2423 = vmatprep.subr.bf16.mxu0 0
      %2424 = vmatpush1.bf16.msra.mxu0 0
      %2425 = vmatprep.subr.bf16.mxu0 0
      %2426 = vmatpush1.bf16.msra.mxu0 0
      %2427 = vmatprep.subr.bf16.mxu0 0
      %2428 = vmatpush1.bf16.msra.mxu0 0
      %2429 = vmatprep.mubr.bf16.mxu0 0
      %2430 = vmatmul.mubr.bf16.gmra.mrb[0].mxu0 %v2395
      %v2431 = vpop.f32.mrb[0].mxu0
      %v2432 = vadd.f32 0.0, %v2431
      %v2433 = vpop.f32.mrb[0].mxu0
      %v2434 = vadd.f32 0.0, %v2433
      %v2435 = vpop.f32.mrb[0].mxu0
      %v2436 = vadd.f32 0.0, %v2435
      %v2437 = vpop.f32.mrb[0].mxu0
      %v2438 = vadd.f32 0.0, %v2437
      %2439 = vdwg.mxu0
      %v2440 = vadd.f32 %v2337, %v2432
      %v2441 = vadd.f32 %v2338, %v2434
      %v2442 = vadd.f32 %v2339, %v2436
      %v2443 = vadd.f32 %v2340, %v2438
      %v2444 = vld [vmem:[%s1 + $0x18] sm:$0xff]
      %v2445 = vld [vmem:[%s1 + $0x38] sm:$0xff]
      %v2448 = vunpack.c.l.b16 %v2444
      %v2449 = vunpack.c.h.b16 %v2444
      %v2450 = vunpack.c.l.b16 %v2445
      %v2451 = vunpack.c.h.b16 %v2445
      %v2452 = vpack.c.b16 %v2450, %v2448
      %v2453 = vpack.c.b16 %v2451, %v2449
      %2454 = vrot.lane.b32.xlu0 %v2452, 61
      %v2455 = vpop.permute.xlu0 %2454
      %2456 = vrot.lane.b32.xlu0 %v2453, 61
      %v2457 = vpop.permute.xlu0 %2456
      %v2458 = vsel %vm2199, %v2455, %v2457
      %2459 = vrot.lane.b32.xlu0 %v2343, 111
      %v2460 = vpop.permute.xlu0 %2459
      %2461 = vrot.lane.b32.xlu0 %v2344, 111
      %v2462 = vpop.permute.xlu0 %2461
      %2463 = vrot.lane.b32.xlu0 %v2345, 111
      %v2464 = vpop.permute.xlu0 %2463
      %2465 = vrot.lane.b32.xlu0 %v2346, 111
      %v2466 = vpop.permute.xlu0 %2465
      %2467 = vrot.lane.b32.xlu0 %v2347, 111
      %v2468 = vpop.permute.xlu0 %2467
      %2469 = vrot.lane.b32.xlu0 %v2348, 111
      %v2470 = vpop.permute.xlu0 %2469
      %2471 = vrot.lane.b32.xlu0 %v2349, 111
      %v2472 = vpop.permute.xlu0 %2471
      %2473 = vrot.lane.b32.xlu0 %v2350, 111
      %v2474 = vpop.permute.xlu0 %2473
      %v2475 = vsel %vm669, %v2460, %v2462
      %v2476 = vsel %vm669, %v2464, %v2466
      %v2477 = vsel %vm669, %v2468, %v2470
      %v2478 = vsel %vm669, %v2472, %v2474
      %v2488 = vsel %vm2140, %v2458, 0
      %2490 = vmatprep.subr.bf16.mxu0 %v2462
      %2491 = vmatpush1.bf16.msra.mxu0 %v2475
      %2492 = vmatprep.subr.bf16.mxu0 %v2466
      %2493 = vmatpush1.bf16.msra.mxu0 %v2476
      %2494 = vmatprep.subr.bf16.mxu0 %v2470
      %2495 = vmatpush1.bf16.msra.mxu0 %v2477
      %2496 = vmatprep.subr.bf16.mxu0 %v2474
      %2497 = vmatpush1.bf16.msra.mxu0 %v2478
      %2498 = vmatprep.subr.bf16.mxu0 0
      %2499 = vmatpush1.bf16.msra.mxu0 0
      %2500 = vmatprep.subr.bf16.mxu0 0
      %2501 = vmatpush1.bf16.msra.mxu0 0
      %2502 = vmatprep.subr.bf16.mxu0 0
      %2503 = vmatpush1.bf16.msra.mxu0 0
      %2504 = vmatprep.subr.bf16.mxu0 0
      %2505 = vmatpush1.bf16.msra.mxu0 0
      %2506 = vmatprep.subr.bf16.mxu0 0
      %2507 = vmatpush1.bf16.msra.mxu0 0
      %2508 = vmatprep.subr.bf16.mxu0 0
      %2509 = vmatpush1.bf16.msra.mxu0 0
      %2510 = vmatprep.subr.bf16.mxu0 0
      %2511 = vmatpush1.bf16.msra.mxu0 0
      %2512 = vmatprep.subr.bf16.mxu0 0
      %2513 = vmatpush1.bf16.msra.mxu0 0
      %2514 = vmatprep.subr.bf16.mxu0 0
      %2515 = vmatpush1.bf16.msra.mxu0 0
      %2516 = vmatprep.subr.bf16.mxu0 0
      %2517 = vmatpush1.bf16.msra.mxu0 0
      %2518 = vmatprep.subr.bf16.mxu0 0
      %2519 = vmatpush1.bf16.msra.mxu0 0
      %2520 = vmatprep.subr.bf16.mxu0 0
      %2521 = vmatpush1.bf16.msra.mxu0 0
      %2522 = vmatprep.mubr.bf16.mxu0 0
      %2523 = vmatmul.mubr.bf16.gmra.mrb[0].mxu0 %v2488
      %v2524 = vpop.f32.mrb[0].mxu0
      %v2525 = vadd.f32 0.0, %v2524
      %v2526 = vpop.f32.mrb[0].mxu0
      %v2527 = vadd.f32 0.0, %v2526
      %v2528 = vpop.f32.mrb[0].mxu0
      %v2529 = vadd.f32 0.0, %v2528
      %v2530 = vpop.f32.mrb[0].mxu0
      %v2531 = vadd.f32 0.0, %v2530
      %2532 = vdwg.mxu0
      %v2533 = vadd.f32 %v2440, %v2525
      %v2534 = vadd.f32 %v2441, %v2527
      %v2535 = vadd.f32 %v2442, %v2529
      %v2536 = vadd.f32 %v2443, %v2531
      %v2537 = vld [vmem:[%s1 + $0x1c] sm:$0xf]
      %v2538 = vld [vmem:[%s1 + $0x3c] sm:$0xf]
      %v2541 = vunpack.c.l.b16 %v2537
      %v2542 = vunpack.c.l.b16 %v2538
      %v2543 = vpack.c.b16 %v2542, %v2541
      %2544 = vrot.lane.b32.xlu0 %v2543, 125
      %v2545 = vpop.permute.xlu0 %2544
      %2546 = vrot.lane.b32.xlu0 %v2343, 110
      %v2547 = vpop.permute.xlu0 %2546
      %2548 = vrot.lane.b32.xlu0 %v2344, 110
      %v2549 = vpop.permute.xlu0 %2548
      %2550 = vrot.lane.b32.xlu0 %v2345, 110
      %v2551 = vpop.permute.xlu0 %2550
      %2552 = vrot.lane.b32.xlu0 %v2346, 110
      %v2553 = vpop.permute.xlu0 %2552
      %2554 = vrot.lane.b32.xlu0 %v2347, 110
      %v2555 = vpop.permute.xlu0 %2554
      %2556 = vrot.lane.b32.xlu0 %v2348, 110
      %v2557 = vpop.permute.xlu0 %2556
      %2558 = vrot.lane.b32.xlu0 %v2349, 110
      %v2559 = vpop.permute.xlu0 %2558
      %2560 = vrot.lane.b32.xlu0 %v2350, 110
      %v2561 = vpop.permute.xlu0 %2560
      %v2562 = vsel %vm729, %v2547, %v2549
      %v2563 = vsel %vm729, %v2551, %v2553
      %v2564 = vsel %vm729, %v2555, %v2557
      %v2565 = vsel %vm729, %v2559, %v2561
      %v2575 = vsel %vm2140, %v2545, 0
      %2577 = vmatprep.subr.bf16.mxu0 %v2549
      %2578 = vmatpush1.bf16.msra.mxu0 %v2562
      %2579 = vmatprep.subr.bf16.mxu0 %v2553
      %2580 = vmatpush1.bf16.msra.mxu0 %v2563
      %2581 = vmatprep.subr.bf16.mxu0 %v2557
      %2582 = vmatpush1.bf16.msra.mxu0 %v2564
      %2583 = vmatprep.subr.bf16.mxu0 %v2561
      %2584 = vmatpush1.bf16.msra.mxu0 %v2565
      %2585 = vmatprep.subr.bf16.mxu0 0
      %2586 = vmatpush1.bf16.msra.mxu0 0
      %2587 = vmatprep.subr.bf16.mxu0 0
      %2588 = vmatpush1.bf16.msra.mxu0 0
      %2589 = vmatprep.subr.bf16.mxu0 0
      %2590 = vmatpush1.bf16.msra.mxu0 0
      %2591 = vmatprep.subr.bf16.mxu0 0
      %2592 = vmatpush1.bf16.msra.mxu0 0
      %2593 = vmatprep.subr.bf16.mxu0 0
      %2594 = vmatpush1.bf16.msra.mxu0 0
      %2595 = vmatprep.subr.bf16.mxu0 0
      %2596 = vmatpush1.bf16.msra.mxu0 0
      %2597 = vmatprep.subr.bf16.mxu0 0
      %2598 = vmatpush1.bf16.msra.mxu0 0
      %2599 = vmatprep.subr.bf16.mxu0 0
      %2600 = vmatpush1.bf16.msra.mxu0 0
      %2601 = vmatprep.subr.bf16.mxu0 0
      %2602 = vmatpush1.bf16.msra.mxu0 0
      %2603 = vmatprep.subr.bf16.mxu0 0
      %2604 = vmatpush1.bf16.msra.mxu0 0
      %2605 = vmatprep.subr.bf16.mxu0 0
      %2606 = vmatpush1.bf16.msra.mxu0 0
      %2607 = vmatprep.subr.bf16.mxu0 0
      %2608 = vmatpush1.bf16.msra.mxu0 0
      %2609 = vmatprep.mubr.bf16.mxu0 0
      %2610 = vmatmul.mubr.bf16.gmra.mrb[0].mxu0 %v2575
      %v2611 = vpop.f32.mrb[0].mxu0
      %v2612 = vadd.f32 0.0, %v2611
      %v2613 = vpop.f32.mrb[0].mxu0
      %v2614 = vadd.f32 0.0, %v2613
      %v2615 = vpop.f32.mrb[0].mxu0
      %v2616 = vadd.f32 0.0, %v2615
      %v2617 = vpop.f32.mrb[0].mxu0
      %v2618 = vadd.f32 0.0, %v2617
      %2619 = vdwg.mxu0
      %v2620 = vadd.f32 %v2533, %v2612
      %v2621 = vadd.f32 %v2534, %v2614
      %v2622 = vadd.f32 %v2535, %v2616
      %v2623 = vadd.f32 %v2536, %v2618
      %v2624 = vld [vmem:[%s3] sm:$0xff]
      %v2625 = vld [vmem:[%s3 + $0x8] sm:$0xff]
      %v2626 = vmul.f32 %v2620, %v789
      %v2627 = vmul.f32 %v2621, %v793
      %v2628 = vmul.f32 %v2622, %v789
      %v2629 = vmul.f32 %v2623, %v793
      %v2630 = vsel %vm311, %v2627, 0.0
      %v2631 = vadd.f32 %v2626, %v2630
      %2632 = vadd.xlane.f32.xlu0 %v2631
      %v2633 = vpop.xlane.xlu0 %2632
      %v2634 = vsel %vm311, %v2629, 0.0
      %v2635 = vadd.f32 %v2628, %v2634
      %2636 = vadd.xlane.f32.xlu0 %v2635
      %v2637 = vpop.xlane.xlu0 %2636
      %v2638 = vmul.f32 %v2633, 0.0078125
      %v2639 = vmul.f32 %v2637, 0.0078125
      %v2640 = vmul.f32 %v2626, %v2620
      %v2641 = vmul.f32 %v2627, %v2621
      %v2642 = vmul.f32 %v2628, %v2622
      %v2643 = vmul.f32 %v2629, %v2623
      %v2644 = vsel %vm311, %v2641, 0.0
      %v2645 = vadd.f32 %v2640, %v2644
      %2646 = vadd.xlane.f32.xlu0 %v2645
      %v2647 = vpop.xlane.xlu0 %2646
      %v2648 = vsel %vm311, %v2643, 0.0
      %v2649 = vadd.f32 %v2642, %v2648
      %2650 = vadd.xlane.f32.xlu0 %v2649
      %v2651 = vpop.xlane.xlu0 %2650
      %v2652 = vmul.f32 %v2647, 0.0078125
      %v2653 = vmul.f32 %v2651, 0.0078125
      %v2654 = vmul.f32 %v2638, %v2638
      %v2655 = vmul.f32 %v2639, %v2639
      %v2656 = vsub.f32 %v2652, %v2654
      %v2657 = vsub.f32 %v2653, %v2655
      %v2658 = vmax.f32 %v2656, 0.0
      %v2659 = vmax.f32 %v2657, 0.0
      %v2660 = vsub.f32 %v2620, %v2638
      %v2661 = vsub.f32 %v2621, %v2638
      %v2662 = vsub.f32 %v2622, %v2639
      %v2663 = vsub.f32 %v2623, %v2639
      %v2664 = vadd.f32 %v2658, 1e-05
      %v2665 = vadd.f32 %v2659, 1e-05
      %v2666 = vrsqrt.pop %v2664
      %v2667 = vrsqrt.pop %v2665
      %v2668 = vmul.f32 %v2660, %v2666
      %v2669 = vmul.f32 %v2661, %v2666
      %v2670 = vmul.f32 %v2662, %v2667
      %v2671 = vmul.f32 %v2663, %v2667
      %2673 = vset.pattern.permute.xlu0 12
      %2674 = vperm.xlu0 %2673, %v2624
      %v2675 = vpop.permute.xlu0 %2674
      %2678 = vset.pattern.permute.xlu0 12
      %2679 = vperm.xlu0 %2678, %v2625
      %v2680 = vpop.permute.xlu0 %2679
      %v2682 = vmul.f32 %v2668, %v2675
      %v2683 = vmul.f32 %v2669, %v2675
      %v2684 = vmul.f32 %v2670, %v2680
      %v2685 = vmul.f32 %v2671, %v2680
      %2686 = vset.pattern.permute.xlu0 13
      %2687 = vperm.xlu0 %2686, %v2624
      %v2688 = vpop.permute.xlu0 %2687
      %2690 = vset.pattern.permute.xlu0 13
      %2691 = vperm.xlu0 %2690, %v2625
      %v2692 = vpop.permute.xlu0 %2691
      %v2694 = vadd.f32 %v2682, %v2688
      %v2695 = vadd.f32 %v2683, %v2688
      %v2696 = vadd.f32 %v2684, %v2692
      %v2697 = vadd.f32 %v2685, %v2692
      %vm2698 = vcmp.ge.f32.partialorder %v2694, 0.0
      %vm2699 = vcmp.ge.f32.partialorder %v2695, 0.0
      %vm2700 = vcmp.ge.f32.partialorder %v2696, 0.0
      %vm2701 = vcmp.ge.f32.partialorder %v2697, 0.0
      %2702 = vset.pattern.permute.xlu0 14
      %2703 = vperm.xlu0 %2702, %v2624
      %v2704 = vpop.permute.xlu0 %2703
      %2706 = vset.pattern.permute.xlu0 14
      %2707 = vperm.xlu0 %2706, %v2625
      %v2708 = vpop.permute.xlu0 %2707
      %v2710 = vmul.f32 %v2704, %v2694
      %v2711 = vmul.f32 %v2704, %v2695
      %v2712 = vmul.f32 %v2708, %v2696
      %v2713 = vmul.f32 %v2708, %v2697
      %v2714 = vsel %vm2698, %v2694, %v2710
      %v2715 = vsel %vm2699, %v2695, %v2711
      %v2716 = vsel %vm2700, %v2696, %v2712
      %v2717 = vsel %vm2701, %v2697, %v2713
      %v2718 = vmul.f32 %v2714, %v789
      %v2719 = vmul.f32 %v2715, %v793
      %v2720 = vmul.f32 %v2716, %v789
      %v2721 = vmul.f32 %v2717, %v793
      %v2722 = vpack.c.bf16 %v2720, %v2718
      %v2723 = vpack.c.bf16 %v2721, %v2719
      %2726 = vrot.lane.b32.xlu0 %v2722, 17
      %v2727 = vpop.permute.xlu0 %2726
      %2728 = vrot.lane.b32.xlu0 %v2723, 17
      %v2729 = vpop.permute.xlu0 %2728
      %v2730 = vsel %vm900, %v2727, %v2729
      %2733 = vst.msk [vmem:[#allocation2 + $0x68] sm:$0xff] %vm904, %v2727
      %2734 = vst.msk [vmem:[#allocation2 + $0x70] sm:$0xff] %vm906, %v2730
      %v2735 = vld [vmem:[%s1 + $0x1c] sm:$0xf]
      %v2736 = vld [vmem:[%s1 + $0x3c] sm:$0xf]
      %v2737 = vld [vmem:[#allocation2 + $0x68] sm:$0xff]
      %v2738 = vld [vmem:[#allocation2 + $0x70] sm:$0xff]
      %v2741 = vunpack.c.l.b16 %v2735
      %v2742 = vunpack.c.l.b16 %v2736
      %v2743 = vpack.c.b16 %v2742, %v2741
      %2744 = vrot.lane.b32.xlu0 %v2743, 45
      %v2745 = vpop.permute.xlu0 %2744
      %2748 = vrot.lane.b32.xlu0 %v2737, 111
      %v2749 = vpop.permute.xlu0 %2748
      %2750 = vrot.lane.b32.xlu0 %v2738, 111
      %v2751 = vpop.permute.xlu0 %2750
      %v2752 = vsel %vm669, %v2749, %v2751
      %v2756 = vsel %vm311, %v2745, 0
      %2758 = vmatprep.subr.bf16.mxu0 %v2751
      %2759 = vmatpush1.bf16.msra.mxu0 %v2752
      %2760 = vmatprep.subr.bf16.mxu0 0
      %2761 = vmatpush1.bf16.msra.mxu0 0
      %2762 = vmatprep.subr.bf16.mxu0 0
      %2763 = vmatpush1.bf16.msra.mxu0 0
      %2764 = vmatprep.subr.bf16.mxu0 0
      %2765 = vmatpush1.bf16.msra.mxu0 0
      %2766 = vmatprep.subr.bf16.mxu0 0
      %2767 = vmatpush1.bf16.msra.mxu0 0
      %2768 = vmatprep.subr.bf16.mxu0 0
      %2769 = vmatpush1.bf16.msra.mxu0 0
      %2770 = vmatprep.subr.bf16.mxu0 0
      %2771 = vmatpush1.bf16.msra.mxu0 0
      %2772 = vmatprep.subr.bf16.mxu0 0
      %2773 = vmatpush1.bf16.msra.mxu0 0
      %2774 = vmatprep.subr.bf16.mxu0 0
      %2775 = vmatpush1.bf16.msra.mxu0 0
      %2776 = vmatprep.subr.bf16.mxu0 0
      %2777 = vmatpush1.bf16.msra.mxu0 0
      %2778 = vmatprep.subr.bf16.mxu0 0
      %2779 = vmatpush1.bf16.msra.mxu0 0
      %2780 = vmatprep.subr.bf16.mxu0 0
      %2781 = vmatpush1.bf16.msra.mxu0 0
      %2782 = vmatprep.subr.bf16.mxu0 0
      %2783 = vmatpush1.bf16.msra.mxu0 0
      %2784 = vmatprep.subr.bf16.mxu0 0
      %2785 = vmatpush1.bf16.msra.mxu0 0
      %2786 = vmatprep.subr.bf16.mxu0 0
      %2787 = vmatpush1.bf16.msra.mxu0 0
      %2788 = vmatprep.subr.bf16.mxu0 0
      %2789 = vmatpush1.bf16.msra.mxu0 0
      %2790 = vmatprep.mubr.bf16.mxu0 0
      %2791 = vmatmul.mubr.bf16.gmra.mrb[0].mxu0 %v2756
      %v2792 = vpop.f32.mrb[0].mxu0
      %v2793 = vadd.f32 0.0, %v2792
      %v2794 = vpop.f32.mrb[0].mxu0
      %v2795 = vadd.f32 0.0, %v2794
      %v2796 = vpop.f32.mrb[0].mxu0
      %v2797 = vadd.f32 0.0, %v2796
      %v2798 = vpop.f32.mrb[0].mxu0
      %v2799 = vadd.f32 0.0, %v2798
      %2800 = vdwg.mxu0
      %2801 = vrot.lane.b32.xlu0 %v2743, 61
      %v2802 = vpop.permute.xlu0 %2801
      %2803 = vrot.lane.b32.xlu0 %v2737, 112
      %v2804 = vpop.permute.xlu0 %2803
      %2805 = vrot.lane.b32.xlu0 %v2738, 112
      %v2806 = vpop.permute.xlu0 %2805
      %v2807 = vsel %vm609, %v2804, %v2806
      %v2811 = vsel %vm311, %v2802, 0
      %2813 = vmatprep.subr.bf16.mxu0 %v2806
      %2814 = vmatpush1.bf16.msra.mxu0 %v2807
      %2815 = vmatprep.subr.bf16.mxu0 0
      %2816 = vmatpush1.bf16.msra.mxu0 0
      %2817 = vmatprep.subr.bf16.mxu0 0
      %2818 = vmatpush1.bf16.msra.mxu0 0
      %2819 = vmatprep.subr.bf16.mxu0 0
      %2820 = vmatpush1.bf16.msra.mxu0 0
      %2821 = vmatprep.subr.bf16.mxu0 0
      %2822 = vmatpush1.bf16.msra.mxu0 0
      %2823 = vmatprep.subr.bf16.mxu0 0
      %2824 = vmatpush1.bf16.msra.mxu0 0
      %2825 = vmatprep.subr.bf16.mxu0 0
      %2826 = vmatpush1.bf16.msra.mxu0 0
      %2827 = vmatprep.subr.bf16.mxu0 0
      %2828 = vmatpush1.bf16.msra.mxu0 0
      %2829 = vmatprep.subr.bf16.mxu0 0
      %2830 = vmatpush1.bf16.msra.mxu0 0
      %2831 = vmatprep.subr.bf16.mxu0 0
      %2832 = vmatpush1.bf16.msra.mxu0 0
      %2833 = vmatprep.subr.bf16.mxu0 0
      %2834 = vmatpush1.bf16.msra.mxu0 0
      %2835 = vmatprep.subr.bf16.mxu0 0
      %2836 = vmatpush1.bf16.msra.mxu0 0
      %2837 = vmatprep.subr.bf16.mxu0 0
      %2838 = vmatpush1.bf16.msra.mxu0 0
      %2839 = vmatprep.subr.bf16.mxu0 0
      %2840 = vmatpush1.bf16.msra.mxu0 0
      %2841 = vmatprep.subr.bf16.mxu0 0
      %2842 = vmatpush1.bf16.msra.mxu0 0
      %2843 = vmatprep.subr.bf16.mxu0 0
      %2844 = vmatpush1.bf16.msra.mxu0 0
      %2845 = vmatprep.mubr.bf16.mxu0 0
      %2846 = vmatmul.mubr.bf16.gmra.mrb[0].mxu0 %v2811
      %v2847 = vpop.f32.mrb[0].mxu0
      %v2848 = vadd.f32 %v2793, %v2847
      %v2849 = vpop.f32.mrb[0].mxu0
      %v2850 = vadd.f32 %v2795, %v2849
      %v2851 = vpop.f32.mrb[0].mxu0
      %v2852 = vadd.f32 %v2797, %v2851
      %v2853 = vpop.f32.mrb[0].mxu0
      %v2854 = vadd.f32 %v2799, %v2853
      %2855 = vdwg.mxu0
      %2856 = vrot.lane.b32.xlu0 %v2743, 29
      %v2857 = vpop.permute.xlu0 %2856
      %2858 = vrot.lane.b32.xlu0 %v2737, 110
      %v2859 = vpop.permute.xlu0 %2858
      %2860 = vrot.lane.b32.xlu0 %v2738, 110
      %v2861 = vpop.permute.xlu0 %2860
      %v2862 = vsel %vm729, %v2859, %v2861
      %v2866 = vsel %vm311, %v2857, 0
      %2868 = vmatprep.subr.bf16.mxu0 %v2861
      %2869 = vmatpush1.bf16.msra.mxu0 %v2862
      %2870 = vmatprep.subr.bf16.mxu0 0
      %2871 = vmatpush1.bf16.msra.mxu0 0
      %2872 = vmatprep.subr.bf16.mxu0 0
      %2873 = vmatpush1.bf16.msra.mxu0 0
      %2874 = vmatprep.subr.bf16.mxu0 0
      %2875 = vmatpush1.bf16.msra.mxu0 0
      %2876 = vmatprep.subr.bf16.mxu0 0
      %2877 = vmatpush1.bf16.msra.mxu0 0
      %2878 = vmatprep.subr.bf16.mxu0 0
      %2879 = vmatpush1.bf16.msra.mxu0 0
      %2880 = vmatprep.subr.bf16.mxu0 0
      %2881 = vmatpush1.bf16.msra.mxu0 0
      %2882 = vmatprep.subr.bf16.mxu0 0
      %2883 = vmatpush1.bf16.msra.mxu0 0
      %2884 = vmatprep.subr.bf16.mxu0 0
      %2885 = vmatpush1.bf16.msra.mxu0 0
      %2886 = vmatprep.subr.bf16.mxu0 0
      %2887 = vmatpush1.bf16.msra.mxu0 0
      %2888 = vmatprep.subr.bf16.mxu0 0
      %2889 = vmatpush1.bf16.msra.mxu0 0
      %2890 = vmatprep.subr.bf16.mxu0 0
      %2891 = vmatpush1.bf16.msra.mxu0 0
      %2892 = vmatprep.subr.bf16.mxu0 0
      %2893 = vmatpush1.bf16.msra.mxu0 0
      %2894 = vmatprep.subr.bf16.mxu0 0
      %2895 = vmatpush1.bf16.msra.mxu0 0
      %2896 = vmatprep.subr.bf16.mxu0 0
      %2897 = vmatpush1.bf16.msra.mxu0 0
      %2898 = vmatprep.subr.bf16.mxu0 0
      %2899 = vmatpush1.bf16.msra.mxu0 0
      %2900 = vmatprep.mubr.bf16.mxu0 0
      %2901 = vmatmul.mubr.bf16.gmra.mrb[0].mxu0 %v2866
      %v2902 = vpop.f32.mrb[0].mxu0
      %v2903 = vadd.f32 0.0, %v2902
      %v2904 = vpop.f32.mrb[0].mxu0
      %v2905 = vadd.f32 0.0, %v2904
      %v2906 = vpop.f32.mrb[0].mxu0
      %v2907 = vadd.f32 0.0, %v2906
      %v2908 = vpop.f32.mrb[0].mxu0
      %v2909 = vadd.f32 0.0, %v2908
      %2910 = vdwg.mxu0
      %v2911 = vadd.f32 %v2848, %v2903
      %v2912 = vadd.f32 %v2850, %v2905
      %v2913 = vadd.f32 %v2852, %v2907
      %v2914 = vadd.f32 %v2854, %v2909
      %v2915 = vld [vmem:[%s3] sm:$0xff]
      %v2916 = vld [vmem:[%s3 + $0x8] sm:$0xff]
      %v2918 = vlaneseq
      %v2919 = vshrl.u32 %v2918, 7
      %v2920 = vsub.s32 0, %v2919
      %v2921 = vrot.slane %v219, %v2920
      %v2922 = vlaneseq
      %v2923 = vshrl.u32 %v2922, 7
      %v2924 = vsub.s32 1, %v2923
      %v2925 = vrot.slane %v219, %v2924
      %v2928 = vmul.f32 %v2911, %v2921
      %v2929 = vmul.f32 %v2912, %v2925
      %v2930 = vmul.f32 %v2913, %v2921
      %v2931 = vmul.f32 %v2914, %v2925
      %v2932 = vsel %vm311, %v2929, 0.0
      %v2933 = vadd.f32 %v2928, %v2932
      %2934 = vadd.xlane.f32.xlu0 %v2933
      %v2935 = vpop.xlane.xlu0 %2934
      %v2936 = vsel %vm311, %v2931, 0.0
      %v2937 = vadd.f32 %v2930, %v2936
      %2938 = vadd.xlane.f32.xlu0 %v2937
      %v2939 = vpop.xlane.xlu0 %2938
      %v2940 = vmul.f32 %v2935, 0.015625
      %v2941 = vmul.f32 %v2939, 0.015625
      %v2942 = vmul.f32 %v2928, %v2911
      %v2943 = vmul.f32 %v2929, %v2912
      %v2944 = vmul.f32 %v2930, %v2913
      %v2945 = vmul.f32 %v2931, %v2914
      %v2946 = vsel %vm311, %v2943, 0.0
      %v2947 = vadd.f32 %v2942, %v2946
      %2948 = vadd.xlane.f32.xlu0 %v2947
      %v2949 = vpop.xlane.xlu0 %2948
      %v2950 = vsel %vm311, %v2945, 0.0
      %v2951 = vadd.f32 %v2944, %v2950
      %2952 = vadd.xlane.f32.xlu0 %v2951
      %v2953 = vpop.xlane.xlu0 %2952
      %v2954 = vmul.f32 %v2949, 0.015625
      %v2955 = vmul.f32 %v2953, 0.015625
      %v2956 = vmul.f32 %v2940, %v2940
      %v2957 = vmul.f32 %v2941, %v2941
      %v2958 = vsub.f32 %v2954, %v2956
      %v2959 = vsub.f32 %v2955, %v2957
      %v2960 = vmax.f32 %v2958, 0.0
      %v2961 = vmax.f32 %v2959, 0.0
      %v2962 = vsub.f32 %v2911, %v2940
      %v2963 = vsub.f32 %v2912, %v2940
      %v2964 = vsub.f32 %v2913, %v2941
      %v2965 = vsub.f32 %v2914, %v2941
      %v2966 = vadd.f32 %v2960, 1e-05
      %v2967 = vadd.f32 %v2961, 1e-05
      %v2968 = vrsqrt.pop %v2966
      %v2969 = vrsqrt.pop %v2967
      %v2970 = vmul.f32 %v2962, %v2968
      %v2971 = vmul.f32 %v2963, %v2968
      %v2972 = vmul.f32 %v2964, %v2969
      %v2973 = vmul.f32 %v2965, %v2969
      %2975 = vset.pattern.permute.xlu0 15
      %2976 = vperm.xlu0 %2975, %v2915
      %v2977 = vpop.permute.xlu0 %2976
      %2980 = vset.pattern.permute.xlu0 15
      %2981 = vperm.xlu0 %2980, %v2916
      %v2982 = vpop.permute.xlu0 %2981
      %v2984 = vmul.f32 %v2970, %v2977
      %v2985 = vmul.f32 %v2971, %v2977
      %v2986 = vmul.f32 %v2972, %v2982
      %v2987 = vmul.f32 %v2973, %v2982
      %2988 = vset.pattern.permute.xlu0 16
      %2989 = vperm.xlu0 %2988, %v2915
      %v2990 = vpop.permute.xlu0 %2989
      %2992 = vset.pattern.permute.xlu0 16
      %2993 = vperm.xlu0 %2992, %v2916
      %v2994 = vpop.permute.xlu0 %2993
      %v2996 = vadd.f32 %v2984, %v2990
      %v2997 = vadd.f32 %v2985, %v2990
      %v2998 = vadd.f32 %v2986, %v2994
      %v2999 = vadd.f32 %v2987, %v2994
      %vm3000 = vcmp.ge.f32.partialorder %v2996, 0.0
      %vm3001 = vcmp.ge.f32.partialorder %v2997, 0.0
      %vm3002 = vcmp.ge.f32.partialorder %v2998, 0.0
      %vm3003 = vcmp.ge.f32.partialorder %v2999, 0.0
      %3004 = vset.pattern.permute.xlu0 17
      %3005 = vperm.xlu0 %3004, %v2915
      %v3006 = vpop.permute.xlu0 %3005
      %3008 = vset.pattern.permute.xlu0 17
      %3009 = vperm.xlu0 %3008, %v2916
      %v3010 = vpop.permute.xlu0 %3009
      %v3012 = vmul.f32 %v3006, %v2996
      %v3013 = vmul.f32 %v3006, %v2997
      %v3014 = vmul.f32 %v3010, %v2998
      %v3015 = vmul.f32 %v3010, %v2999
      %v3016 = vsel %vm3000, %v2996, %v3012
      %v3017 = vsel %vm3001, %v2997, %v3013
      %v3018 = vsel %vm3002, %v2998, %v3014
      %v3019 = vsel %vm3003, %v2999, %v3015
      %v3020 = vpack.c.bf16 %v3018, %v3016
      %v3021 = vpack.c.bf16 %v3019, %v3017
      %v3024 = vunpack.c.l.b16 %v3020
      %v3025 = vunpack.c.l.b16 %v3021
      %v3026 = vunpack.c.h.b16 %v3020
      %v3027 = vunpack.c.h.b16 %v3021
      %v3028 = vpack.c.b16 %v3025, %v3024
      %v3029 = vpack.c.b16 %v3027, %v3026
      %vm3032 = vcmask 1043456
      %vm3033 = vcmask 130052
      %vm3034 = vmor %vm3033, %vm3032
      %3035 = vst.msk [vmem:[%s197] sm:$0xff] %vm3034, %v3028
      %3036 = vst.msk [vmem:[%s197 + $0x8] sm:$0xff] %vm3034, %v3029
      %p3037 = scmp.lt.s32.totalorder %s15, 1
      %s3038 = scalar_select %p3037, %s15, 1
      %s3039 = smul.addr %s3038, 4
      %s3040 = smul.addr %s3039, 4
      %s3041 = scalar_lea.vmem %s4, %s3040
      // Predicated region
      $region37: #{dense_encoder_forward.1} parent=35 // pred_check
        %p3042 = pneg %p122
      $region38: #{dense_encoder_forward.1} parent=35 // pred_check_branch
        %3044 = sbr.rel (%p3042) target = $region40
      $region39: #{dense_encoder_forward.1} parent=35 // pred_region
        _
      $region40: #{dense_encoder_forward.1} parent=35 // pred_fallthru
        _
    $region36: #{dense_encoder_forward.1} parent=5 // pred_fallthru
      _
    %p3045 = scmp.le.s32.totalorder 2, %s10
    // Predicated region
    $region41: #{dense_encoder_forward.1} parent=5 // pred_check
      %p3046 = pneg %p3045
    $region42: #{dense_encoder_forward.1} parent=5 // pred_check_branch
      %3048 = sbr.rel (%p3046) target = $region44
    $region43: #{dense_encoder_forward.1} parent=5 // pred_region
      %s3049 = ssub.s32 %s10, 2
      // Predicated region
      $region45: #{dense_encoder_forward.1} parent=43 // pred_check
        %p3050 = pneg %p128
      $region46: #{dense_encoder_forward.1} parent=43 // pred_check_branch
        %3052 = sbr.rel (%p3050) target = $region48
      $region47: #{dense_encoder_forward.1} parent=43 // pred_region
        %p3053 = scmp.lt.s32.totalorder %s16, 1
        %s3054 = scalar_select %p3053, %s16, 1
        %s3055 = smul.addr %s3054, 4
        %s3056 = smul.addr %s3055, 4
        %s3057 = scalar_lea.vmem %s4, %s3056
      $region48: #{dense_encoder_forward.1} parent=43 // pred_fallthru
        _
    $region44: #{dense_encoder_forward.1} parent=5 // pred_fallthru
      _
  $region6: #{dense_encoder_forward.1} parent=0 // loop_footer
    %s14 = sadd.s32 1, %s10
  $region7: #{dense_encoder_forward.1} parent=0 // loop_footer_branch
    %9 = sbr.rel target = $region3
  $region8: #{dense_encoder_forward.1} parent=0 // loop_exit
    _

</llo_original>
